<compile_context>
chip_gen: v6e
topology: v6e:2x2x1
jax: 0.10.0
libtpu: 0.0.40
codegen_flags: <defaults>
</compile_context>

<pallas_src>
import functools

import jax
import jax.numpy as jnp
from jax.experimental import pallas as pl
from jax.experimental.pallas import tpu as pltpu


# ---------------------------------------------------------------------------
# Pallas kernels: channel-major (C, T) tiles, spatial (lane) dimension last.
# ---------------------------------------------------------------------------

def _conv_mm_kernel(p_ref, w_ref, b_ref, o_ref, *, relu):
    """Fused-im2col conv: one (Cout, K) x (K, T) matmul + bias (+ ReLU).

    p_ref : (1, K, T)   K = 9*Cin im2col patches, T = spatial lane tile
    w_ref : (Cout, K)
    b_ref : (Cout, 1)
    o_ref : (1, Cout, T)
    """
    acc = jnp.dot(w_ref[...], p_ref[0], preferred_element_type=jnp.float32)
    acc = acc + b_ref[...]
    if relu:
        acc = jnp.maximum(acc, 0.0)
    o_ref[0] = acc.astype(o_ref.dtype)


def _conv_mm_cat_kernel(p1_ref, p2_ref, w1_ref, w2_ref, b_ref, o_ref, *, relu):
    """Conv over a channel-concatenated input, fused via split-weight matmuls
    (the concatenation itself never materializes in HBM)."""
    acc = jnp.dot(w1_ref[...], p1_ref[0], preferred_element_type=jnp.float32)
    acc = acc + jnp.dot(w2_ref[...], p2_ref[0], preferred_element_type=jnp.float32)
    acc = acc + b_ref[...]
    if relu:
        acc = jnp.maximum(acc, 0.0)
    o_ref[0] = acc.astype(o_ref.dtype)


def _att_gate_kernel(g_ref, x_ref, wg_ref, bg_ref, wx_ref, wpsi_ref, bpsi_ref,
                     o_ref):
    """Additive attention gate: skip * sigmoid(psi(relu(Wg g + Wx skip)))."""
    g = g_ref[0].astype(jnp.float32)                         # (Cg, T)
    x = x_ref[0].astype(jnp.float32)                         # (Cx, T)
    q = jnp.dot(wg_ref[...], g, preferred_element_type=jnp.float32) + bg_ref[...]
    # ag_bias_wx=False -> no bias on the Wx branch
    q = q + jnp.dot(wx_ref[...], x, preferred_element_type=jnp.float32)
    q = jnp.maximum(q, 0.0)                                  # (Fi, T)
    psi = (jnp.dot(wpsi_ref[...], q, preferred_element_type=jnp.float32)
           + bpsi_ref[...])
    att = jax.nn.sigmoid(psi)                                # (1, T), spatial on lanes
    o_ref[0] = (x * att).astype(o_ref.dtype)                 # (Cx, T)


def _head_kernel(u0_ref, u1u_ref, wf0_ref, wf1_ref, bf_ref, wsa_ref, bsa_ref,
                 o_ref):
    """Fused MA head: multiscale 1x1 conv + channel attn + spatial attn +
    concat-mean + sigmoid; lane-dense (1, HW) output (no trailing size-1)."""
    # 'final' 1x1 conv over concat([u0, up(u1)]) via split-weight matmuls.
    x = jnp.dot(wf0_ref[...], u0_ref[0], preferred_element_type=jnp.float32)
    x = x + jnp.dot(wf1_ref[...], u1u_ref[0], preferred_element_type=jnp.float32)
    x = x + bf_ref[...]                                      # (C0, HW)
    c0 = x.shape[0]
    # ChannelAttention2D: gate each channel by sigmoid(global average pool).
    ch_gate = jax.nn.sigmoid(jnp.mean(x, axis=1, keepdims=True))   # (C0, 1)
    ca = x * ch_gate
    # SpatialAttention2D: 1x1 conv C0 -> 1, sigmoid, gate.
    sa_map = jax.nn.sigmoid(
        jnp.dot(wsa_ref[...], x, preferred_element_type=jnp.float32)
        + bsa_ref[...])                                      # (1, HW)
    sa = x * sa_map
    # torch.mean(torch.cat([ca, sa], dim=1), 1)  -> (1, HW)
    m = (jnp.sum(ca, axis=0, keepdims=True)
         + jnp.sum(sa, axis=0, keepdims=True)) / (2.0 * c0)
    o_ref[0] = jax.nn.sigmoid(m).astype(o_ref.dtype)


# ---------------------------------------------------------------------------
# pallas_call wrappers
# ---------------------------------------------------------------------------

_PAR2 = pltpu.CompilerParams(dimension_semantics=("parallel", "parallel"))
_PAR1 = pltpu.CompilerParams(dimension_semantics=("parallel",))


def _lane_tile(hw, max_tile=2048):
    """Largest 128-aligned spatial tile dividing hw (whole extent if small)."""
    if hw <= max_tile or hw % 128 != 0:
        return hw
    t = max_tile
    while hw % t != 0:
        t -= 128
    return t


def _im2col3x3(x, hgt, wdt):
    """(B, C, H*W) -> (B, 9*C, H*W): zero-padded 3x3 taps, (di, dj, c) order.

    Kept in XLA between pallas_calls for lowering robustness at unaligned toy
    shapes; see TODO(synk) at top for the in-kernel pltpu.roll variant.
    """
    bsz, c, _ = x.shape
    xs = x.reshape(bsz, c, hgt, wdt)
    xp = jnp.pad(xs, ((0, 0), (0, 0), (1, 1), (1, 1)))
    taps = [xp[:, :, i:i + hgt, j:j + wdt] for i in range(3) for j in range(3)]
    return jnp.concatenate(taps, axis=1).reshape(bsz, 9 * c, hgt * wdt)


def conv3x3(x, hgt, wdt, w, b, *, relu):
    """3x3 stride-1 zero-padded conv on (B, C, H*W); returns (B, Cout, H*W)."""
    bsz = x.shape[0]
    patches = _im2col3x3(x, hgt, wdt)                         # (B, 9C, HW)
    k, hw = patches.shape[1], patches.shape[2]
    cout = w.shape[0]
    t = _lane_tile(hw)
    return pl.pallas_call(
        functools.partial(_conv_mm_kernel, relu=relu),
        out_shape=jax.ShapeDtypeStruct((bsz, cout, hw), x.dtype),
        grid=(bsz, hw // t),
        in_specs=[
            pl.BlockSpec((1, k, t), lambda i, j: (i, 0, j)),
            pl.BlockSpec((cout, k), lambda i, j: (0, 0)),
            pl.BlockSpec((cout, 1), lambda i, j: (0, 0)),
        ],
        out_specs=pl.BlockSpec((1, cout, t), lambda i, j: (i, 0, j)),
        compiler_params=_PAR2,
    )(patches, w, b.reshape(cout, 1))


def conv3x3_cat(x1, x2, hgt, wdt, w1, w2, b, *, relu):
    """3x3 conv over channel-concat([x1, x2]) via split weights (no HBM concat)."""
    bsz = x1.shape[0]
    p1 = _im2col3x3(x1, hgt, wdt)
    p2 = _im2col3x3(x2, hgt, wdt)
    k1, hw = p1.shape[1], p1.shape[2]
    k2 = p2.shape[1]
    cout = w1.shape[0]
    t = _lane_tile(hw)
    return pl.pallas_call(
        functools.partial(_conv_mm_cat_kernel, relu=relu),
        out_shape=jax.ShapeDtypeStruct((bsz, cout, hw), x1.dtype),
        grid=(bsz, hw // t),
        in_specs=[
            pl.BlockSpec((1, k1, t), lambda i, j: (i, 0, j)),
            pl.BlockSpec((1, k2, t), lambda i, j: (i, 0, j)),
            pl.BlockSpec((cout, k1), lambda i, j: (0, 0)),
            pl.BlockSpec((cout, k2), lambda i, j: (0, 0)),
            pl.BlockSpec((cout, 1), lambda i, j: (0, 0)),
        ],
        out_specs=pl.BlockSpec((1, cout, t), lambda i, j: (i, 0, j)),
        compiler_params=_PAR2,
    )(p1, p2, w1, w2, b.reshape(cout, 1))


def attention_gate(g, x, wg, bg, wx, wpsi, bpsi):
    bsz, cg, hw = g.shape
    cx = x.shape[1]
    fi = wg.shape[0]
    t = _lane_tile(hw)
    return pl.pallas_call(
        _att_gate_kernel,
        out_shape=jax.ShapeDtypeStruct((bsz, cx, hw), x.dtype),
        grid=(bsz, hw // t),
        in_specs=[
            pl.BlockSpec((1, cg, t), lambda i, j: (i, 0, j)),
            pl.BlockSpec((1, cx, t), lambda i, j: (i, 0, j)),
            pl.BlockSpec((fi, cg), lambda i, j: (0, 0)),
            pl.BlockSpec((fi, 1), lambda i, j: (0, 0)),
            pl.BlockSpec((fi, cx), lambda i, j: (0, 0)),
            pl.BlockSpec((1, fi), lambda i, j: (0, 0)),
            pl.BlockSpec((1, 1), lambda i, j: (0, 0)),
        ],
        out_specs=pl.BlockSpec((1, cx, t), lambda i, j: (i, 0, j)),
        compiler_params=_PAR2,
    )(g, x, wg, bg.reshape(fi, 1), wx, wpsi, bpsi.reshape(1, 1))


def ma_head(u0, u1_up, wf0, wf1, bf, wsa, bsa):
    bsz, c0, hw = u0.shape
    c1 = u1_up.shape[1]
    return pl.pallas_call(
        _head_kernel,
        out_shape=jax.ShapeDtypeStruct((bsz, 1, hw), u0.dtype),
        grid=(bsz,),
        in_specs=[
            pl.BlockSpec((1, c0, hw), lambda i: (i, 0, 0)),
            pl.BlockSpec((1, c1, hw), lambda i: (i, 0, 0)),
            pl.BlockSpec((c0, c0), lambda i: (0, 0)),
            pl.BlockSpec((c0, c1), lambda i: (0, 0)),
            pl.BlockSpec((c0, 1), lambda i: (0, 0)),
            pl.BlockSpec((1, c0), lambda i: (0, 0)),
            pl.BlockSpec((1, 1), lambda i: (0, 0)),
        ],
        out_specs=pl.BlockSpec((1, 1, hw), lambda i: (i, 0, 0)),
        compiler_params=_PAR1,
    )(u0, u1_up, wf0, wf1, bf.reshape(c0, 1), wsa, bsa.reshape(1, 1))


# ---------------------------------------------------------------------------
# Glue (pooling / upsampling) in plain JAX on the flattened layout
# ---------------------------------------------------------------------------

def maxpool2(x, hgt, wdt):
    bsz, c, _ = x.shape
    xs = x.reshape(bsz, c, hgt // 2, 2, wdt // 2, 2)
    return jnp.max(xs, axis=(3, 5)).reshape(bsz, c, (hgt // 2) * (wdt // 2))


def upsample2(x, hgt, wdt):
    # up_mode='upsample' -> nn.Upsample(scale_factor=2) (nearest neighbour).
    bsz, c, _ = x.shape
    xs = x.reshape(bsz, c, hgt, wdt)
    xs = jnp.repeat(jnp.repeat(xs, 2, axis=2), 2, axis=3)
    return xs.reshape(bsz, c, (2 * hgt) * (2 * wdt))


# ---------------------------------------------------------------------------
# Parameters and forward pass
# ---------------------------------------------------------------------------

C_IN, C0, C1, CB = 4, 8, 16, 32   # backbone channels [C0, C1]; attention_channels = C0


def init_params(key):
    ks = iter(jax.random.split(key, 32))

    def w(shape, scale=0.15):
        return scale * jax.random.normal(next(ks), shape, jnp.float32)

    def conv_w(cout, cin):
        # (Cout, kh, kw, Cin) -> (Cout, 9*Cin); column order matches _im2col3x3.
        return w((cout, 3, 3, cin)).reshape(cout, 9 * cin)

    return {
        # encoder (backbone): conv3x3 + BN(identity) + ReLU per level
        "enc0_w": conv_w(C0, C_IN), "enc0_b": w((C0,), 0.02),
        "enc1_w": conv_w(C1, C0),   "enc1_b": w((C1,), 0.02),
        # bottom block: (conv3x3 + BN + ReLU) x 2
        "bot0_w": conv_w(CB, C1),   "bot0_b": w((CB,), 0.02),
        "bot1_w": conv_w(CB, CB),   "bot1_b": w((CB,), 0.02),
        # attention gate, decoder level 1 (gate = bottom 32ch, skip = e1 16ch)
        "ag1_wg": w((C1, CB)), "ag1_bg": w((C1,), 0.02),
        "ag1_wx": w((C1, C1)), "ag1_wpsi": w((1, C1)), "ag1_bpsi": w((1,), 0.02),
        # up conv level 1: conv3x3 over concat([g1 (CB), s1 (C1)]) -> C1 (split weights)
        "up1_wg": conv_w(C1, CB), "up1_ws": conv_w(C1, C1), "up1_b": w((C1,), 0.02),
        # attention gate, decoder level 0 (gate = u1 16ch, skip = e0 8ch)
        "ag0_wg": w((C0, C1)), "ag0_bg": w((C0,), 0.02),
        "ag0_wx": w((C0, C0)), "ag0_wpsi": w((1, C0)), "ag0_bpsi": w((1,), 0.02),
        # up conv level 0: conv3x3 over concat([g0 (C1), s0 (C0)]) -> C0 (split weights)
        "up0_wg": conv_w(C0, C1), "up0_ws": conv_w(C0, C0), "up0_b": w((C0,), 0.02),
        # multiscale final 1x1 conv: concat(u0[C0], up(u1)[C1]) -> attention_channels
        "final_w0": w((C0, C0)), "final_w1": w((C0, C1)), "final_b": w((C0,), 0.02),
        # SpatialAttention2D 1x1 conv: attention_channels -> 1
        "sa_w": w((1, C0)), "sa_b": w((1,), 0.02),
    }


def ma_unet_forward(x_nchw, p):
    bsz, _, hgt, wdt = x_nchw.shape
    h2, w2 = hgt // 2, wdt // 2
    h4, w4 = hgt // 4, wdt // 4
    x = x_nchw.reshape(bsz, -1, hgt * wdt)        # NCHW -> channel-major flat (pure reshape)

    # --- encoder ---
    e0 = conv3x3(x, hgt, wdt, p["enc0_w"], p["enc0_b"], relu=True)            # (B,C0,H*W)
    e1 = conv3x3(maxpool2(e0, hgt, wdt), h2, w2,
                 p["enc1_w"], p["enc1_b"], relu=True)                         # (B,C1,H2*W2)
    # --- bottom ---
    bt = conv3x3(maxpool2(e1, h2, w2), h4, w4, p["bot0_w"], p["bot0_b"], relu=True)
    bt = conv3x3(bt, h4, w4, p["bot1_w"], p["bot1_b"], relu=True)             # (B,CB,H4*W4)
    # --- decoder: attention-gated up blocks ---
    g1 = upsample2(bt, h4, w4)                                                # (B,CB,H2*W2)
    s1 = attention_gate(g1, e1, p["ag1_wg"], p["ag1_bg"], p["ag1_wx"],
                        p["ag1_wpsi"], p["ag1_bpsi"])
    u1 = conv3x3_cat(g1, s1, h2, w2, p["up1_wg"], p["up1_ws"], p["up1_b"],
                     relu=True)                                               # (B,C1,H2*W2)
    g0 = upsample2(u1, h2, w2)                                                # (B,C1,H*W)
    s0 = attention_gate(g0, e0, p["ag0_wg"], p["ag0_bg"], p["ag0_wx"],
                        p["ag0_wpsi"], p["ag0_bpsi"])
    u0 = conv3x3_cat(g0, s0, hgt, wdt, p["up0_wg"], p["up0_ws"], p["up0_b"],
                     relu=True)                                               # (B,C0,H*W)
    # --- multiscale final 1x1 conv + MA head (one fused kernel) ---
    head = ma_head(u0, upsample2(u1, h2, w2), p["final_w0"], p["final_w1"],
                   p["final_b"], p["sa_w"], p["sa_b"])                        # (B,1,H*W)
    # F.interpolate(..., (H, W), mode='bilinear') is the identity here: the UNet
    # output is already at the input resolution.
    return head.reshape(bsz, 1, hgt, wdt)


if __name__ == "__main__":
    key = jax.random.PRNGKey(0)
    pkey, xkey = jax.random.split(key)
    params = init_params(pkey)
    x = jax.random.normal(xkey, (2, 4, 16, 16), jnp.float32)   # NCHW like PyTorch
    out = jax.jit(ma_unet_forward)(x, params)
    out = jax.block_until_ready(out)
    assert out.shape == (2, 1, 16, 16), out.shape
    assert bool(jnp.all(jnp.isfinite(out)))
    assert bool(jnp.all((out > 0.0) & (out < 1.0)))   # sigmoid range
    print("KERNEL_OK")
</pallas_src>

<mosaic_0001>
module attributes {stable_mosaic.version = 11 : i64} {
  func.func @_conv_mm_kernel(%arg0: i32, %arg1: i32, %arg2: memref<1x36x256xf32, #tpu.memory_space<vmem>>, %arg3: memref<8x36xf32, #tpu.memory_space<vmem>>, %arg4: memref<8x1xf32, #tpu.memory_space<vmem>>, %arg5: memref<1x8x256xf32, #tpu.memory_space<vmem>>) attributes {dimension_semantics = [#tpu.dimension_semantics<parallel>, #tpu.dimension_semantics<parallel>], iteration_bounds = array<i64: 2, 1>, scalar_prefetch = 0 : i64, scratch_operands = 0 : i64, tpu.core_type = #tpu.core_type<tc>, window_params = [{transform_indices = @transform_0, window_bounds = array<i64: 1, 36, 256>}, {pipeline_mode = #tpu.pipeline_mode<synchronous>, transform_indices = @transform_1, window_bounds = array<i64: 8, 36>}, {pipeline_mode = #tpu.pipeline_mode<synchronous>, transform_indices = @transform_2, window_bounds = array<i64: 8, 1>}, {transform_indices = @transform_3, window_bounds = array<i64: 1, 8, 256>}]} {
    %c0 = arith.constant 0 : index
    %c0_0 = arith.constant 0 : index
    %0 = vector.load %arg3[%c0, %c0_0] : memref<8x36xf32, #tpu.memory_space<vmem>>, vector<8x36xf32>
    %c0_1 = arith.constant 0 : index
    %c0_2 = arith.constant 0 : index
    %c0_3 = arith.constant 0 : index
    %1 = vector.load %arg2[%c0_1, %c0_2, %c0_3] : memref<1x36x256xf32, #tpu.memory_space<vmem>>, vector<1x36x256xf32>
    %2 = vector.shape_cast %1 : vector<1x36x256xf32> to vector<36x256xf32>
    %cst = arith.constant dense<0.000000e+00> : vector<8x256xf32>
    %3 = tpu.matmul %0, %2, %cst {dimension_numbers = #tpu.dot_dimension_numbers<[1], [0], [0], [1], [0, 0, 1, 1], [], []>} : vector<8x36xf32>, vector<36x256xf32>, vector<8x256xf32> -> vector<8x256xf32>
    %c0_4 = arith.constant 0 : index
    %c0_5 = arith.constant 0 : index
    %4 = vector.load %arg4[%c0_4, %c0_5] : memref<8x1xf32, #tpu.memory_space<vmem>>, vector<8x1xf32>
    %5 = vector.broadcast %4 : vector<8x1xf32> to vector<8x256xf32>
    %6 = arith.addf %3, %5 : vector<8x256xf32>
    %cst_6 = arith.constant 0.000000e+00 : f32
    %7 = vector.broadcast %cst_6 : f32 to vector<8x256xf32>
    %8 = arith.maximumf %6, %7 : vector<8x256xf32>
    %c0_7 = arith.constant 0 : index
    %c0_8 = arith.constant 0 : index
    %c0_9 = arith.constant 0 : index
    %9 = vector.load %arg5[%c0_7, %c0_8, %c0_9] : memref<1x8x256xf32, #tpu.memory_space<vmem>>, vector<1x8x256xf32>
    %10 = vector.shape_cast %9 : vector<1x8x256xf32> to vector<8x256xf32>
    %11 = vector.shape_cast %8 : vector<8x256xf32> to vector<1x8x256xf32>
    tpu.vector_store %arg5[%c0_7, %c0_8, %c0_9], %11 {strides = array<i32>} : memref<1x8x256xf32, #tpu.memory_space<vmem>>, vector<1x8x256xf32>,
    return
  }
  func.func @transform_0(%arg0: i32, %arg1: i32) -> (i32, i32, i32) {
    %c0_i32 = arith.constant 0 : i32
    %c0_i32_0 = arith.constant 0 : i32
    return %arg0, %c0_i32, %arg1 : i32, i32, i32
  }
  func.func @transform_1(%arg0: i32, %arg1: i32) -> (i32, i32) {
    %c0_i32 = arith.constant 0 : i32
    %c0_i32_0 = arith.constant 0 : i32
    %c0_i32_1 = arith.constant 0 : i32
    return %c0_i32, %c0_i32_0 : i32, i32
  }
  func.func @transform_2(%arg0: i32, %arg1: i32) -> (i32, i32) {
    %c0_i32 = arith.constant 0 : i32
    %c0_i32_0 = arith.constant 0 : i32
    %c0_i32_1 = arith.constant 0 : i32
    return %c0_i32, %c0_i32_0 : i32, i32
  }
  func.func @transform_3(%arg0: i32, %arg1: i32) -> (i32, i32, i32) {
    %c0_i32 = arith.constant 0 : i32
    %c0_i32_0 = arith.constant 0 : i32
    return %arg0, %c0_i32, %arg1 : i32, i32, i32
  }
}

module attributes {stable_mosaic.version = 11 : i64} {
  func.func @_conv_mm_kernel(%arg0: i32, %arg1: i32, %arg2: memref<1x72x64xf32, #tpu.memory_space<vmem>>, %arg3: memref<16x72xf32, #tpu.memory_space<vmem>>, %arg4: memref<16x1xf32, #tpu.memory_space<vmem>>, %arg5: memref<1x16x64xf32, #tpu.memory_space<vmem>>) attributes {dimension_semantics = [#tpu.dimension_semantics<parallel>, #tpu.dimension_semantics<parallel>], iteration_bounds = array<i64: 2, 1>, scalar_prefetch = 0 : i64, scratch_operands = 0 : i64, tpu.core_type = #tpu.core_type<tc>, window_params = [{transform_indices = @transform_0, window_bounds = array<i64: 1, 72, 64>}, {pipeline_mode = #tpu.pipeline_mode<synchronous>, transform_indices = @transform_1, window_bounds = array<i64: 16, 72>}, {pipeline_mode = #tpu.pipeline_mode<synchronous>, transform_indices = @transform_2, window_bounds = array<i64: 16, 1>}, {transform_indices = @transform_3, window_bounds = array<i64: 1, 16, 64>}]} {
    %c0 = arith.constant 0 : index
    %c0_0 = arith.constant 0 : index
    %0 = vector.load %arg3[%c0, %c0_0] : memref<16x72xf32, #tpu.memory_space<vmem>>, vector<16x72xf32>
    %c0_1 = arith.constant 0 : index
    %c0_2 = arith.constant 0 : index
    %c0_3 = arith.constant 0 : index
    %1 = vector.load %arg2[%c0_1, %c0_2, %c0_3] : memref<1x72x64xf32, #tpu.memory_space<vmem>>, vector<1x72x64xf32>
    %2 = vector.shape_cast %1 : vector<1x72x64xf32> to vector<72x64xf32>
    %cst = arith.constant dense<0.000000e+00> : vector<16x64xf32>
    %3 = tpu.matmul %0, %2, %cst {dimension_numbers = #tpu.dot_dimension_numbers<[1], [0], [0], [1], [0, 0, 1, 1], [], []>} : vector<16x72xf32>, vector<72x64xf32>, vector<16x64xf32> -> vector<16x64xf32>
    %c0_4 = arith.constant 0 : index
    %c0_5 = arith.constant 0 : index
    %4 = vector.load %arg4[%c0_4, %c0_5] : memref<16x1xf32, #tpu.memory_space<vmem>>, vector<16x1xf32>
    %5 = vector.broadcast %4 : vector<16x1xf32> to vector<16x64xf32>
    %6 = arith.addf %3, %5 : vector<16x64xf32>
    %cst_6 = arith.constant 0.000000e+00 : f32
    %7 = vector.broadcast %cst_6 : f32 to vector<16x64xf32>
    %8 = arith.maximumf %6, %7 : vector<16x64xf32>
    %c0_7 = arith.constant 0 : index
    %c0_8 = arith.constant 0 : index
    %c0_9 = arith.constant 0 : index
    %9 = vector.load %arg5[%c0_7, %c0_8, %c0_9] : memref<1x16x64xf32, #tpu.memory_space<vmem>>, vector<1x16x64xf32>
    %10 = vector.shape_cast %9 : vector<1x16x64xf32> to vector<16x64xf32>
    %11 = vector.shape_cast %8 : vector<16x64xf32> to vector<1x16x64xf32>
    tpu.vector_store %arg5[%c0_7, %c0_8, %c0_9], %11 {strides = array<i32>} : memref<1x16x64xf32, #tpu.memory_space<vmem>>, vector<1x16x64xf32>,
    return
  }
  func.func @transform_0(%arg0: i32, %arg1: i32) -> (i32, i32, i32) {
    %c0_i32 = arith.constant 0 : i32
    %c0_i32_0 = arith.constant 0 : i32
    return %arg0, %c0_i32, %arg1 : i32, i32, i32
  }
  func.func @transform_1(%arg0: i32, %arg1: i32) -> (i32, i32) {
    %c0_i32 = arith.constant 0 : i32
    %c0_i32_0 = arith.constant 0 : i32
    %c0_i32_1 = arith.constant 0 : i32
    return %c0_i32, %c0_i32_0 : i32, i32
  }
  func.func @transform_2(%arg0: i32, %arg1: i32) -> (i32, i32) {
    %c0_i32 = arith.constant 0 : i32
    %c0_i32_0 = arith.constant 0 : i32
    %c0_i32_1 = arith.constant 0 : i32
    return %c0_i32, %c0_i32_0 : i32, i32
  }
  func.func @transform_3(%arg0: i32, %arg1: i32) -> (i32, i32, i32) {
    %c0_i32 = arith.constant 0 : i32
    %c0_i32_0 = arith.constant 0 : i32
    return %arg0, %c0_i32, %arg1 : i32, i32, i32
  }
}

module attributes {stable_mosaic.version = 11 : i64} {
  func.func @_conv_mm_kernel(%arg0: i32, %arg1: i32, %arg2: memref<1x144x16xf32, #tpu.memory_space<vmem>>, %arg3: memref<32x144xf32, #tpu.memory_space<vmem>>, %arg4: memref<32x1xf32, #tpu.memory_space<vmem>>, %arg5: memref<1x32x16xf32, #tpu.memory_space<vmem>>) attributes {dimension_semantics = [#tpu.dimension_semantics<parallel>, #tpu.dimension_semantics<parallel>], iteration_bounds = array<i64: 2, 1>, scalar_prefetch = 0 : i64, scratch_operands = 0 : i64, tpu.core_type = #tpu.core_type<tc>, window_params = [{transform_indices = @transform_0, window_bounds = array<i64: 1, 144, 16>}, {pipeline_mode = #tpu.pipeline_mode<synchronous>, transform_indices = @transform_1, window_bounds = array<i64: 32, 144>}, {pipeline_mode = #tpu.pipeline_mode<synchronous>, transform_indices = @transform_2, window_bounds = array<i64: 32, 1>}, {transform_indices = @transform_3, window_bounds = array<i64: 1, 32, 16>}]} {
    %c0 = arith.constant 0 : index
    %c0_0 = arith.constant 0 : index
    %0 = vector.load %arg3[%c0, %c0_0] : memref<32x144xf32, #tpu.memory_space<vmem>>, vector<32x144xf32>
    %c0_1 = arith.constant 0 : index
    %c0_2 = arith.constant 0 : index
    %c0_3 = arith.constant 0 : index
    %1 = vector.load %arg2[%c0_1, %c0_2, %c0_3] : memref<1x144x16xf32, #tpu.memory_space<vmem>>, vector<1x144x16xf32>
    %2 = vector.shape_cast %1 : vector<1x144x16xf32> to vector<144x16xf32>
    %cst = arith.constant dense<0.000000e+00> : vector<32x16xf32>
    %3 = tpu.matmul %0, %2, %cst {dimension_numbers = #tpu.dot_dimension_numbers<[1], [0], [0], [1], [0, 0, 1, 1], [], []>} : vector<32x144xf32>, vector<144x16xf32>, vector<32x16xf32> -> vector<32x16xf32>
    %c0_4 = arith.constant 0 : index
    %c0_5 = arith.constant 0 : index
    %4 = vector.load %arg4[%c0_4, %c0_5] : memref<32x1xf32, #tpu.memory_space<vmem>>, vector<32x1xf32>
    %5 = vector.broadcast %4 : vector<32x1xf32> to vector<32x16xf32>
    %6 = arith.addf %3, %5 : vector<32x16xf32>
    %cst_6 = arith.constant 0.000000e+00 : f32
    %7 = vector.broadcast %cst_6 : f32 to vector<32x16xf32>
    %8 = arith.maximumf %6, %7 : vector<32x16xf32>
    %c0_7 = arith.constant 0 : index
    %c0_8 = arith.constant 0 : index
    %c0_9 = arith.constant 0 : index
    %9 = vector.load %arg5[%c0_7, %c0_8, %c0_9] : memref<1x32x16xf32, #tpu.memory_space<vmem>>, vector<1x32x16xf32>
    %10 = vector.shape_cast %9 : vector<1x32x16xf32> to vector<32x16xf32>
    %11 = vector.shape_cast %8 : vector<32x16xf32> to vector<1x32x16xf32>
    tpu.vector_store %arg5[%c0_7, %c0_8, %c0_9], %11 {strides = array<i32>} : memref<1x32x16xf32, #tpu.memory_space<vmem>>, vector<1x32x16xf32>,
    return
  }
  func.func @transform_0(%arg0: i32, %arg1: i32) -> (i32, i32, i32) {
    %c0_i32 = arith.constant 0 : i32
    %c0_i32_0 = arith.constant 0 : i32
    return %arg0, %c0_i32, %arg1 : i32, i32, i32
  }
  func.func @transform_1(%arg0: i32, %arg1: i32) -> (i32, i32) {
    %c0_i32 = arith.constant 0 : i32
    %c0_i32_0 = arith.constant 0 : i32
    %c0_i32_1 = arith.constant 0 : i32
    return %c0_i32, %c0_i32_0 : i32, i32
  }
  func.func @transform_2(%arg0: i32, %arg1: i32) -> (i32, i32) {
    %c0_i32 = arith.constant 0 : i32
    %c0_i32_0 = arith.constant 0 : i32
    %c0_i32_1 = arith.constant 0 : i32
    return %c0_i32, %c0_i32_0 : i32, i32
  }
  func.func @transform_3(%arg0: i32, %arg1: i32) -> (i32, i32, i32) {
    %c0_i32 = arith.constant 0 : i32
    %c0_i32_0 = arith.constant 0 : i32
    return %arg0, %c0_i32, %arg1 : i32, i32, i32
  }
}

module attributes {stable_mosaic.version = 11 : i64} {
  func.func @_conv_mm_kernel(%arg0: i32, %arg1: i32, %arg2: memref<1x288x16xf32, #tpu.memory_space<vmem>>, %arg3: memref<32x288xf32, #tpu.memory_space<vmem>>, %arg4: memref<32x1xf32, #tpu.memory_space<vmem>>, %arg5: memref<1x32x16xf32, #tpu.memory_space<vmem>>) attributes {dimension_semantics = [#tpu.dimension_semantics<parallel>, #tpu.dimension_semantics<parallel>], iteration_bounds = array<i64: 2, 1>, scalar_prefetch = 0 : i64, scratch_operands = 0 : i64, tpu.core_type = #tpu.core_type<tc>, window_params = [{transform_indices = @transform_0, window_bounds = array<i64: 1, 288, 16>}, {pipeline_mode = #tpu.pipeline_mode<synchronous>, transform_indices = @transform_1, window_bounds = array<i64: 32, 288>}, {pipeline_mode = #tpu.pipeline_mode<synchronous>, transform_indices = @transform_2, window_bounds = array<i64: 32, 1>}, {transform_indices = @transform_3, window_bounds = array<i64: 1, 32, 16>}]} {
    %c0 = arith.constant 0 : index
    %c0_0 = arith.constant 0 : index
    %0 = vector.load %arg3[%c0, %c0_0] : memref<32x288xf32, #tpu.memory_space<vmem>>, vector<32x288xf32>
    %c0_1 = arith.constant 0 : index
    %c0_2 = arith.constant 0 : index
    %c0_3 = arith.constant 0 : index
    %1 = vector.load %arg2[%c0_1, %c0_2, %c0_3] : memref<1x288x16xf32, #tpu.memory_space<vmem>>, vector<1x288x16xf32>
    %2 = vector.shape_cast %1 : vector<1x288x16xf32> to vector<288x16xf32>
    %cst = arith.constant dense<0.000000e+00> : vector<32x16xf32>
    %3 = tpu.matmul %0, %2, %cst {dimension_numbers = #tpu.dot_dimension_numbers<[1], [0], [0], [1], [0, 0, 1, 1], [], []>} : vector<32x288xf32>, vector<288x16xf32>, vector<32x16xf32> -> vector<32x16xf32>
    %c0_4 = arith.constant 0 : index
    %c0_5 = arith.constant 0 : index
    %4 = vector.load %arg4[%c0_4, %c0_5] : memref<32x1xf32, #tpu.memory_space<vmem>>, vector<32x1xf32>
    %5 = vector.broadcast %4 : vector<32x1xf32> to vector<32x16xf32>
    %6 = arith.addf %3, %5 : vector<32x16xf32>
    %cst_6 = arith.constant 0.000000e+00 : f32
    %7 = vector.broadcast %cst_6 : f32 to vector<32x16xf32>
    %8 = arith.maximumf %6, %7 : vector<32x16xf32>
    %c0_7 = arith.constant 0 : index
    %c0_8 = arith.constant 0 : index
    %c0_9 = arith.constant 0 : index
    %9 = vector.load %arg5[%c0_7, %c0_8, %c0_9] : memref<1x32x16xf32, #tpu.memory_space<vmem>>, vector<1x32x16xf32>
    %10 = vector.shape_cast %9 : vector<1x32x16xf32> to vector<32x16xf32>
    %11 = vector.shape_cast %8 : vector<32x16xf32> to vector<1x32x16xf32>
    tpu.vector_store %arg5[%c0_7, %c0_8, %c0_9], %11 {strides = array<i32>} : memref<1x32x16xf32, #tpu.memory_space<vmem>>, vector<1x32x16xf32>,
    return
  }
  func.func @transform_0(%arg0: i32, %arg1: i32) -> (i32, i32, i32) {
    %c0_i32 = arith.constant 0 : i32
    %c0_i32_0 = arith.constant 0 : i32
    return %arg0, %c0_i32, %arg1 : i32, i32, i32
  }
  func.func @transform_1(%arg0: i32, %arg1: i32) -> (i32, i32) {
    %c0_i32 = arith.constant 0 : i32
    %c0_i32_0 = arith.constant 0 : i32
    %c0_i32_1 = arith.constant 0 : i32
    return %c0_i32, %c0_i32_0 : i32, i32
  }
  func.func @transform_2(%arg0: i32, %arg1: i32) -> (i32, i32) {
    %c0_i32 = arith.constant 0 : i32
    %c0_i32_0 = arith.constant 0 : i32
    %c0_i32_1 = arith.constant 0 : i32
    return %c0_i32, %c0_i32_0 : i32, i32
  }
  func.func @transform_3(%arg0: i32, %arg1: i32) -> (i32, i32, i32) {
    %c0_i32 = arith.constant 0 : i32
    %c0_i32_0 = arith.constant 0 : i32
    return %arg0, %c0_i32, %arg1 : i32, i32, i32
  }
}

module attributes {stable_mosaic.version = 11 : i64} {
  func.func @_att_gate_kernel(%arg0: i32, %arg1: i32, %arg2: memref<1x32x64xf32, #tpu.memory_space<vmem>>, %arg3: memref<1x16x64xf32, #tpu.memory_space<vmem>>, %arg4: memref<16x32xf32, #tpu.memory_space<vmem>>, %arg5: memref<16x1xf32, #tpu.memory_space<vmem>>, %arg6: memref<16x16xf32, #tpu.memory_space<vmem>>, %arg7: memref<1x16xf32, #tpu.memory_space<vmem>>, %arg8: memref<1x1xf32, #tpu.memory_space<vmem>>, %arg9: memref<1x16x64xf32, #tpu.memory_space<vmem>>) attributes {dimension_semantics = [#tpu.dimension_semantics<parallel>, #tpu.dimension_semantics<parallel>], iteration_bounds = array<i64: 2, 1>, scalar_prefetch = 0 : i64, scratch_operands = 0 : i64, tpu.core_type = #tpu.core_type<tc>, window_params = [{transform_indices = @transform_0, window_bounds = array<i64: 1, 32, 64>}, {transform_indices = @transform_1, window_bounds = array<i64: 1, 16, 64>}, {pipeline_mode = #tpu.pipeline_mode<synchronous>, transform_indices = @transform_2, window_bounds = array<i64: 16, 32>}, {pipeline_mode = #tpu.pipeline_mode<synchronous>, transform_indices = @transform_3, window_bounds = array<i64: 16, 1>}, {pipeline_mode = #tpu.pipeline_mode<synchronous>, transform_indices = @transform_4, window_bounds = array<i64: 16, 16>}, {pipeline_mode = #tpu.pipeline_mode<synchronous>, transform_indices = @transform_5, window_bounds = array<i64: 1, 16>}, {pipeline_mode = #tpu.pipeline_mode<synchronous>, transform_indices = @transform_6, window_bounds = array<i64: 1, 1>}, {transform_indices = @transform_7, window_bounds = array<i64: 1, 16, 64>}]} {
    %c0 = arith.constant 0 : index
    %c0_0 = arith.constant 0 : index
    %c0_1 = arith.constant 0 : index
    %0 = vector.load %arg2[%c0, %c0_0, %c0_1] : memref<1x32x64xf32, #tpu.memory_space<vmem>>, vector<1x32x64xf32>
    %1 = vector.shape_cast %0 : vector<1x32x64xf32> to vector<32x64xf32>
    %c0_2 = arith.constant 0 : index
    %c0_3 = arith.constant 0 : index
    %c0_4 = arith.constant 0 : index
    %2 = vector.load %arg3[%c0_2, %c0_3, %c0_4] : memref<1x16x64xf32, #tpu.memory_space<vmem>>, vector<1x16x64xf32>
    %3 = vector.shape_cast %2 : vector<1x16x64xf32> to vector<16x64xf32>
    %c0_5 = arith.constant 0 : index
    %c0_6 = arith.constant 0 : index
    %4 = vector.load %arg4[%c0_5, %c0_6] : memref<16x32xf32, #tpu.memory_space<vmem>>, vector<16x32xf32>
    %cst = arith.constant dense<0.000000e+00> : vector<16x64xf32>
    %5 = tpu.matmul %4, %1, %cst {dimension_numbers = #tpu.dot_dimension_numbers<[1], [0], [0], [1], [0, 0, 1, 1], [], []>} : vector<16x32xf32>, vector<32x64xf32>, vector<16x64xf32> -> vector<16x64xf32>
    %c0_7 = arith.constant 0 : index
    %c0_8 = arith.constant 0 : index
    %6 = vector.load %arg5[%c0_7, %c0_8] : memref<16x1xf32, #tpu.memory_space<vmem>>, vector<16x1xf32>
    %7 = vector.broadcast %6 : vector<16x1xf32> to vector<16x64xf32>
    %8 = arith.addf %5, %7 : vector<16x64xf32>
    %c0_9 = arith.constant 0 : index
    %c0_10 = arith.constant 0 : index
    %9 = vector.load %arg6[%c0_9, %c0_10] : memref<16x16xf32, #tpu.memory_space<vmem>>, vector<16x16xf32>
    %cst_11 = arith.constant dense<0.000000e+00> : vector<16x64xf32>
    %10 = tpu.matmul %9, %3, %cst_11 {dimension_numbers = #tpu.dot_dimension_numbers<[1], [0], [0], [1], [0, 0, 1, 1], [], []>} : vector<16x16xf32>, vector<16x64xf32>, vector<16x64xf32> -> vector<16x64xf32>
    %11 = arith.addf %8, %10 : vector<16x64xf32>
    %cst_12 = arith.constant 0.000000e+00 : f32
    %12 = vector.broadcast %cst_12 : f32 to vector<16x64xf32>
    %13 = arith.maximumf %11, %12 : vector<16x64xf32>
    %c0_13 = arith.constant 0 : index
    %c0_14 = arith.constant 0 : index
    %14 = vector.load %arg7[%c0_13, %c0_14] : memref<1x16xf32, #tpu.memory_space<vmem>>, vector<1x16xf32>
    %cst_15 = arith.constant dense<0.000000e+00> : vector<1x64xf32>
    %15 = tpu.matmul %14, %13, %cst_15 {dimension_numbers = #tpu.dot_dimension_numbers<[1], [0], [0], [1], [0, 0, 1, 1], [], []>} : vector<1x16xf32>, vector<16x64xf32>, vector<1x64xf32> -> vector<1x64xf32>
    %c0_16 = arith.constant 0 : index
    %c0_17 = arith.constant 0 : index
    %16 = vector.load %arg8[%c0_16, %c0_17] : memref<1x1xf32, #tpu.memory_space<vmem>>, vector<1x1xf32>
    %17 = vector.broadcast %16 : vector<1x1xf32> to vector<1x64xf32>
    %18 = arith.addf %15, %17 : vector<1x64xf32>
    %19 = arith.negf %18 : vector<1x64xf32>
    %20 = math.exp %19 : vector<1x64xf32>
    %cst_18 = arith.constant 1.000000e+00 : f32
    %21 = vector.broadcast %cst_18 : f32 to vector<1x64xf32>
    %22 = arith.addf %21, %20 : vector<1x64xf32>
    %23 = arith.divf %21, %22 : vector<1x64xf32>
    %24 = vector.broadcast %23 : vector<1x64xf32> to vector<16x64xf32>
    %25 = arith.mulf %3, %24 : vector<16x64xf32>
    %c0_19 = arith.constant 0 : index
    %c0_20 = arith.constant 0 : index
    %c0_21 = arith.constant 0 : index
    %26 = vector.load %arg9[%c0_19, %c0_20, %c0_21] : memref<1x16x64xf32, #tpu.memory_space<vmem>>, vector<1x16x64xf32>
    %27 = vector.shape_cast %26 : vector<1x16x64xf32> to vector<16x64xf32>
    %28 = vector.shape_cast %25 : vector<16x64xf32> to vector<1x16x64xf32>
    tpu.vector_store %arg9[%c0_19, %c0_20, %c0_21], %28 {strides = array<i32>} : memref<1x16x64xf32, #tpu.memory_space<vmem>>, vector<1x16x64xf32>,
    return
  }
  func.func @transform_0(%arg0: i32, %arg1: i32) -> (i32, i32, i32) {
    %c0_i32 = arith.constant 0 : i32
    %c0_i32_0 = arith.constant 0 : i32
    return %arg0, %c0_i32, %arg1 : i32, i32, i32
  }
  func.func @transform_1(%arg0: i32, %arg1: i32) -> (i32, i32, i32) {
    %c0_i32 = arith.constant 0 : i32
    %c0_i32_0 = arith.constant 0 : i32
    return %arg0, %c0_i32, %arg1 : i32, i32, i32
  }
  func.func @transform_2(%arg0: i32, %arg1: i32) -> (i32, i32) {
    %c0_i32 = arith.constant 0 : i32
    %c0_i32_0 = arith.constant 0 : i32
    %c0_i32_1 = arith.constant 0 : i32
    return %c0_i32, %c0_i32_0 : i32, i32
  }
  func.func @transform_3(%arg0: i32, %arg1: i32) -> (i32, i32) {
    %c0_i32 = arith.constant 0 : i32
    %c0_i32_0 = arith.constant 0 : i32
    %c0_i32_1 = arith.constant 0 : i32
    return %c0_i32, %c0_i32_0 : i32, i32
  }
  func.func @transform_4(%arg0: i32, %arg1: i32) -> (i32, i32) {
    %c0_i32 = arith.constant 0 : i32
    %c0_i32_0 = arith.constant 0 : i32
    %c0_i32_1 = arith.constant 0 : i32
    return %c0_i32, %c0_i32_0 : i32, i32
  }
  func.func @transform_5(%arg0: i32, %arg1: i32) -> (i32, i32) {
    %c0_i32 = arith.constant 0 : i32
    %c0_i32_0 = arith.constant 0 : i32
    %c0_i32_1 = arith.constant 0 : i32
    return %c0_i32, %c0_i32_0 : i32, i32
  }
  func.func @transform_6(%arg0: i32, %arg1: i32) -> (i32, i32) {
    %c0_i32 = arith.constant 0 : i32
    %c0_i32_0 = arith.constant 0 : i32
    %c0_i32_1 = arith.constant 0 : i32
    return %c0_i32, %c0_i32_0 : i32, i32
  }
  func.func @transform_7(%arg0: i32, %arg1: i32) -> (i32, i32, i32) {
    %c0_i32 = arith.constant 0 : i32
    %c0_i32_0 = arith.constant 0 : i32
    return %arg0, %c0_i32, %arg1 : i32, i32, i32
  }
}

module attributes {stable_mosaic.version = 11 : i64} {
  func.func @_conv_mm_cat_kernel(%arg0: i32, %arg1: i32, %arg2: memref<1x288x64xf32, #tpu.memory_space<vmem>>, %arg3: memref<1x144x64xf32, #tpu.memory_space<vmem>>, %arg4: memref<16x288xf32, #tpu.memory_space<vmem>>, %arg5: memref<16x144xf32, #tpu.memory_space<vmem>>, %arg6: memref<16x1xf32, #tpu.memory_space<vmem>>, %arg7: memref<1x16x64xf32, #tpu.memory_space<vmem>>) attributes {dimension_semantics = [#tpu.dimension_semantics<parallel>, #tpu.dimension_semantics<parallel>], iteration_bounds = array<i64: 2, 1>, scalar_prefetch = 0 : i64, scratch_operands = 0 : i64, tpu.core_type = #tpu.core_type<tc>, window_params = [{transform_indices = @transform_0, window_bounds = array<i64: 1, 288, 64>}, {transform_indices = @transform_1, window_bounds = array<i64: 1, 144, 64>}, {pipeline_mode = #tpu.pipeline_mode<synchronous>, transform_indices = @transform_2, window_bounds = array<i64: 16, 288>}, {pipeline_mode = #tpu.pipeline_mode<synchronous>, transform_indices = @transform_3, window_bounds = array<i64: 16, 144>}, {pipeline_mode = #tpu.pipeline_mode<synchronous>, transform_indices = @transform_4, window_bounds = array<i64: 16, 1>}, {transform_indices = @transform_5, window_bounds = array<i64: 1, 16, 64>}]} {
    %c0 = arith.constant 0 : index
    %c0_0 = arith.constant 0 : index
    %0 = vector.load %arg4[%c0, %c0_0] : memref<16x288xf32, #tpu.memory_space<vmem>>, vector<16x288xf32>
    %c0_1 = arith.constant 0 : index
    %c0_2 = arith.constant 0 : index
    %c0_3 = arith.constant 0 : index
    %1 = vector.load %arg2[%c0_1, %c0_2, %c0_3] : memref<1x288x64xf32, #tpu.memory_space<vmem>>, vector<1x288x64xf32>
    %2 = vector.shape_cast %1 : vector<1x288x64xf32> to vector<288x64xf32>
    %cst = arith.constant dense<0.000000e+00> : vector<16x64xf32>
    %3 = tpu.matmul %0, %2, %cst {dimension_numbers = #tpu.dot_dimension_numbers<[1], [0], [0], [1], [0, 0, 1, 1], [], []>} : vector<16x288xf32>, vector<288x64xf32>, vector<16x64xf32> -> vector<16x64xf32>
    %c0_4 = arith.constant 0 : index
    %c0_5 = arith.constant 0 : index
    %4 = vector.load %arg5[%c0_4, %c0_5] : memref<16x144xf32, #tpu.memory_space<vmem>>, vector<16x144xf32>
    %c0_6 = arith.constant 0 : index
    %c0_7 = arith.constant 0 : index
    %c0_8 = arith.constant 0 : index
    %5 = vector.load %arg3[%c0_6, %c0_7, %c0_8] : memref<1x144x64xf32, #tpu.memory_space<vmem>>, vector<1x144x64xf32>
    %6 = vector.shape_cast %5 : vector<1x144x64xf32> to vector<144x64xf32>
    %cst_9 = arith.constant dense<0.000000e+00> : vector<16x64xf32>
    %7 = tpu.matmul %4, %6, %cst_9 {dimension_numbers = #tpu.dot_dimension_numbers<[1], [0], [0], [1], [0, 0, 1, 1], [], []>} : vector<16x144xf32>, vector<144x64xf32>, vector<16x64xf32> -> vector<16x64xf32>
    %8 = arith.addf %3, %7 : vector<16x64xf32>
    %c0_10 = arith.constant 0 : index
    %c0_11 = arith.constant 0 : index
    %9 = vector.load %arg6[%c0_10, %c0_11] : memref<16x1xf32, #tpu.memory_space<vmem>>, vector<16x1xf32>
    %10 = vector.broadcast %9 : vector<16x1xf32> to vector<16x64xf32>
    %11 = arith.addf %8, %10 : vector<16x64xf32>
    %cst_12 = arith.constant 0.000000e+00 : f32
    %12 = vector.broadcast %cst_12 : f32 to vector<16x64xf32>
    %13 = arith.maximumf %11, %12 : vector<16x64xf32>
    %c0_13 = arith.constant 0 : index
    %c0_14 = arith.constant 0 : index
    %c0_15 = arith.constant 0 : index
    %14 = vector.load %arg7[%c0_13, %c0_14, %c0_15] : memref<1x16x64xf32, #tpu.memory_space<vmem>>, vector<1x16x64xf32>
    %15 = vector.shape_cast %14 : vector<1x16x64xf32> to vector<16x64xf32>
    %16 = vector.shape_cast %13 : vector<16x64xf32> to vector<1x16x64xf32>
    tpu.vector_store %arg7[%c0_13, %c0_14, %c0_15], %16 {strides = array<i32>} : memref<1x16x64xf32, #tpu.memory_space<vmem>>, vector<1x16x64xf32>,
    return
  }
  func.func @transform_0(%arg0: i32, %arg1: i32) -> (i32, i32, i32) {
    %c0_i32 = arith.constant 0 : i32
    %c0_i32_0 = arith.constant 0 : i32
    return %arg0, %c0_i32, %arg1 : i32, i32, i32
  }
  func.func @transform_1(%arg0: i32, %arg1: i32) -> (i32, i32, i32) {
    %c0_i32 = arith.constant 0 : i32
    %c0_i32_0 = arith.constant 0 : i32
    return %arg0, %c0_i32, %arg1 : i32, i32, i32
  }
  func.func @transform_2(%arg0: i32, %arg1: i32) -> (i32, i32) {
    %c0_i32 = arith.constant 0 : i32
    %c0_i32_0 = arith.constant 0 : i32
    %c0_i32_1 = arith.constant 0 : i32
    return %c0_i32, %c0_i32_0 : i32, i32
  }
  func.func @transform_3(%arg0: i32, %arg1: i32) -> (i32, i32) {
    %c0_i32 = arith.constant 0 : i32
    %c0_i32_0 = arith.constant 0 : i32
    %c0_i32_1 = arith.constant 0 : i32
    return %c0_i32, %c0_i32_0 : i32, i32
  }
  func.func @transform_4(%arg0: i32, %arg1: i32) -> (i32, i32) {
    %c0_i32 = arith.constant 0 : i32
    %c0_i32_0 = arith.constant 0 : i32
    %c0_i32_1 = arith.constant 0 : i32
    return %c0_i32, %c0_i32_0 : i32, i32
  }
  func.func @transform_5(%arg0: i32, %arg1: i32) -> (i32, i32, i32) {
    %c0_i32 = arith.constant 0 : i32
    %c0_i32_0 = arith.constant 0 : i32
    return %arg0, %c0_i32, %arg1 : i32, i32, i32
  }
}

module attributes {stable_mosaic.version = 11 : i64} {
  func.func @_att_gate_kernel(%arg0: i32, %arg1: i32, %arg2: memref<1x16x256xf32, #tpu.memory_space<vmem>>, %arg3: memref<1x8x256xf32, #tpu.memory_space<vmem>>, %arg4: memref<8x16xf32, #tpu.memory_space<vmem>>, %arg5: memref<8x1xf32, #tpu.memory_space<vmem>>, %arg6: memref<8x8xf32, #tpu.memory_space<vmem>>, %arg7: memref<1x8xf32, #tpu.memory_space<vmem>>, %arg8: memref<1x1xf32, #tpu.memory_space<vmem>>, %arg9: memref<1x8x256xf32, #tpu.memory_space<vmem>>) attributes {dimension_semantics = [#tpu.dimension_semantics<parallel>, #tpu.dimension_semantics<parallel>], iteration_bounds = array<i64: 2, 1>, scalar_prefetch = 0 : i64, scratch_operands = 0 : i64, tpu.core_type = #tpu.core_type<tc>, window_params = [{transform_indices = @transform_0, window_bounds = array<i64: 1, 16, 256>}, {transform_indices = @transform_1, window_bounds = array<i64: 1, 8, 256>}, {pipeline_mode = #tpu.pipeline_mode<synchronous>, transform_indices = @transform_2, window_bounds = array<i64: 8, 16>}, {pipeline_mode = #tpu.pipeline_mode<synchronous>, transform_indices = @transform_3, window_bounds = array<i64: 8, 1>}, {pipeline_mode = #tpu.pipeline_mode<synchronous>, transform_indices = @transform_4, window_bounds = array<i64: 8, 8>}, {pipeline_mode = #tpu.pipeline_mode<synchronous>, transform_indices = @transform_5, window_bounds = array<i64: 1, 8>}, {pipeline_mode = #tpu.pipeline_mode<synchronous>, transform_indices = @transform_6, window_bounds = array<i64: 1, 1>}, {transform_indices = @transform_7, window_bounds = array<i64: 1, 8, 256>}]} {
    %c0 = arith.constant 0 : index
    %c0_0 = arith.constant 0 : index
    %c0_1 = arith.constant 0 : index
    %0 = vector.load %arg2[%c0, %c0_0, %c0_1] : memref<1x16x256xf32, #tpu.memory_space<vmem>>, vector<1x16x256xf32>
    %1 = vector.shape_cast %0 : vector<1x16x256xf32> to vector<16x256xf32>
    %c0_2 = arith.constant 0 : index
    %c0_3 = arith.constant 0 : index
    %c0_4 = arith.constant 0 : index
    %2 = vector.load %arg3[%c0_2, %c0_3, %c0_4] : memref<1x8x256xf32, #tpu.memory_space<vmem>>, vector<1x8x256xf32>
    %3 = vector.shape_cast %2 : vector<1x8x256xf32> to vector<8x256xf32>
    %c0_5 = arith.constant 0 : index
    %c0_6 = arith.constant 0 : index
    %4 = vector.load %arg4[%c0_5, %c0_6] : memref<8x16xf32, #tpu.memory_space<vmem>>, vector<8x16xf32>
    %cst = arith.constant dense<0.000000e+00> : vector<8x256xf32>
    %5 = tpu.matmul %4, %1, %cst {dimension_numbers = #tpu.dot_dimension_numbers<[1], [0], [0], [1], [0, 0, 1, 1], [], []>} : vector<8x16xf32>, vector<16x256xf32>, vector<8x256xf32> -> vector<8x256xf32>
    %c0_7 = arith.constant 0 : index
    %c0_8 = arith.constant 0 : index
    %6 = vector.load %arg5[%c0_7, %c0_8] : memref<8x1xf32, #tpu.memory_space<vmem>>, vector<8x1xf32>
    %7 = vector.broadcast %6 : vector<8x1xf32> to vector<8x256xf32>
    %8 = arith.addf %5, %7 : vector<8x256xf32>
    %c0_9 = arith.constant 0 : index
    %c0_10 = arith.constant 0 : index
    %9 = vector.load %arg6[%c0_9, %c0_10] : memref<8x8xf32, #tpu.memory_space<vmem>>, vector<8x8xf32>
    %cst_11 = arith.constant dense<0.000000e+00> : vector<8x256xf32>
    %10 = tpu.matmul %9, %3, %cst_11 {dimension_numbers = #tpu.dot_dimension_numbers<[1], [0], [0], [1], [0, 0, 1, 1], [], []>} : vector<8x8xf32>, vector<8x256xf32>, vector<8x256xf32> -> vector<8x256xf32>
    %11 = arith.addf %8, %10 : vector<8x256xf32>
    %cst_12 = arith.constant 0.000000e+00 : f32
    %12 = vector.broadcast %cst_12 : f32 to vector<8x256xf32>
    %13 = arith.maximumf %11, %12 : vector<8x256xf32>
    %c0_13 = arith.constant 0 : index
    %c0_14 = arith.constant 0 : index
    %14 = vector.load %arg7[%c0_13, %c0_14] : memref<1x8xf32, #tpu.memory_space<vmem>>, vector<1x8xf32>
    %cst_15 = arith.constant dense<0.000000e+00> : vector<1x256xf32>
    %15 = tpu.matmul %14, %13, %cst_15 {dimension_numbers = #tpu.dot_dimension_numbers<[1], [0], [0], [1], [0, 0, 1, 1], [], []>} : vector<1x8xf32>, vector<8x256xf32>, vector<1x256xf32> -> vector<1x256xf32>
    %c0_16 = arith.constant 0 : index
    %c0_17 = arith.constant 0 : index
    %16 = vector.load %arg8[%c0_16, %c0_17] : memref<1x1xf32, #tpu.memory_space<vmem>>, vector<1x1xf32>
    %17 = vector.broadcast %16 : vector<1x1xf32> to vector<1x256xf32>
    %18 = arith.addf %15, %17 : vector<1x256xf32>
    %19 = arith.negf %18 : vector<1x256xf32>
    %20 = math.exp %19 : vector<1x256xf32>
    %cst_18 = arith.constant 1.000000e+00 : f32
    %21 = vector.broadcast %cst_18 : f32 to vector<1x256xf32>
    %22 = arith.addf %21, %20 : vector<1x256xf32>
    %23 = arith.divf %21, %22 : vector<1x256xf32>
    %24 = vector.broadcast %23 : vector<1x256xf32> to vector<8x256xf32>
    %25 = arith.mulf %3, %24 : vector<8x256xf32>
    %c0_19 = arith.constant 0 : index
    %c0_20 = arith.constant 0 : index
    %c0_21 = arith.constant 0 : index
    %26 = vector.load %arg9[%c0_19, %c0_20, %c0_21] : memref<1x8x256xf32, #tpu.memory_space<vmem>>, vector<1x8x256xf32>
    %27 = vector.shape_cast %26 : vector<1x8x256xf32> to vector<8x256xf32>
    %28 = vector.shape_cast %25 : vector<8x256xf32> to vector<1x8x256xf32>
    tpu.vector_store %arg9[%c0_19, %c0_20, %c0_21], %28 {strides = array<i32>} : memref<1x8x256xf32, #tpu.memory_space<vmem>>, vector<1x8x256xf32>,
    return
  }
  func.func @transform_0(%arg0: i32, %arg1: i32) -> (i32, i32, i32) {
    %c0_i32 = arith.constant 0 : i32
    %c0_i32_0 = arith.constant 0 : i32
    return %arg0, %c0_i32, %arg1 : i32, i32, i32
  }
  func.func @transform_1(%arg0: i32, %arg1: i32) -> (i32, i32, i32) {
    %c0_i32 = arith.constant 0 : i32
    %c0_i32_0 = arith.constant 0 : i32
    return %arg0, %c0_i32, %arg1 : i32, i32, i32
  }
  func.func @transform_2(%arg0: i32, %arg1: i32) -> (i32, i32) {
    %c0_i32 = arith.constant 0 : i32
    %c0_i32_0 = arith.constant 0 : i32
    %c0_i32_1 = arith.constant 0 : i32
    return %c0_i32, %c0_i32_0 : i32, i32
  }
  func.func @transform_3(%arg0: i32, %arg1: i32) -> (i32, i32) {
    %c0_i32 = arith.constant 0 : i32
    %c0_i32_0 = arith.constant 0 : i32
    %c0_i32_1 = arith.constant 0 : i32
    return %c0_i32, %c0_i32_0 : i32, i32
  }
  func.func @transform_4(%arg0: i32, %arg1: i32) -> (i32, i32) {
    %c0_i32 = arith.constant 0 : i32
    %c0_i32_0 = arith.constant 0 : i32
    %c0_i32_1 = arith.constant 0 : i32
    return %c0_i32, %c0_i32_0 : i32, i32
  }
  func.func @transform_5(%arg0: i32, %arg1: i32) -> (i32, i32) {
    %c0_i32 = arith.constant 0 : i32
    %c0_i32_0 = arith.constant 0 : i32
    %c0_i32_1 = arith.constant 0 : i32
    return %c0_i32, %c0_i32_0 : i32, i32
  }
  func.func @transform_6(%arg0: i32, %arg1: i32) -> (i32, i32) {
    %c0_i32 = arith.constant 0 : i32
    %c0_i32_0 = arith.constant 0 : i32
    %c0_i32_1 = arith.constant 0 : i32
    return %c0_i32, %c0_i32_0 : i32, i32
  }
  func.func @transform_7(%arg0: i32, %arg1: i32) -> (i32, i32, i32) {
    %c0_i32 = arith.constant 0 : i32
    %c0_i32_0 = arith.constant 0 : i32
    return %arg0, %c0_i32, %arg1 : i32, i32, i32
  }
}

module attributes {stable_mosaic.version = 11 : i64} {
  func.func @_head_kernel(%arg0: i32, %arg1: memref<1x8x256xf32, #tpu.memory_space<vmem>>, %arg2: memref<1x16x256xf32, #tpu.memory_space<vmem>>, %arg3: memref<8x8xf32, #tpu.memory_space<vmem>>, %arg4: memref<8x16xf32, #tpu.memory_space<vmem>>, %arg5: memref<8x1xf32, #tpu.memory_space<vmem>>, %arg6: memref<1x8xf32, #tpu.memory_space<vmem>>, %arg7: memref<1x1xf32, #tpu.memory_space<vmem>>, %arg8: memref<1x1x256xf32, #tpu.memory_space<vmem>>) attributes {dimension_semantics = [#tpu.dimension_semantics<parallel>], iteration_bounds = array<i64: 2>, scalar_prefetch = 0 : i64, scratch_operands = 0 : i64, tpu.core_type = #tpu.core_type<tc>, window_params = [{transform_indices = @transform_0, window_bounds = array<i64: 1, 8, 256>}, {transform_indices = @transform_1, window_bounds = array<i64: 1, 16, 256>}, {pipeline_mode = #tpu.pipeline_mode<synchronous>, transform_indices = @transform_2, window_bounds = array<i64: 8, 8>}, {pipeline_mode = #tpu.pipeline_mode<synchronous>, transform_indices = @transform_3, window_bounds = array<i64: 8, 16>}, {pipeline_mode = #tpu.pipeline_mode<synchronous>, transform_indices = @transform_4, window_bounds = array<i64: 8, 1>}, {pipeline_mode = #tpu.pipeline_mode<synchronous>, transform_indices = @transform_5, window_bounds = array<i64: 1, 8>}, {pipeline_mode = #tpu.pipeline_mode<synchronous>, transform_indices = @transform_6, window_bounds = array<i64: 1, 1>}, {transform_indices = @transform_7, window_bounds = array<i64: 1, 1, 256>}]} {
    %c0 = arith.constant 0 : index
    %c0_0 = arith.constant 0 : index
    %0 = vector.load %arg3[%c0, %c0_0] : memref<8x8xf32, #tpu.memory_space<vmem>>, vector<8x8xf32>
    %c0_1 = arith.constant 0 : index
    %c0_2 = arith.constant 0 : index
    %c0_3 = arith.constant 0 : index
    %1 = vector.load %arg1[%c0_1, %c0_2, %c0_3] : memref<1x8x256xf32, #tpu.memory_space<vmem>>, vector<1x8x256xf32>
    %2 = vector.shape_cast %1 : vector<1x8x256xf32> to vector<8x256xf32>
    %cst = arith.constant dense<0.000000e+00> : vector<8x256xf32>
    %3 = tpu.matmul %0, %2, %cst {dimension_numbers = #tpu.dot_dimension_numbers<[1], [0], [0], [1], [0, 0, 1, 1], [], []>} : vector<8x8xf32>, vector<8x256xf32>, vector<8x256xf32> -> vector<8x256xf32>
    %c0_4 = arith.constant 0 : index
    %c0_5 = arith.constant 0 : index
    %4 = vector.load %arg4[%c0_4, %c0_5] : memref<8x16xf32, #tpu.memory_space<vmem>>, vector<8x16xf32>
    %c0_6 = arith.constant 0 : index
    %c0_7 = arith.constant 0 : index
    %c0_8 = arith.constant 0 : index
    %5 = vector.load %arg2[%c0_6, %c0_7, %c0_8] : memref<1x16x256xf32, #tpu.memory_space<vmem>>, vector<1x16x256xf32>
    %6 = vector.shape_cast %5 : vector<1x16x256xf32> to vector<16x256xf32>
    %cst_9 = arith.constant dense<0.000000e+00> : vector<8x256xf32>
    %7 = tpu.matmul %4, %6, %cst_9 {dimension_numbers = #tpu.dot_dimension_numbers<[1], [0], [0], [1], [0, 0, 1, 1], [], []>} : vector<8x16xf32>, vector<16x256xf32>, vector<8x256xf32> -> vector<8x256xf32>
    %8 = arith.addf %3, %7 : vector<8x256xf32>
    %c0_10 = arith.constant 0 : index
    %c0_11 = arith.constant 0 : index
    %9 = vector.load %arg5[%c0_10, %c0_11] : memref<8x1xf32, #tpu.memory_space<vmem>>, vector<8x1xf32>
    %10 = vector.broadcast %9 : vector<8x1xf32> to vector<8x256xf32>
    %11 = arith.addf %8, %10 : vector<8x256xf32>
    %cst_12 = arith.constant dense<0.000000e+00> : vector<8xf32>
    %12 = vector.multi_reduction <add>, %11, %cst_12 [1] : vector<8x256xf32> to vector<8xf32>
    %13 = vector.shape_cast %12 : vector<8xf32> to vector<8x1xf32>
    %cst_13 = arith.constant 2.560000e+02 : f32
    %14 = vector.broadcast %cst_13 : f32 to vector<8x1xf32>
    %15 = arith.divf %13, %14 : vector<8x1xf32>
    %16 = arith.negf %15 : vector<8x1xf32>
    %17 = math.exp %16 : vector<8x1xf32>
    %cst_14 = arith.constant 1.000000e+00 : f32
    %18 = vector.broadcast %cst_14 : f32 to vector<8x1xf32>
    %19 = arith.addf %18, %17 : vector<8x1xf32>
    %20 = arith.divf %18, %19 : vector<8x1xf32>
    %21 = vector.broadcast %20 : vector<8x1xf32> to vector<8x256xf32>
    %22 = arith.mulf %11, %21 : vector<8x256xf32>
    %c0_15 = arith.constant 0 : index
    %c0_16 = arith.constant 0 : index
    %23 = vector.load %arg6[%c0_15, %c0_16] : memref<1x8xf32, #tpu.memory_space<vmem>>, vector<1x8xf32>
    %cst_17 = arith.constant dense<0.000000e+00> : vector<1x256xf32>
    %24 = tpu.matmul %23, %11, %cst_17 {dimension_numbers = #tpu.dot_dimension_numbers<[1], [0], [0], [1], [0, 0, 1, 1], [], []>} : vector<1x8xf32>, vector<8x256xf32>, vector<1x256xf32> -> vector<1x256xf32>
    %c0_18 = arith.constant 0 : index
    %c0_19 = arith.constant 0 : index
    %25 = vector.load %arg7[%c0_18, %c0_19] : memref<1x1xf32, #tpu.memory_space<vmem>>, vector<1x1xf32>
    %26 = vector.broadcast %25 : vector<1x1xf32> to vector<1x256xf32>
    %27 = arith.addf %24, %26 : vector<1x256xf32>
    %28 = arith.negf %27 : vector<1x256xf32>
    %29 = math.exp %28 : vector<1x256xf32>
    %cst_20 = arith.constant 1.000000e+00 : f32
    %30 = vector.broadcast %cst_20 : f32 to vector<1x256xf32>
    %31 = arith.addf %30, %29 : vector<1x256xf32>
    %32 = arith.divf %30, %31 : vector<1x256xf32>
    %33 = vector.broadcast %32 : vector<1x256xf32> to vector<8x256xf32>
    %34 = arith.mulf %11, %33 : vector<8x256xf32>
    %cst_21 = arith.constant dense<0.000000e+00> : vector<256xf32>
    %35 = vector.multi_reduction <add>, %22, %cst_21 [0] : vector<8x256xf32> to vector<256xf32>
    %36 = vector.shape_cast %35 : vector<256xf32> to vector<1x256xf32>
    %cst_22 = arith.constant dense<0.000000e+00> : vector<256xf32>
    %37 = vector.multi_reduction <add>, %34, %cst_22 [0] : vector<8x256xf32> to vector<256xf32>
    %38 = vector.shape_cast %37 : vector<256xf32> to vector<1x256xf32>
    %39 = arith.addf %36, %38 : vector<1x256xf32>
    %cst_23 = arith.constant 1.600000e+01 : f32
    %40 = vector.broadcast %cst_23 : f32 to vector<1x256xf32>
    %41 = arith.divf %39, %40 : vector<1x256xf32>
    %42 = arith.negf %41 : vector<1x256xf32>
    %43 = math.exp %42 : vector<1x256xf32>
    %cst_24 = arith.constant 1.000000e+00 : f32
    %44 = vector.broadcast %cst_24 : f32 to vector<1x256xf32>
    %45 = arith.addf %44, %43 : vector<1x256xf32>
    %46 = arith.divf %44, %45 : vector<1x256xf32>
    %c0_25 = arith.constant 0 : index
    %c0_26 = arith.constant 0 : index
    %c0_27 = arith.constant 0 : index
    %47 = vector.load %arg8[%c0_25, %c0_26, %c0_27] : memref<1x1x256xf32, #tpu.memory_space<vmem>>, vector<1x1x256xf32>
    %48 = vector.shape_cast %47 : vector<1x1x256xf32> to vector<1x256xf32>
    %49 = vector.shape_cast %46 : vector<1x256xf32> to vector<1x1x256xf32>
    tpu.vector_store %arg8[%c0_25, %c0_26, %c0_27], %49 {strides = array<i32>} : memref<1x1x256xf32, #tpu.memory_space<vmem>>, vector<1x1x256xf32>,
    return
  }
  func.func @transform_0(%arg0: i32) -> (i32, i32, i32) {
    %c0_i32 = arith.constant 0 : i32
    %c0_i32_0 = arith.constant 0 : i32
    %c0_i32_1 = arith.constant 0 : i32
    return %arg0, %c0_i32, %c0_i32_0 : i32, i32, i32
  }
  func.func @transform_1(%arg0: i32) -> (i32, i32, i32) {
    %c0_i32 = arith.constant 0 : i32
    %c0_i32_0 = arith.constant 0 : i32
    %c0_i32_1 = arith.constant 0 : i32
    return %arg0, %c0_i32, %c0_i32_0 : i32, i32, i32
  }
  func.func @transform_2(%arg0: i32) -> (i32, i32) {
    %c0_i32 = arith.constant 0 : i32
    %c0_i32_0 = arith.constant 0 : i32
    %c0_i32_1 = arith.constant 0 : i32
    return %c0_i32, %c0_i32_0 : i32, i32
  }
  func.func @transform_3(%arg0: i32) -> (i32, i32) {
    %c0_i32 = arith.constant 0 : i32
    %c0_i32_0 = arith.constant 0 : i32
    %c0_i32_1 = arith.constant 0 : i32
    return %c0_i32, %c0_i32_0 : i32, i32
  }
  func.func @transform_4(%arg0: i32) -> (i32, i32) {
    %c0_i32 = arith.constant 0 : i32
    %c0_i32_0 = arith.constant 0 : i32
    %c0_i32_1 = arith.constant 0 : i32
    return %c0_i32, %c0_i32_0 : i32, i32
  }
  func.func @transform_5(%arg0: i32) -> (i32, i32) {
    %c0_i32 = arith.constant 0 : i32
    %c0_i32_0 = arith.constant 0 : i32
    %c0_i32_1 = arith.constant 0 : i32
    return %c0_i32, %c0_i32_0 : i32, i32
  }
  func.func @transform_6(%arg0: i32) -> (i32, i32) {
    %c0_i32 = arith.constant 0 : i32
    %c0_i32_0 = arith.constant 0 : i32
    %c0_i32_1 = arith.constant 0 : i32
    return %c0_i32, %c0_i32_0 : i32, i32
  }
  func.func @transform_7(%arg0: i32) -> (i32, i32, i32) {
    %c0_i32 = arith.constant 0 : i32
    %c0_i32_0 = arith.constant 0 : i32
    %c0_i32_1 = arith.constant 0 : i32
    return %arg0, %c0_i32, %c0_i32_0 : i32, i32, i32
  }
}

module attributes {stable_mosaic.version = 11 : i64} {
  func.func @_conv_mm_cat_kernel(%arg0: i32, %arg1: i32, %arg2: memref<1x144x256xf32, #tpu.memory_space<vmem>>, %arg3: memref<1x72x256xf32, #tpu.memory_space<vmem>>, %arg4: memref<8x144xf32, #tpu.memory_space<vmem>>, %arg5: memref<8x72xf32, #tpu.memory_space<vmem>>, %arg6: memref<8x1xf32, #tpu.memory_space<vmem>>, %arg7: memref<1x8x256xf32, #tpu.memory_space<vmem>>) attributes {dimension_semantics = [#tpu.dimension_semantics<parallel>, #tpu.dimension_semantics<parallel>], iteration_bounds = array<i64: 2, 1>, scalar_prefetch = 0 : i64, scratch_operands = 0 : i64, tpu.core_type = #tpu.core_type<tc>, window_params = [{transform_indices = @transform_0, window_bounds = array<i64: 1, 144, 256>}, {transform_indices = @transform_1, window_bounds = array<i64: 1, 72, 256>}, {pipeline_mode = #tpu.pipeline_mode<synchronous>, transform_indices = @transform_2, window_bounds = array<i64: 8, 144>}, {pipeline_mode = #tpu.pipeline_mode<synchronous>, transform_indices = @transform_3, window_bounds = array<i64: 8, 72>}, {pipeline_mode = #tpu.pipeline_mode<synchronous>, transform_indices = @transform_4, window_bounds = array<i64: 8, 1>}, {transform_indices = @transform_5, window_bounds = array<i64: 1, 8, 256>}]} {
    %c0 = arith.constant 0 : index
    %c0_0 = arith.constant 0 : index
    %0 = vector.load %arg4[%c0, %c0_0] : memref<8x144xf32, #tpu.memory_space<vmem>>, vector<8x144xf32>
    %c0_1 = arith.constant 0 : index
    %c0_2 = arith.constant 0 : index
    %c0_3 = arith.constant 0 : index
    %1 = vector.load %arg2[%c0_1, %c0_2, %c0_3] : memref<1x144x256xf32, #tpu.memory_space<vmem>>, vector<1x144x256xf32>
    %2 = vector.shape_cast %1 : vector<1x144x256xf32> to vector<144x256xf32>
    %cst = arith.constant dense<0.000000e+00> : vector<8x256xf32>
    %3 = tpu.matmul %0, %2, %cst {dimension_numbers = #tpu.dot_dimension_numbers<[1], [0], [0], [1], [0, 0, 1, 1], [], []>} : vector<8x144xf32>, vector<144x256xf32>, vector<8x256xf32> -> vector<8x256xf32>
    %c0_4 = arith.constant 0 : index
    %c0_5 = arith.constant 0 : index
    %4 = vector.load %arg5[%c0_4, %c0_5] : memref<8x72xf32, #tpu.memory_space<vmem>>, vector<8x72xf32>
    %c0_6 = arith.constant 0 : index
    %c0_7 = arith.constant 0 : index
    %c0_8 = arith.constant 0 : index
    %5 = vector.load %arg3[%c0_6, %c0_7, %c0_8] : memref<1x72x256xf32, #tpu.memory_space<vmem>>, vector<1x72x256xf32>
    %6 = vector.shape_cast %5 : vector<1x72x256xf32> to vector<72x256xf32>
    %cst_9 = arith.constant dense<0.000000e+00> : vector<8x256xf32>
    %7 = tpu.matmul %4, %6, %cst_9 {dimension_numbers = #tpu.dot_dimension_numbers<[1], [0], [0], [1], [0, 0, 1, 1], [], []>} : vector<8x72xf32>, vector<72x256xf32>, vector<8x256xf32> -> vector<8x256xf32>
    %8 = arith.addf %3, %7 : vector<8x256xf32>
    %c0_10 = arith.constant 0 : index
    %c0_11 = arith.constant 0 : index
    %9 = vector.load %arg6[%c0_10, %c0_11] : memref<8x1xf32, #tpu.memory_space<vmem>>, vector<8x1xf32>
    %10 = vector.broadcast %9 : vector<8x1xf32> to vector<8x256xf32>
    %11 = arith.addf %8, %10 : vector<8x256xf32>
    %cst_12 = arith.constant 0.000000e+00 : f32
    %12 = vector.broadcast %cst_12 : f32 to vector<8x256xf32>
    %13 = arith.maximumf %11, %12 : vector<8x256xf32>
    %c0_13 = arith.constant 0 : index
    %c0_14 = arith.constant 0 : index
    %c0_15 = arith.constant 0 : index
    %14 = vector.load %arg7[%c0_13, %c0_14, %c0_15] : memref<1x8x256xf32, #tpu.memory_space<vmem>>, vector<1x8x256xf32>
    %15 = vector.shape_cast %14 : vector<1x8x256xf32> to vector<8x256xf32>
    %16 = vector.shape_cast %13 : vector<8x256xf32> to vector<1x8x256xf32>
    tpu.vector_store %arg7[%c0_13, %c0_14, %c0_15], %16 {strides = array<i32>} : memref<1x8x256xf32, #tpu.memory_space<vmem>>, vector<1x8x256xf32>,
    return
  }
  func.func @transform_0(%arg0: i32, %arg1: i32) -> (i32, i32, i32) {
    %c0_i32 = arith.constant 0 : i32
    %c0_i32_0 = arith.constant 0 : i32
    return %arg0, %c0_i32, %arg1 : i32, i32, i32
  }
  func.func @transform_1(%arg0: i32, %arg1: i32) -> (i32, i32, i32) {
    %c0_i32 = arith.constant 0 : i32
    %c0_i32_0 = arith.constant 0 : i32
    return %arg0, %c0_i32, %arg1 : i32, i32, i32
  }
  func.func @transform_2(%arg0: i32, %arg1: i32) -> (i32, i32) {
    %c0_i32 = arith.constant 0 : i32
    %c0_i32_0 = arith.constant 0 : i32
    %c0_i32_1 = arith.constant 0 : i32
    return %c0_i32, %c0_i32_0 : i32, i32
  }
  func.func @transform_3(%arg0: i32, %arg1: i32) -> (i32, i32) {
    %c0_i32 = arith.constant 0 : i32
    %c0_i32_0 = arith.constant 0 : i32
    %c0_i32_1 = arith.constant 0 : i32
    return %c0_i32, %c0_i32_0 : i32, i32
  }
  func.func @transform_4(%arg0: i32, %arg1: i32) -> (i32, i32) {
    %c0_i32 = arith.constant 0 : i32
    %c0_i32_0 = arith.constant 0 : i32
    %c0_i32_1 = arith.constant 0 : i32
    return %c0_i32, %c0_i32_0 : i32, i32
  }
  func.func @transform_5(%arg0: i32, %arg1: i32) -> (i32, i32, i32) {
    %c0_i32 = arith.constant 0 : i32
    %c0_i32_0 = arith.constant 0 : i32
    return %arg0, %c0_i32, %arg1 : i32, i32, i32
  }
}

</mosaic_0001>

<llo_original>
// kernel: ma_unet_forward.9
$region0: #{ma_unet_forward.9}
  #allocation0 [shape = 'u32[]', space=smem, size = 0x4, offset = 0x4, fixed_abs, tag = 'smem constant byte address 0x4 - core index']
  #allocation1 [shape = 'u32[144,128]{1,0:T(1,128)}', space=vmem, size = 0x12000, scoped, tag = 'internal scratch']
  %s0 = inlined_call_operand.vmem [shape: f32[2,36,256], index: 0, kind: input, shape index: {}]
  %s1 = inlined_call_operand.vmem [shape: f32[8,36], index: 1, kind: input, shape index: {}]
  %s2 = inlined_call_operand.vmem [shape: f32[8,1], index: 2, kind: input, shape index: {}]
  %s3 = inlined_call_operand.vmem [shape: f32[2,8,256], index: 3, kind: output, shape index: {}]
  %s4 = sld [smem:[#allocation0]]
  $region45: #{ma_unet_forward.9} parent=0
    _
  %s6 = ssub.s32 1, %s4
  %s7 = scalar_select 0, %s6, %s4
  loop: start=0, step=1, limit=4
  $region2: #{ma_unet_forward.9} parent=0 // loop_pre_header
    _
  $region3: #{ma_unet_forward.9} parent=0 // loop_header
    %s9 = sphi 0, %s13
    %p10 = scmp.ge.s32.totalorder %s9, 4
    %s16 = sphi 0, %s28
    %s17 = sphi 0, %s24
    %s18 = sphi 0, %s16
    %s19 = sphi 0, %s17
    %s20 = sphi 0, %s18
    %s21 = sphi 0, %s19
    %s33 = sphi 0, %s35
    %s36 = sphi 0, %s33
    %s37 = sphi 0, %s36
    %s53 = sphi 0, %s37
    %s57 = sphi 0, %s57
    %s59 = sphi 0, %s57
    %s60 = sphi 0, %s59
    %s74 = sphi 0, %s60
    %s78 = sphi 0, %s78
    %s80 = sphi 0, %s78
    %s81 = sphi 0, %s80
    %s95 = sphi 0, %s81
    %s103 = sphi 0, %s105
    %s106 = sphi 0, %s103
    %s107 = sphi 0, %s106
    %s123 = sphi 0, %s107
  $region4: #{ma_unet_forward.9} parent=0 // loop_header_branch
    %12 = sbr.rel (%p10) target = $region8
  $region5: #{ma_unet_forward.9} parent=0 // loop_body
    %s14 = ssub.s32 %s9, 1
    %s15 = ssub.s32 %s9, 2
    %s22 = sadd.s32 1, %s17
    %p23 = scmp.ge.s32.totalorder %s22, 1
    %s24 = scalar_select %p23, 0, %s22
    %s25 = sadd.s32 1, %s16
    %s26 = scalar_select %p23, %s25, %s16
    %p27 = scmp.ge.s32.totalorder %s26, 2
    %s28 = scalar_select %p27, 0, %s26
    %s29 = ssub.s32 %s16, %s28
    %s30 = ssub.s32 %s17, %s24
    %s31 = sor.u32 %s29, %s30
    %p32 = scmp.eq.s32.totalorder %s31, 0
    %s34 = sadd.s32 %s33, 1
    %s35 = scalar_select %p32, %s33, %s34
    %p38 = pneg %p32
    %p39 = scmp.eq.s32.totalorder %s9, 1
    %p40 = por %p38, %p39
    %p41 = scmp.ne.s32.totalorder %s33, %s36
    %p42 = scmp.eq.s32.totalorder %s9, 0
    %p43 = por %p41, %p42
    %p44 = scmp.ne.s32.totalorder %s33, %s36
    %p45 = scmp.eq.s32.totalorder %s14, 1
    %p46 = por %p44, %p45
    %p47 = scmp.ne.s32.totalorder %s36, %s37
    %p48 = scmp.eq.s32.totalorder %s14, 0
    %p49 = por %p47, %p48
    %p50 = scmp.ne.s32.totalorder %s36, %s37
    %p51 = scmp.eq.s32.totalorder %s15, 1
    %p52 = por %p50, %p51
    %p54 = scmp.ne.s32.totalorder %s37, %s53
    %p55 = scmp.eq.s32.totalorder %s15, 0
    %p56 = por %p54, %p55
    %s58 = sadd.s32 %s57, 1
    %p61 = scmp.eq.s32.totalorder %s9, 1
    %p62 = scmp.ne.s32.totalorder %s57, %s59
    %p63 = scmp.eq.s32.totalorder %s9, 0
    %p64 = por %p62, %p63
    %p65 = scmp.ne.s32.totalorder %s57, %s59
    %p66 = scmp.eq.s32.totalorder %s14, 1
    %p67 = por %p65, %p66
    %p68 = scmp.ne.s32.totalorder %s59, %s60
    %p69 = scmp.eq.s32.totalorder %s14, 0
    %p70 = por %p68, %p69
    %p71 = scmp.ne.s32.totalorder %s59, %s60
    %p72 = scmp.eq.s32.totalorder %s15, 1
    %p73 = por %p71, %p72
    %p75 = scmp.ne.s32.totalorder %s60, %s74
    %p76 = scmp.eq.s32.totalorder %s15, 0
    %p77 = por %p75, %p76
    %s79 = sadd.s32 %s78, 1
    %p82 = scmp.eq.s32.totalorder %s9, 1
    %p83 = scmp.ne.s32.totalorder %s78, %s80
    %p84 = scmp.eq.s32.totalorder %s9, 0
    %p85 = por %p83, %p84
    %p86 = scmp.ne.s32.totalorder %s78, %s80
    %p87 = scmp.eq.s32.totalorder %s14, 1
    %p88 = por %p86, %p87
    %p89 = scmp.ne.s32.totalorder %s80, %s81
    %p90 = scmp.eq.s32.totalorder %s14, 0
    %p91 = por %p89, %p90
    %p92 = scmp.ne.s32.totalorder %s80, %s81
    %p93 = scmp.eq.s32.totalorder %s15, 1
    %p94 = por %p92, %p93
    %p96 = scmp.ne.s32.totalorder %s81, %s95
    %p97 = scmp.eq.s32.totalorder %s15, 0
    %p98 = por %p96, %p97
    %s99 = ssub.s32 %s16, %s28
    %s100 = ssub.s32 %s17, %s24
    %s101 = sor.u32 %s99, %s100
    %p102 = scmp.eq.s32.totalorder %s101, 0
    %s104 = sadd.s32 %s103, 1
    %s105 = scalar_select %p102, %s103, %s104
    %p108 = pneg %p102
    %p109 = scmp.eq.s32.totalorder %s9, 1
    %p110 = por %p108, %p109
    %p111 = scmp.ne.s32.totalorder %s103, %s106
    %p112 = scmp.eq.s32.totalorder %s9, 0
    %p113 = por %p111, %p112
    %p114 = scmp.ne.s32.totalorder %s103, %s106
    %p115 = scmp.eq.s32.totalorder %s14, 1
    %p116 = por %p114, %p115
    %p117 = scmp.ne.s32.totalorder %s106, %s107
    %p118 = scmp.eq.s32.totalorder %s14, 0
    %p119 = por %p117, %p118
    %p120 = scmp.ne.s32.totalorder %s106, %s107
    %p121 = scmp.eq.s32.totalorder %s15, 1
    %p122 = por %p120, %p121
    %p124 = scmp.ne.s32.totalorder %s107, %s123
    %p125 = scmp.eq.s32.totalorder %s15, 0
    %p126 = por %p124, %p125
    %p127 = scmp.le.s32.totalorder 1, %s9
    %p128 = scmp.lt.s32.totalorder %s9, 3
    %p129 = pnand %p127, %p128
    %p130 = pneg %p129
    // Predicated region
    $region9: #{ma_unet_forward.9} parent=5 // pred_check
      _
    $region10: #{ma_unet_forward.9} parent=5 // pred_check_branch
      %132 = sbr.rel (%p129) target = $region12
    $region11: #{ma_unet_forward.9} parent=5 // pred_region
      %s133 = ssub.s32 %s9, 1
      // Predicated region
      $region13: #{ma_unet_forward.9} parent=11 // pred_check
        %p134 = pneg %p70
      $region14: #{ma_unet_forward.9} parent=11 // pred_check_branch
        %136 = sbr.rel (%p134) target = $region16
      $region15: #{ma_unet_forward.9} parent=11 // pred_region
        _
      $region16: #{ma_unet_forward.9} parent=11 // pred_fallthru
        _
      // Predicated region
      $region17: #{ma_unet_forward.9} parent=11 // pred_check
        %p137 = pneg %p91
      $region18: #{ma_unet_forward.9} parent=11 // pred_check_branch
        %139 = sbr.rel (%p137) target = $region20
      $region19: #{ma_unet_forward.9} parent=11 // pred_region
        _
      $region20: #{ma_unet_forward.9} parent=11 // pred_fallthru
        _
    $region12: #{ma_unet_forward.9} parent=5 // pred_fallthru
      _
    %p140 = scmp.lt.s32.totalorder %s9, 2
    // Predicated region
    $region21: #{ma_unet_forward.9} parent=5 // pred_check
      %p141 = pneg %p140
    $region22: #{ma_unet_forward.9} parent=5 // pred_check_branch
      %143 = sbr.rel (%p141) target = $region24
    $region23: #{ma_unet_forward.9} parent=5 // pred_region
      // Predicated region
      $region25: #{ma_unet_forward.9} parent=23 // pred_check
        %p144 = pneg %p43
      $region26: #{ma_unet_forward.9} parent=23 // pred_check_branch
        %146 = sbr.rel (%p144) target = $region28
      $region27: #{ma_unet_forward.9} parent=23 // pred_region
        %s147 = smul.u32 2, %s17
        %p148 = scmp.lt.s32.totalorder %s16, 1
        %s149 = scalar_select %p148, %s16, 1
        %p150 = scmp.lt.s32.totalorder %s147, 1
        %s151 = scalar_select %p150, %s147, 1
        %s152 = smul.addr %s149, 10
        %s153 = sadd.s32 %s151, %s152
        %s154 = smul.addr %s153, 8
        %s155 = scalar_lea.vmem %s0, %s154
        %s156 = smul.u32 2, %s17
      $region28: #{ma_unet_forward.9} parent=23 // pred_fallthru
        _
    $region24: #{ma_unet_forward.9} parent=5 // pred_fallthru
      _
    %p157 = scmp.le.s32.totalorder 1, %s9
    %p158 = scmp.lt.s32.totalorder %s9, 3
    %p159 = pnand %p157, %p158
    %p160 = pneg %p159
    // Predicated region
    $region29: #{ma_unet_forward.9} parent=5 // pred_check
      _
    $region30: #{ma_unet_forward.9} parent=5 // pred_check_branch
      %162 = sbr.rel (%p159) target = $region32
    $region31: #{ma_unet_forward.9} parent=5 // pred_region
      %s163 = ssub.s32 %s9, 1
      %s164 = smul.u32 2, %s19
      %p165 = scmp.lt.s32.totalorder %s18, 1
      %s166 = scalar_select %p165, %s18, 1
      %p167 = scmp.lt.s32.totalorder %s164, 1
      %s168 = scalar_select %p167, %s164, 1
      %s169 = smul.addr %s166, 10
      %s170 = sadd.s32 %s168, %s169
      %s171 = smul.addr %s170, 8
      %s172 = scalar_lea.vmem %s0, %s171
      %p173 = pneg %p49
      %p174 = pneg %p46
      %p175 = pneg %p70
      %p176 = pneg %p67
      %p177 = pneg %p91
      %p178 = pneg %p88
      %p179 = pneg %p119
      %p180 = pneg %p116
      %s181 = smul.u32 2, %s19
      %p182 = scmp.lt.s32.totalorder %s18, 1
      %s183 = scalar_select %p182, %s18, 1
      %p184 = scmp.lt.s32.totalorder %s181, 1
      %s185 = scalar_select %p184, %s181, 1
      %s186 = smul.addr %s183, 2
      %s187 = sadd.s32 %s185, %s186
      %s188 = smul.addr %s187, 8
      %s189 = scalar_lea.vmem %s3, %s188
      %s190 = smul.u32 2, %s19
      %p191 = scmp.lt.s32.totalorder %s18, 1
      %s192 = scalar_select %p191, %s18, 1
      %p193 = scmp.lt.s32.totalorder %s190, 1
      %s194 = scalar_select %p193, %s190, 1
      %s195 = smul.addr %s192, 10
      %s196 = sadd.s32 %s194, %s195
      %s197 = smul.addr %s196, 8
      %s198 = scalar_lea.vmem %s0, %s197
      %s199 = smul.u32 2, %s19
      %s200 = smul.u32 2, %s19
      %p201 = scmp.lt.s32.totalorder %s18, 1
      %s202 = scalar_select %p201, %s18, 1
      %p203 = scmp.lt.s32.totalorder %s200, 1
      %s204 = scalar_select %p203, %s200, 1
      %s205 = smul.addr %s202, 2
      %s206 = sadd.s32 %s204, %s205
      %s207 = smul.addr %s206, 8
      %s208 = scalar_lea.vmem %s3, %s207
      %s209 = smul.u32 2, %s19
      %v210 = vld [vmem:[%s1] sm:$0xff]
      %v211 = vld [vmem:[%s198] sm:$0xff]
      %v212 = vld [vmem:[%s198 + $0x8] sm:$0xff]
      %v213 = vld [vmem:[%s198 + $0x10] sm:$0xff]
      %v214 = vld [vmem:[%s198 + $0x18] sm:$0xff]
      %v215 = vld [vmem:[%s198 + $0x20] sm:$0xff]
      %v216 = vld [vmem:[%s198 + $0x28] sm:$0xff]
      %v217 = vld [vmem:[%s198 + $0x30] sm:$0xff]
      %v218 = vld [vmem:[%s198 + $0x38] sm:$0xff]
      %v219 = vld [vmem:[%s198 + $0x40] sm:$0xf]
      %v220 = vld [vmem:[%s198 + $0x48] sm:$0xf]
      %v221 = vld [vmem:[%s2] sm:$0xff]
      %223 = vset.pattern.permute.xlu0 0
      %224 = vperm.xlu0 %223, %v221
      %v225 = vpop.permute.xlu0 %224
      %vm227 = vcmask 293888
      %v229 = vsel %vm227, %v210, 0
      %vm231 = vcmask 1043456
      %v233 = vsel %vm231, %v219, 0
      %v236 = vsel %vm231, %v220, 0
      %238 = vmatprep.subr.mxu0 0.0
      %239 = vmatpush1.msra.mxu0 0.0
      %240 = vmatprep.subr.mxu0 0.0
      %241 = vmatpush1.msra.mxu0 0.0
      %242 = vmatprep.subr.mxu0 0.0
      %243 = vmatpush1.msra.mxu0 0.0
      %244 = vmatprep.subr.mxu0 0.0
      %245 = vmatpush1.msra.mxu0 0.0
      %246 = vmatprep.subr.mxu0 0.0
      %247 = vmatpush1.msra.mxu0 0.0
      %248 = vmatprep.subr.mxu0 0.0
      %249 = vmatpush1.msra.mxu0 0.0
      %250 = vmatprep.subr.mxu0 0.0
      %251 = vmatpush1.msra.mxu0 0.0
      %252 = vmatprep.subr.mxu0 0.0
      %253 = vmatpush1.msra.mxu0 0.0
      %254 = vmatprep.subr.mxu0 0.0
      %255 = vmatpush1.msra.mxu0 0.0
      %256 = vmatprep.subr.mxu0 0.0
      %257 = vmatpush1.msra.mxu0 0.0
      %258 = vmatprep.subr.mxu0 0.0
      %259 = vmatpush1.msra.mxu0 0.0
      %260 = vmatprep.subr.mxu0 %v236
      %261 = vmatpush1.msra.mxu0 %v233
      %262 = vmatprep.subr.mxu0 %v218
      %263 = vmatpush1.msra.mxu0 %v217
      %264 = vmatprep.subr.mxu0 %v216
      %265 = vmatpush1.msra.mxu0 %v215
      %266 = vmatprep.subr.mxu0 %v214
      %267 = vmatpush1.msra.mxu0 %v213
      %268 = vmatprep.subr.mxu0 %v212
      %269 = vmatpush1.msra.mxu0 %v211
      %270 = vmatprep.subr.mxu0 0.0
      %271 = vmatpush2.msra.mxu0 0.0
      %272 = vmatprep.subr.mxu0 0.0
      %273 = vmatpush2.msra.mxu0 0.0
      %274 = vmatprep.subr.mxu0 0.0
      %275 = vmatpush2.msra.mxu0 0.0
      %276 = vmatprep.subr.mxu0 0.0
      %277 = vmatpush2.msra.mxu0 0.0
      %278 = vmatprep.subr.mxu0 0.0
      %279 = vmatpush2.msra.mxu0 0.0
      %280 = vmatprep.subr.mxu0 0.0
      %281 = vmatpush2.msra.mxu0 0.0
      %282 = vmatprep.subr.mxu0 0.0
      %283 = vmatpush2.msra.mxu0 0.0
      %284 = vmatprep.subr.mxu0 0.0
      %285 = vmatpush2.msra.mxu0 0.0
      %286 = vmatprep.subr.mxu0 0.0
      %287 = vmatpush2.msra.mxu0 0.0
      %288 = vmatprep.subr.mxu0 0.0
      %289 = vmatpush2.msra.mxu0 0.0
      %290 = vmatprep.subr.mxu0 0.0
      %291 = vmatpush2.msra.mxu0 0.0
      %292 = vmatprep.subr.mxu0 0.0
      %293 = vmatpush2.msra.mxu0 0.0
      %294 = vmatprep.subr.mxu0 0.0
      %295 = vmatpush2.msra.mxu0 0.0
      %296 = vmatprep.subr.mxu0 0.0
      %297 = vmatpush2.msra.mxu0 0.0
      %298 = vmatprep.subr.mxu0 0.0
      %299 = vmatpush2.msra.mxu0 0.0
      %300 = vmatprep.subr.mxu0 0.0
      %301 = vmatpush2.msra.mxu0 0.0
      %302 = vmatprep.mubr.f32.mxu0 0.0
      %303 = vmatmul.mubr.f32.gmra.mxu0 %v229
      %v304 = vpop.f32.mrf.mxu0
      %v305 = vadd.f32 %v225, %v304
      %v306 = vpop.f32.mrf.mxu0
      %v307 = vadd.f32 %v225, %v306
      %308 = vdwg.mxu0
      %v309 = vmax.f32 %v305, 0.0
      %v310 = vmax.f32 %v307, 0.0
      %311 = vst [vmem:[%s208] sm:$0xff] %v309
      %312 = vst [vmem:[%s208 + $0x8] sm:$0xff] %v310
      %s313 = smul.u32 2, %s19
      %p314 = scmp.lt.s32.totalorder %s18, 1
      %s315 = scalar_select %p314, %s18, 1
      %p316 = scmp.lt.s32.totalorder %s313, 1
      %s317 = scalar_select %p316, %s313, 1
      %s318 = smul.addr %s315, 2
      %s319 = sadd.s32 %s317, %s318
      %s320 = smul.addr %s319, 8
      %s321 = scalar_lea.vmem %s3, %s320
      // Predicated region
      $region33: #{ma_unet_forward.9} parent=31 // pred_check
        %p322 = pneg %p116
      $region34: #{ma_unet_forward.9} parent=31 // pred_check_branch
        %324 = sbr.rel (%p322) target = $region36
      $region35: #{ma_unet_forward.9} parent=31 // pred_region
        %s325 = smul.u32 2, %s19
      $region36: #{ma_unet_forward.9} parent=31 // pred_fallthru
        _
    $region32: #{ma_unet_forward.9} parent=5 // pred_fallthru
      _
    %p326 = scmp.le.s32.totalorder 2, %s9
    // Predicated region
    $region37: #{ma_unet_forward.9} parent=5 // pred_check
      %p327 = pneg %p326
    $region38: #{ma_unet_forward.9} parent=5 // pred_check_branch
      %329 = sbr.rel (%p327) target = $region40
    $region39: #{ma_unet_forward.9} parent=5 // pred_region
      %s330 = ssub.s32 %s9, 2
      // Predicated region
      $region41: #{ma_unet_forward.9} parent=39 // pred_check
        %p331 = pneg %p122
      $region42: #{ma_unet_forward.9} parent=39 // pred_check_branch
        %333 = sbr.rel (%p331) target = $region44
      $region43: #{ma_unet_forward.9} parent=39 // pred_region
        %s334 = smul.u32 2, %s21
        %p335 = scmp.lt.s32.totalorder %s20, 1
        %s336 = scalar_select %p335, %s20, 1
        %p337 = scmp.lt.s32.totalorder %s334, 1
        %s338 = scalar_select %p337, %s334, 1
        %s339 = smul.addr %s336, 2
        %s340 = sadd.s32 %s338, %s339
        %s341 = smul.addr %s340, 8
        %s342 = scalar_lea.vmem %s3, %s341
      $region44: #{ma_unet_forward.9} parent=39 // pred_fallthru
        _
    $region40: #{ma_unet_forward.9} parent=5 // pred_fallthru
      _
  $region6: #{ma_unet_forward.9} parent=0 // loop_footer
    %s13 = sadd.s32 1, %s9
  $region7: #{ma_unet_forward.9} parent=0 // loop_footer_branch
    %8 = sbr.rel target = $region3
  $region8: #{ma_unet_forward.9} parent=0 // loop_exit
    _

// kernel: ma_unet_forward.10
$region0: #{ma_unet_forward.10}
  #allocation0 [shape = 'u32[]', space=smem, size = 0x4, offset = 0x4, fixed_abs, tag = 'smem constant byte address 0x4 - core index']
  #allocation1 [shape = 'u32[144,128]{1,0:T(1,128)}', space=vmem, size = 0x12000, scoped, tag = 'internal scratch']
  %s0 = inlined_call_operand.vmem [shape: f32[2,72,64], index: 0, kind: input, shape index: {}]
  %s1 = inlined_call_operand.vmem [shape: f32[16,72], index: 1, kind: input, shape index: {}]
  %s2 = inlined_call_operand.vmem [shape: f32[16,1], index: 2, kind: input, shape index: {}]
  %s3 = inlined_call_operand.vmem [shape: f32[2,16,64], index: 3, kind: output, shape index: {}]
  %s4 = sld [smem:[#allocation0]]
  $region45: #{ma_unet_forward.10} parent=0
    _
  %s6 = ssub.s32 1, %s4
  %s7 = scalar_select 0, %s6, %s4
  loop: start=0, step=1, limit=4
  $region2: #{ma_unet_forward.10} parent=0 // loop_pre_header
    _
  $region3: #{ma_unet_forward.10} parent=0 // loop_header
    %s9 = sphi 0, %s13
    %p10 = scmp.ge.s32.totalorder %s9, 4
    %s16 = sphi 0, %s28
    %s17 = sphi 0, %s24
    %s18 = sphi 0, %s16
    %s19 = sphi 0, %s17
    %s20 = sphi 0, %s18
    %s21 = sphi 0, %s19
    %s33 = sphi 0, %s35
    %s36 = sphi 0, %s33
    %s37 = sphi 0, %s36
    %s53 = sphi 0, %s37
    %s57 = sphi 0, %s57
    %s59 = sphi 0, %s57
    %s60 = sphi 0, %s59
    %s74 = sphi 0, %s60
    %s78 = sphi 0, %s78
    %s80 = sphi 0, %s78
    %s81 = sphi 0, %s80
    %s95 = sphi 0, %s81
    %s103 = sphi 0, %s105
    %s106 = sphi 0, %s103
    %s107 = sphi 0, %s106
    %s123 = sphi 0, %s107
  $region4: #{ma_unet_forward.10} parent=0 // loop_header_branch
    %12 = sbr.rel (%p10) target = $region8
  $region5: #{ma_unet_forward.10} parent=0 // loop_body
    %s14 = ssub.s32 %s9, 1
    %s15 = ssub.s32 %s9, 2
    %s22 = sadd.s32 1, %s17
    %p23 = scmp.ge.s32.totalorder %s22, 1
    %s24 = scalar_select %p23, 0, %s22
    %s25 = sadd.s32 1, %s16
    %s26 = scalar_select %p23, %s25, %s16
    %p27 = scmp.ge.s32.totalorder %s26, 2
    %s28 = scalar_select %p27, 0, %s26
    %s29 = ssub.s32 %s16, %s28
    %s30 = ssub.s32 %s17, %s24
    %s31 = sor.u32 %s29, %s30
    %p32 = scmp.eq.s32.totalorder %s31, 0
    %s34 = sadd.s32 %s33, 1
    %s35 = scalar_select %p32, %s33, %s34
    %p38 = pneg %p32
    %p39 = scmp.eq.s32.totalorder %s9, 1
    %p40 = por %p38, %p39
    %p41 = scmp.ne.s32.totalorder %s33, %s36
    %p42 = scmp.eq.s32.totalorder %s9, 0
    %p43 = por %p41, %p42
    %p44 = scmp.ne.s32.totalorder %s33, %s36
    %p45 = scmp.eq.s32.totalorder %s14, 1
    %p46 = por %p44, %p45
    %p47 = scmp.ne.s32.totalorder %s36, %s37
    %p48 = scmp.eq.s32.totalorder %s14, 0
    %p49 = por %p47, %p48
    %p50 = scmp.ne.s32.totalorder %s36, %s37
    %p51 = scmp.eq.s32.totalorder %s15, 1
    %p52 = por %p50, %p51
    %p54 = scmp.ne.s32.totalorder %s37, %s53
    %p55 = scmp.eq.s32.totalorder %s15, 0
    %p56 = por %p54, %p55
    %s58 = sadd.s32 %s57, 1
    %p61 = scmp.eq.s32.totalorder %s9, 1
    %p62 = scmp.ne.s32.totalorder %s57, %s59
    %p63 = scmp.eq.s32.totalorder %s9, 0
    %p64 = por %p62, %p63
    %p65 = scmp.ne.s32.totalorder %s57, %s59
    %p66 = scmp.eq.s32.totalorder %s14, 1
    %p67 = por %p65, %p66
    %p68 = scmp.ne.s32.totalorder %s59, %s60
    %p69 = scmp.eq.s32.totalorder %s14, 0
    %p70 = por %p68, %p69
    %p71 = scmp.ne.s32.totalorder %s59, %s60
    %p72 = scmp.eq.s32.totalorder %s15, 1
    %p73 = por %p71, %p72
    %p75 = scmp.ne.s32.totalorder %s60, %s74
    %p76 = scmp.eq.s32.totalorder %s15, 0
    %p77 = por %p75, %p76
    %s79 = sadd.s32 %s78, 1
    %p82 = scmp.eq.s32.totalorder %s9, 1
    %p83 = scmp.ne.s32.totalorder %s78, %s80
    %p84 = scmp.eq.s32.totalorder %s9, 0
    %p85 = por %p83, %p84
    %p86 = scmp.ne.s32.totalorder %s78, %s80
    %p87 = scmp.eq.s32.totalorder %s14, 1
    %p88 = por %p86, %p87
    %p89 = scmp.ne.s32.totalorder %s80, %s81
    %p90 = scmp.eq.s32.totalorder %s14, 0
    %p91 = por %p89, %p90
    %p92 = scmp.ne.s32.totalorder %s80, %s81
    %p93 = scmp.eq.s32.totalorder %s15, 1
    %p94 = por %p92, %p93
    %p96 = scmp.ne.s32.totalorder %s81, %s95
    %p97 = scmp.eq.s32.totalorder %s15, 0
    %p98 = por %p96, %p97
    %s99 = ssub.s32 %s16, %s28
    %s100 = ssub.s32 %s17, %s24
    %s101 = sor.u32 %s99, %s100
    %p102 = scmp.eq.s32.totalorder %s101, 0
    %s104 = sadd.s32 %s103, 1
    %s105 = scalar_select %p102, %s103, %s104
    %p108 = pneg %p102
    %p109 = scmp.eq.s32.totalorder %s9, 1
    %p110 = por %p108, %p109
    %p111 = scmp.ne.s32.totalorder %s103, %s106
    %p112 = scmp.eq.s32.totalorder %s9, 0
    %p113 = por %p111, %p112
    %p114 = scmp.ne.s32.totalorder %s103, %s106
    %p115 = scmp.eq.s32.totalorder %s14, 1
    %p116 = por %p114, %p115
    %p117 = scmp.ne.s32.totalorder %s106, %s107
    %p118 = scmp.eq.s32.totalorder %s14, 0
    %p119 = por %p117, %p118
    %p120 = scmp.ne.s32.totalorder %s106, %s107
    %p121 = scmp.eq.s32.totalorder %s15, 1
    %p122 = por %p120, %p121
    %p124 = scmp.ne.s32.totalorder %s107, %s123
    %p125 = scmp.eq.s32.totalorder %s15, 0
    %p126 = por %p124, %p125
    %p127 = scmp.le.s32.totalorder 1, %s9
    %p128 = scmp.lt.s32.totalorder %s9, 3
    %p129 = pnand %p127, %p128
    %p130 = pneg %p129
    // Predicated region
    $region9: #{ma_unet_forward.10} parent=5 // pred_check
      _
    $region10: #{ma_unet_forward.10} parent=5 // pred_check_branch
      %132 = sbr.rel (%p129) target = $region12
    $region11: #{ma_unet_forward.10} parent=5 // pred_region
      %s133 = ssub.s32 %s9, 1
      // Predicated region
      $region13: #{ma_unet_forward.10} parent=11 // pred_check
        %p134 = pneg %p70
      $region14: #{ma_unet_forward.10} parent=11 // pred_check_branch
        %136 = sbr.rel (%p134) target = $region16
      $region15: #{ma_unet_forward.10} parent=11 // pred_region
        _
      $region16: #{ma_unet_forward.10} parent=11 // pred_fallthru
        _
      // Predicated region
      $region17: #{ma_unet_forward.10} parent=11 // pred_check
        %p137 = pneg %p91
      $region18: #{ma_unet_forward.10} parent=11 // pred_check_branch
        %139 = sbr.rel (%p137) target = $region20
      $region19: #{ma_unet_forward.10} parent=11 // pred_region
        _
      $region20: #{ma_unet_forward.10} parent=11 // pred_fallthru
        _
    $region12: #{ma_unet_forward.10} parent=5 // pred_fallthru
      _
    %p140 = scmp.lt.s32.totalorder %s9, 2
    // Predicated region
    $region21: #{ma_unet_forward.10} parent=5 // pred_check
      %p141 = pneg %p140
    $region22: #{ma_unet_forward.10} parent=5 // pred_check_branch
      %143 = sbr.rel (%p141) target = $region24
    $region23: #{ma_unet_forward.10} parent=5 // pred_region
      // Predicated region
      $region25: #{ma_unet_forward.10} parent=23 // pred_check
        %p144 = pneg %p43
      $region26: #{ma_unet_forward.10} parent=23 // pred_check_branch
        %146 = sbr.rel (%p144) target = $region28
      $region27: #{ma_unet_forward.10} parent=23 // pred_region
        %p147 = scmp.lt.s32.totalorder %s16, 1
        %s148 = scalar_select %p147, %s16, 1
        %p149 = scmp.lt.s32.totalorder %s17, 0
        %s150 = scalar_select %p149, %s17, 0
        %s151 = smul.addr %s148, 9
        %s152 = sadd.s32 %s150, %s151
        %s153 = smul.addr %s152, 8
        %s154 = scalar_lea.vmem %s0, %s153
      $region28: #{ma_unet_forward.10} parent=23 // pred_fallthru
        _
    $region24: #{ma_unet_forward.10} parent=5 // pred_fallthru
      _
    %p155 = scmp.le.s32.totalorder 1, %s9
    %p156 = scmp.lt.s32.totalorder %s9, 3
    %p157 = pnand %p155, %p156
    %p158 = pneg %p157
    // Predicated region
    $region29: #{ma_unet_forward.10} parent=5 // pred_check
      _
    $region30: #{ma_unet_forward.10} parent=5 // pred_check_branch
      %160 = sbr.rel (%p157) target = $region32
    $region31: #{ma_unet_forward.10} parent=5 // pred_region
      %s161 = ssub.s32 %s9, 1
      %p162 = scmp.lt.s32.totalorder %s18, 1
      %s163 = scalar_select %p162, %s18, 1
      %p164 = scmp.lt.s32.totalorder %s19, 0
      %s165 = scalar_select %p164, %s19, 0
      %s166 = smul.addr %s163, 9
      %s167 = sadd.s32 %s165, %s166
      %s168 = smul.addr %s167, 8
      %s169 = scalar_lea.vmem %s0, %s168
      %p170 = pneg %p49
      %p171 = pneg %p46
      %p172 = pneg %p70
      %p173 = pneg %p67
      %p174 = pneg %p91
      %p175 = pneg %p88
      %p176 = pneg %p119
      %p177 = pneg %p116
      %p178 = scmp.lt.s32.totalorder %s18, 1
      %s179 = scalar_select %p178, %s18, 1
      %p180 = scmp.lt.s32.totalorder %s19, 0
      %s181 = scalar_select %p180, %s19, 0
      %s182 = smul.addr %s179, 2
      %s183 = sadd.s32 %s181, %s182
      %s184 = smul.addr %s183, 8
      %s185 = scalar_lea.vmem %s3, %s184
      %p186 = scmp.lt.s32.totalorder %s18, 1
      %s187 = scalar_select %p186, %s18, 1
      %p188 = scmp.lt.s32.totalorder %s19, 0
      %s189 = scalar_select %p188, %s19, 0
      %s190 = smul.addr %s187, 9
      %s191 = sadd.s32 %s189, %s190
      %s192 = smul.addr %s191, 8
      %s193 = scalar_lea.vmem %s0, %s192
      %p194 = scmp.lt.s32.totalorder %s18, 1
      %s195 = scalar_select %p194, %s18, 1
      %p196 = scmp.lt.s32.totalorder %s19, 0
      %s197 = scalar_select %p196, %s19, 0
      %s198 = smul.addr %s195, 2
      %s199 = sadd.s32 %s197, %s198
      %s200 = smul.addr %s199, 8
      %s201 = scalar_lea.vmem %s3, %s200
      %v202 = vld [vmem:[%s1] sm:$0xff]
      %v203 = vld [vmem:[%s1 + $0x8] sm:$0xff]
      %v204 = vld [vmem:[%s193] sm:$0xff]
      %v205 = vld [vmem:[%s193 + $0x8] sm:$0xff]
      %v206 = vld [vmem:[%s193 + $0x10] sm:$0xff]
      %v207 = vld [vmem:[%s193 + $0x18] sm:$0xff]
      %v208 = vld [vmem:[%s193 + $0x20] sm:$0xff]
      %v209 = vld [vmem:[%s193 + $0x28] sm:$0xff]
      %v210 = vld [vmem:[%s193 + $0x30] sm:$0xff]
      %v211 = vld [vmem:[%s193 + $0x38] sm:$0xff]
      %v212 = vld [vmem:[%s193 + $0x40] sm:$0xff]
      %v213 = vld [vmem:[%s2] sm:$0xff]
      %v214 = vld [vmem:[%s2 + $0x8] sm:$0xff]
      %216 = vset.pattern.permute.xlu0 0
      %217 = vperm.xlu0 %216, %v213
      %v218 = vpop.permute.xlu0 %217
      %221 = vset.pattern.permute.xlu0 0
      %222 = vperm.xlu0 %221, %v214
      %v223 = vpop.permute.xlu0 %222
      %vm225 = vcmask 588800
      %v227 = vsel %vm225, %v202, 0
      %v230 = vsel %vm225, %v203, 0
      %232 = vmatprep.subr.mxu0 0.0
      %233 = vmatpush1.msra.mxu0 0.0
      %234 = vmatprep.subr.mxu0 0.0
      %235 = vmatpush1.msra.mxu0 0.0
      %236 = vmatprep.subr.mxu0 0.0
      %237 = vmatpush1.msra.mxu0 0.0
      %238 = vmatprep.subr.mxu0 0.0
      %239 = vmatpush1.msra.mxu0 0.0
      %240 = vmatprep.subr.mxu0 0.0
      %241 = vmatpush1.msra.mxu0 0.0
      %242 = vmatprep.subr.mxu0 0.0
      %243 = vmatpush1.msra.mxu0 0.0
      %244 = vmatprep.subr.mxu0 0.0
      %245 = vmatpush1.msra.mxu0 0.0
      %246 = vmatprep.subr.mxu0 0.0
      %247 = vmatpush1.msra.mxu0 %v212
      %248 = vmatprep.subr.mxu0 0.0
      %249 = vmatpush1.msra.mxu0 %v211
      %250 = vmatprep.subr.mxu0 0.0
      %251 = vmatpush1.msra.mxu0 %v210
      %252 = vmatprep.subr.mxu0 0.0
      %253 = vmatpush1.msra.mxu0 %v209
      %254 = vmatprep.subr.mxu0 0.0
      %255 = vmatpush1.msra.mxu0 %v208
      %256 = vmatprep.subr.mxu0 0.0
      %257 = vmatpush1.msra.mxu0 %v207
      %258 = vmatprep.subr.mxu0 0.0
      %259 = vmatpush1.msra.mxu0 %v206
      %260 = vmatprep.subr.mxu0 0.0
      %261 = vmatpush1.msra.mxu0 %v205
      %262 = vmatprep.subr.mxu0 0.0
      %263 = vmatpush1.msra.mxu0 %v204
      %264 = vmatprep.subr.mxu0 0.0
      %265 = vmatpush2.msra.mxu0 0.0
      %266 = vmatprep.subr.mxu0 0.0
      %267 = vmatpush2.msra.mxu0 0.0
      %268 = vmatprep.subr.mxu0 0.0
      %269 = vmatpush2.msra.mxu0 0.0
      %270 = vmatprep.subr.mxu0 0.0
      %271 = vmatpush2.msra.mxu0 0.0
      %272 = vmatprep.subr.mxu0 0.0
      %273 = vmatpush2.msra.mxu0 0.0
      %274 = vmatprep.subr.mxu0 0.0
      %275 = vmatpush2.msra.mxu0 0.0
      %276 = vmatprep.subr.mxu0 0.0
      %277 = vmatpush2.msra.mxu0 0.0
      %278 = vmatprep.subr.mxu0 0.0
      %279 = vmatpush2.msra.mxu0 0.0
      %280 = vmatprep.subr.mxu0 0.0
      %281 = vmatpush2.msra.mxu0 0.0
      %282 = vmatprep.subr.mxu0 0.0
      %283 = vmatpush2.msra.mxu0 0.0
      %284 = vmatprep.subr.mxu0 0.0
      %285 = vmatpush2.msra.mxu0 0.0
      %286 = vmatprep.subr.mxu0 0.0
      %287 = vmatpush2.msra.mxu0 0.0
      %288 = vmatprep.subr.mxu0 0.0
      %289 = vmatpush2.msra.mxu0 0.0
      %290 = vmatprep.subr.mxu0 0.0
      %291 = vmatpush2.msra.mxu0 0.0
      %292 = vmatprep.subr.mxu0 0.0
      %293 = vmatpush2.msra.mxu0 0.0
      %294 = vmatprep.subr.mxu0 0.0
      %295 = vmatpush2.msra.mxu0 0.0
      %296 = vmatprep.mubr.f32.mxu0 0.0
      %297 = vmatmul.mubr.f32.gmra.mxu0 %v227
      %v298 = vpop.f32.mrf.mxu0
      %v299 = vadd.f32 %v218, %v298
      %v300 = vpop.f32.mrf.mxu0
      %301 = vmatprep.mubr.f32.mxu0 0.0
      %302 = vmatmul.mubr.f32.gmra.mxu0 %v230
      %v303 = vpop.f32.mrf.mxu0
      %v304 = vadd.f32 %v223, %v303
      %v305 = vpop.f32.mrf.mxu0
      %306 = vdwg.mxu0
      %v307 = vmax.f32 %v299, 0.0
      %v308 = vmax.f32 %v304, 0.0
      %vm309 = vcmask 523264
      %310 = vst.msk [vmem:[%s201] sm:$0xff] %vm309, %v307
      %311 = vst.msk [vmem:[%s201 + $0x8] sm:$0xff] %vm309, %v308
      %p312 = scmp.lt.s32.totalorder %s18, 1
      %s313 = scalar_select %p312, %s18, 1
      %p314 = scmp.lt.s32.totalorder %s19, 0
      %s315 = scalar_select %p314, %s19, 0
      %s316 = smul.addr %s313, 2
      %s317 = sadd.s32 %s315, %s316
      %s318 = smul.addr %s317, 8
      %s319 = scalar_lea.vmem %s3, %s318
      // Predicated region
      $region33: #{ma_unet_forward.10} parent=31 // pred_check
        %p320 = pneg %p116
      $region34: #{ma_unet_forward.10} parent=31 // pred_check_branch
        %322 = sbr.rel (%p320) target = $region36
      $region35: #{ma_unet_forward.10} parent=31 // pred_region
        _
      $region36: #{ma_unet_forward.10} parent=31 // pred_fallthru
        _
    $region32: #{ma_unet_forward.10} parent=5 // pred_fallthru
      _
    %p323 = scmp.le.s32.totalorder 2, %s9
    // Predicated region
    $region37: #{ma_unet_forward.10} parent=5 // pred_check
      %p324 = pneg %p323
    $region38: #{ma_unet_forward.10} parent=5 // pred_check_branch
      %326 = sbr.rel (%p324) target = $region40
    $region39: #{ma_unet_forward.10} parent=5 // pred_region
      %s327 = ssub.s32 %s9, 2
      // Predicated region
      $region41: #{ma_unet_forward.10} parent=39 // pred_check
        %p328 = pneg %p122
      $region42: #{ma_unet_forward.10} parent=39 // pred_check_branch
        %330 = sbr.rel (%p328) target = $region44
      $region43: #{ma_unet_forward.10} parent=39 // pred_region
        %p331 = scmp.lt.s32.totalorder %s20, 1
        %s332 = scalar_select %p331, %s20, 1
        %p333 = scmp.lt.s32.totalorder %s21, 0
        %s334 = scalar_select %p333, %s21, 0
        %s335 = smul.addr %s332, 2
        %s336 = sadd.s32 %s334, %s335
        %s337 = smul.addr %s336, 8
        %s338 = scalar_lea.vmem %s3, %s337
      $region44: #{ma_unet_forward.10} parent=39 // pred_fallthru
        _
    $region40: #{ma_unet_forward.10} parent=5 // pred_fallthru
      _
  $region6: #{ma_unet_forward.10} parent=0 // loop_footer
    %s13 = sadd.s32 1, %s9
  $region7: #{ma_unet_forward.10} parent=0 // loop_footer_branch
    %8 = sbr.rel target = $region3
  $region8: #{ma_unet_forward.10} parent=0 // loop_exit
    _

// kernel: ma_unet_forward.11
$region0: #{ma_unet_forward.11}
  #allocation0 [shape = 'u32[]', space=smem, size = 0x4, offset = 0x4, fixed_abs, tag = 'smem constant byte address 0x4 - core index']
  #allocation1 [shape = 'u32[144,128]{1,0:T(1,128)}', space=vmem, size = 0x12000, scoped, tag = 'internal scratch']
  %s0 = inlined_call_operand.vmem [shape: f32[2,144,16], index: 0, kind: input, shape index: {}]
  %s1 = inlined_call_operand.vmem [shape: f32[32,144], index: 1, kind: input, shape index: {}]
  %s2 = inlined_call_operand.vmem [shape: f32[32,1], index: 2, kind: input, shape index: {}]
  %s3 = inlined_call_operand.vmem [shape: f32[2,32,16], index: 3, kind: output, shape index: {}]
  %s4 = sld [smem:[#allocation0]]
  $region45: #{ma_unet_forward.11} parent=0
    _
  %s6 = ssub.s32 1, %s4
  %s7 = scalar_select 0, %s6, %s4
  loop: start=0, step=1, limit=4
  $region2: #{ma_unet_forward.11} parent=0 // loop_pre_header
    _
  $region3: #{ma_unet_forward.11} parent=0 // loop_header
    %s9 = sphi 0, %s13
    %p10 = scmp.ge.s32.totalorder %s9, 4
    %s16 = sphi 0, %s28
    %s17 = sphi 0, %s24
    %s18 = sphi 0, %s16
    %s19 = sphi 0, %s17
    %s20 = sphi 0, %s18
    %s21 = sphi 0, %s19
    %s33 = sphi 0, %s35
    %s36 = sphi 0, %s33
    %s37 = sphi 0, %s36
    %s53 = sphi 0, %s37
    %s57 = sphi 0, %s57
    %s59 = sphi 0, %s57
    %s60 = sphi 0, %s59
    %s74 = sphi 0, %s60
    %s78 = sphi 0, %s78
    %s80 = sphi 0, %s78
    %s81 = sphi 0, %s80
    %s95 = sphi 0, %s81
    %s103 = sphi 0, %s105
    %s106 = sphi 0, %s103
    %s107 = sphi 0, %s106
    %s123 = sphi 0, %s107
  $region4: #{ma_unet_forward.11} parent=0 // loop_header_branch
    %12 = sbr.rel (%p10) target = $region8
  $region5: #{ma_unet_forward.11} parent=0 // loop_body
    %s14 = ssub.s32 %s9, 1
    %s15 = ssub.s32 %s9, 2
    %s22 = sadd.s32 1, %s17
    %p23 = scmp.ge.s32.totalorder %s22, 1
    %s24 = scalar_select %p23, 0, %s22
    %s25 = sadd.s32 1, %s16
    %s26 = scalar_select %p23, %s25, %s16
    %p27 = scmp.ge.s32.totalorder %s26, 2
    %s28 = scalar_select %p27, 0, %s26
    %s29 = ssub.s32 %s16, %s28
    %s30 = ssub.s32 %s17, %s24
    %s31 = sor.u32 %s29, %s30
    %p32 = scmp.eq.s32.totalorder %s31, 0
    %s34 = sadd.s32 %s33, 1
    %s35 = scalar_select %p32, %s33, %s34
    %p38 = pneg %p32
    %p39 = scmp.eq.s32.totalorder %s9, 1
    %p40 = por %p38, %p39
    %p41 = scmp.ne.s32.totalorder %s33, %s36
    %p42 = scmp.eq.s32.totalorder %s9, 0
    %p43 = por %p41, %p42
    %p44 = scmp.ne.s32.totalorder %s33, %s36
    %p45 = scmp.eq.s32.totalorder %s14, 1
    %p46 = por %p44, %p45
    %p47 = scmp.ne.s32.totalorder %s36, %s37
    %p48 = scmp.eq.s32.totalorder %s14, 0
    %p49 = por %p47, %p48
    %p50 = scmp.ne.s32.totalorder %s36, %s37
    %p51 = scmp.eq.s32.totalorder %s15, 1
    %p52 = por %p50, %p51
    %p54 = scmp.ne.s32.totalorder %s37, %s53
    %p55 = scmp.eq.s32.totalorder %s15, 0
    %p56 = por %p54, %p55
    %s58 = sadd.s32 %s57, 1
    %p61 = scmp.eq.s32.totalorder %s9, 1
    %p62 = scmp.ne.s32.totalorder %s57, %s59
    %p63 = scmp.eq.s32.totalorder %s9, 0
    %p64 = por %p62, %p63
    %p65 = scmp.ne.s32.totalorder %s57, %s59
    %p66 = scmp.eq.s32.totalorder %s14, 1
    %p67 = por %p65, %p66
    %p68 = scmp.ne.s32.totalorder %s59, %s60
    %p69 = scmp.eq.s32.totalorder %s14, 0
    %p70 = por %p68, %p69
    %p71 = scmp.ne.s32.totalorder %s59, %s60
    %p72 = scmp.eq.s32.totalorder %s15, 1
    %p73 = por %p71, %p72
    %p75 = scmp.ne.s32.totalorder %s60, %s74
    %p76 = scmp.eq.s32.totalorder %s15, 0
    %p77 = por %p75, %p76
    %s79 = sadd.s32 %s78, 1
    %p82 = scmp.eq.s32.totalorder %s9, 1
    %p83 = scmp.ne.s32.totalorder %s78, %s80
    %p84 = scmp.eq.s32.totalorder %s9, 0
    %p85 = por %p83, %p84
    %p86 = scmp.ne.s32.totalorder %s78, %s80
    %p87 = scmp.eq.s32.totalorder %s14, 1
    %p88 = por %p86, %p87
    %p89 = scmp.ne.s32.totalorder %s80, %s81
    %p90 = scmp.eq.s32.totalorder %s14, 0
    %p91 = por %p89, %p90
    %p92 = scmp.ne.s32.totalorder %s80, %s81
    %p93 = scmp.eq.s32.totalorder %s15, 1
    %p94 = por %p92, %p93
    %p96 = scmp.ne.s32.totalorder %s81, %s95
    %p97 = scmp.eq.s32.totalorder %s15, 0
    %p98 = por %p96, %p97
    %s99 = ssub.s32 %s16, %s28
    %s100 = ssub.s32 %s17, %s24
    %s101 = sor.u32 %s99, %s100
    %p102 = scmp.eq.s32.totalorder %s101, 0
    %s104 = sadd.s32 %s103, 1
    %s105 = scalar_select %p102, %s103, %s104
    %p108 = pneg %p102
    %p109 = scmp.eq.s32.totalorder %s9, 1
    %p110 = por %p108, %p109
    %p111 = scmp.ne.s32.totalorder %s103, %s106
    %p112 = scmp.eq.s32.totalorder %s9, 0
    %p113 = por %p111, %p112
    %p114 = scmp.ne.s32.totalorder %s103, %s106
    %p115 = scmp.eq.s32.totalorder %s14, 1
    %p116 = por %p114, %p115
    %p117 = scmp.ne.s32.totalorder %s106, %s107
    %p118 = scmp.eq.s32.totalorder %s14, 0
    %p119 = por %p117, %p118
    %p120 = scmp.ne.s32.totalorder %s106, %s107
    %p121 = scmp.eq.s32.totalorder %s15, 1
    %p122 = por %p120, %p121
    %p124 = scmp.ne.s32.totalorder %s107, %s123
    %p125 = scmp.eq.s32.totalorder %s15, 0
    %p126 = por %p124, %p125
    %p127 = scmp.le.s32.totalorder 1, %s9
    %p128 = scmp.lt.s32.totalorder %s9, 3
    %p129 = pnand %p127, %p128
    %p130 = pneg %p129
    // Predicated region
    $region9: #{ma_unet_forward.11} parent=5 // pred_check
      _
    $region10: #{ma_unet_forward.11} parent=5 // pred_check_branch
      %132 = sbr.rel (%p129) target = $region12
    $region11: #{ma_unet_forward.11} parent=5 // pred_region
      %s133 = ssub.s32 %s9, 1
      // Predicated region
      $region13: #{ma_unet_forward.11} parent=11 // pred_check
        %p134 = pneg %p70
      $region14: #{ma_unet_forward.11} parent=11 // pred_check_branch
        %136 = sbr.rel (%p134) target = $region16
      $region15: #{ma_unet_forward.11} parent=11 // pred_region
        _
      $region16: #{ma_unet_forward.11} parent=11 // pred_fallthru
        _
      // Predicated region
      $region17: #{ma_unet_forward.11} parent=11 // pred_check
        %p137 = pneg %p91
      $region18: #{ma_unet_forward.11} parent=11 // pred_check_branch
        %139 = sbr.rel (%p137) target = $region20
      $region19: #{ma_unet_forward.11} parent=11 // pred_region
        _
      $region20: #{ma_unet_forward.11} parent=11 // pred_fallthru
        _
    $region12: #{ma_unet_forward.11} parent=5 // pred_fallthru
      _
    %p140 = scmp.lt.s32.totalorder %s9, 2
    // Predicated region
    $region21: #{ma_unet_forward.11} parent=5 // pred_check
      %p141 = pneg %p140
    $region22: #{ma_unet_forward.11} parent=5 // pred_check_branch
      %143 = sbr.rel (%p141) target = $region24
    $region23: #{ma_unet_forward.11} parent=5 // pred_region
      // Predicated region
      $region25: #{ma_unet_forward.11} parent=23 // pred_check
        %p144 = pneg %p43
      $region26: #{ma_unet_forward.11} parent=23 // pred_check_branch
        %146 = sbr.rel (%p144) target = $region28
      $region27: #{ma_unet_forward.11} parent=23 // pred_region
        %p147 = scmp.lt.s32.totalorder %s16, 1
        %s148 = scalar_select %p147, %s16, 1
        %p149 = scmp.lt.s32.totalorder %s17, 0
        %s150 = scalar_select %p149, %s17, 0
        %s151 = smul.addr %s148, 18
        %s152 = sadd.s32 %s150, %s151
        %s153 = smul.addr %s152, 8
        %s154 = scalar_lea.vmem %s0, %s153
      $region28: #{ma_unet_forward.11} parent=23 // pred_fallthru
        _
    $region24: #{ma_unet_forward.11} parent=5 // pred_fallthru
      _
    %p155 = scmp.le.s32.totalorder 1, %s9
    %p156 = scmp.lt.s32.totalorder %s9, 3
    %p157 = pnand %p155, %p156
    %p158 = pneg %p157
    // Predicated region
    $region29: #{ma_unet_forward.11} parent=5 // pred_check
      _
    $region30: #{ma_unet_forward.11} parent=5 // pred_check_branch
      %160 = sbr.rel (%p157) target = $region32
    $region31: #{ma_unet_forward.11} parent=5 // pred_region
      %s161 = ssub.s32 %s9, 1
      %p162 = scmp.lt.s32.totalorder %s18, 1
      %s163 = scalar_select %p162, %s18, 1
      %p164 = scmp.lt.s32.totalorder %s19, 0
      %s165 = scalar_select %p164, %s19, 0
      %s166 = smul.addr %s163, 18
      %s167 = sadd.s32 %s165, %s166
      %s168 = smul.addr %s167, 8
      %s169 = scalar_lea.vmem %s0, %s168
      %p170 = pneg %p49
      %p171 = pneg %p46
      %p172 = pneg %p70
      %p173 = pneg %p67
      %p174 = pneg %p91
      %p175 = pneg %p88
      %p176 = pneg %p119
      %p177 = pneg %p116
      %p178 = scmp.lt.s32.totalorder %s18, 1
      %s179 = scalar_select %p178, %s18, 1
      %p180 = scmp.lt.s32.totalorder %s19, 0
      %s181 = scalar_select %p180, %s19, 0
      %s182 = smul.addr %s179, 4
      %s183 = sadd.s32 %s181, %s182
      %s184 = smul.addr %s183, 8
      %s185 = scalar_lea.vmem %s3, %s184
      %p186 = scmp.lt.s32.totalorder %s18, 1
      %s187 = scalar_select %p186, %s18, 1
      %p188 = scmp.lt.s32.totalorder %s19, 0
      %s189 = scalar_select %p188, %s19, 0
      %s190 = smul.addr %s187, 18
      %s191 = sadd.s32 %s189, %s190
      %s192 = smul.addr %s191, 8
      %s193 = scalar_lea.vmem %s0, %s192
      %p194 = scmp.lt.s32.totalorder %s18, 1
      %s195 = scalar_select %p194, %s18, 1
      %p196 = scmp.lt.s32.totalorder %s19, 0
      %s197 = scalar_select %p196, %s19, 0
      %s198 = smul.addr %s195, 4
      %s199 = sadd.s32 %s197, %s198
      %s200 = smul.addr %s199, 8
      %s201 = scalar_lea.vmem %s3, %s200
      %v202 = vld [vmem:[%s1] sm:$0xff]
      %v203 = vld [vmem:[%s1 + $0x8] sm:$0xff]
      %v204 = vld [vmem:[%s1 + $0x10] sm:$0xff]
      %v205 = vld [vmem:[%s1 + $0x18] sm:$0xff]
      %v206 = vld [vmem:[%s1 + $0x20] sm:$0xff]
      %v207 = vld [vmem:[%s1 + $0x28] sm:$0xff]
      %v208 = vld [vmem:[%s1 + $0x30] sm:$0xff]
      %v209 = vld [vmem:[%s1 + $0x38] sm:$0xff]
      %v210 = vld [vmem:[%s193] sm:$0xff]
      %v211 = vld [vmem:[%s193 + $0x8] sm:$0xff]
      %v212 = vld [vmem:[%s193 + $0x10] sm:$0xff]
      %v213 = vld [vmem:[%s193 + $0x18] sm:$0xff]
      %v214 = vld [vmem:[%s193 + $0x20] sm:$0xff]
      %v215 = vld [vmem:[%s193 + $0x28] sm:$0xff]
      %v216 = vld [vmem:[%s193 + $0x30] sm:$0xff]
      %v217 = vld [vmem:[%s193 + $0x38] sm:$0xff]
      %v218 = vld [vmem:[%s193 + $0x40] sm:$0xff]
      %v219 = vld [vmem:[%s193 + $0x48] sm:$0xff]
      %v220 = vld [vmem:[%s193 + $0x50] sm:$0xff]
      %v221 = vld [vmem:[%s193 + $0x58] sm:$0xff]
      %v222 = vld [vmem:[%s193 + $0x60] sm:$0xff]
      %v223 = vld [vmem:[%s193 + $0x68] sm:$0xff]
      %v224 = vld [vmem:[%s193 + $0x70] sm:$0xff]
      %v225 = vld [vmem:[%s193 + $0x78] sm:$0xff]
      %v226 = vld [vmem:[%s193 + $0x80] sm:$0xff]
      %v227 = vld [vmem:[%s193 + $0x88] sm:$0xff]
      %v228 = vld [vmem:[%s2] sm:$0xff]
      %v229 = vld [vmem:[%s2 + $0x8] sm:$0xff]
      %v230 = vld [vmem:[%s2 + $0x10] sm:$0xff]
      %v231 = vld [vmem:[%s2 + $0x18] sm:$0xff]
      %233 = vset.pattern.permute.xlu0 0
      %234 = vperm.xlu0 %233, %v228
      %v235 = vpop.permute.xlu0 %234
      %238 = vset.pattern.permute.xlu0 0
      %239 = vperm.xlu0 %238, %v229
      %v240 = vpop.permute.xlu0 %239
      %243 = vset.pattern.permute.xlu0 0
      %244 = vperm.xlu0 %243, %v230
      %v245 = vpop.permute.xlu0 %244
      %248 = vset.pattern.permute.xlu0 0
      %249 = vperm.xlu0 %248, %v231
      %v250 = vpop.permute.xlu0 %249
      %vm252 = vcmask 130048
      %v254 = vsel %vm252, %v203, 0
      %v257 = vsel %vm252, %v205, 0
      %v260 = vsel %vm252, %v207, 0
      %v263 = vsel %vm252, %v209, 0
      %265 = vmatprep.subr.mxu0 0.0
      %266 = vmatpush1.msra.mxu0 %v225
      %267 = vmatprep.subr.mxu0 0.0
      %268 = vmatpush1.msra.mxu0 %v224
      %269 = vmatprep.subr.mxu0 0.0
      %270 = vmatpush1.msra.mxu0 %v223
      %271 = vmatprep.subr.mxu0 0.0
      %272 = vmatpush1.msra.mxu0 %v222
      %273 = vmatprep.subr.mxu0 0.0
      %274 = vmatpush1.msra.mxu0 %v221
      %275 = vmatprep.subr.mxu0 0.0
      %276 = vmatpush1.msra.mxu0 %v220
      %277 = vmatprep.subr.mxu0 0.0
      %278 = vmatpush1.msra.mxu0 %v219
      %279 = vmatprep.subr.mxu0 0.0
      %280 = vmatpush1.msra.mxu0 %v218
      %281 = vmatprep.subr.mxu0 0.0
      %282 = vmatpush1.msra.mxu0 %v217
      %283 = vmatprep.subr.mxu0 0.0
      %284 = vmatpush1.msra.mxu0 %v216
      %285 = vmatprep.subr.mxu0 0.0
      %286 = vmatpush1.msra.mxu0 %v215
      %287 = vmatprep.subr.mxu0 0.0
      %288 = vmatpush1.msra.mxu0 %v214
      %289 = vmatprep.subr.mxu0 0.0
      %290 = vmatpush1.msra.mxu0 %v213
      %291 = vmatprep.subr.mxu0 0.0
      %292 = vmatpush1.msra.mxu0 %v212
      %293 = vmatprep.subr.mxu0 0.0
      %294 = vmatpush1.msra.mxu0 %v211
      %295 = vmatprep.subr.mxu0 0.0
      %296 = vmatpush1.msra.mxu0 %v210
      %297 = vmatprep.subr.mxu0 0.0
      %298 = vmatpush2.msra.mxu0 0.0
      %299 = vmatprep.subr.mxu0 0.0
      %300 = vmatpush2.msra.mxu0 0.0
      %301 = vmatprep.subr.mxu0 0.0
      %302 = vmatpush2.msra.mxu0 0.0
      %303 = vmatprep.subr.mxu0 0.0
      %304 = vmatpush2.msra.mxu0 0.0
      %305 = vmatprep.subr.mxu0 0.0
      %306 = vmatpush2.msra.mxu0 0.0
      %307 = vmatprep.subr.mxu0 0.0
      %308 = vmatpush2.msra.mxu0 0.0
      %309 = vmatprep.subr.mxu0 0.0
      %310 = vmatpush2.msra.mxu0 0.0
      %311 = vmatprep.subr.mxu0 0.0
      %312 = vmatpush2.msra.mxu0 0.0
      %313 = vmatprep.subr.mxu0 0.0
      %314 = vmatpush2.msra.mxu0 0.0
      %315 = vmatprep.subr.mxu0 0.0
      %316 = vmatpush2.msra.mxu0 0.0
      %317 = vmatprep.subr.mxu0 0.0
      %318 = vmatpush2.msra.mxu0 0.0
      %319 = vmatprep.subr.mxu0 0.0
      %320 = vmatpush2.msra.mxu0 0.0
      %321 = vmatprep.subr.mxu0 0.0
      %322 = vmatpush2.msra.mxu0 0.0
      %323 = vmatprep.subr.mxu0 0.0
      %324 = vmatpush2.msra.mxu0 0.0
      %325 = vmatprep.subr.mxu0 0.0
      %326 = vmatpush2.msra.mxu0 %v227
      %327 = vmatprep.subr.mxu0 0.0
      %328 = vmatpush2.msra.mxu0 %v226
      %329 = vmatprep.mubr.f32.mxu0 %v254
      %330 = vmatmul.mubr.f32.gmra.mxu0 %v202
      %v331 = vpop.f32.mrf.mxu0
      %v332 = vadd.f32 %v235, %v331
      %v333 = vpop.f32.mrf.mxu0
      %334 = vmatprep.mubr.f32.mxu0 %v257
      %335 = vmatmul.mubr.f32.gmra.mxu0 %v204
      %v336 = vpop.f32.mrf.mxu0
      %v337 = vadd.f32 %v240, %v336
      %v338 = vpop.f32.mrf.mxu0
      %339 = vmatprep.mubr.f32.mxu0 %v260
      %340 = vmatmul.mubr.f32.gmra.mxu0 %v206
      %v341 = vpop.f32.mrf.mxu0
      %v342 = vadd.f32 %v245, %v341
      %v343 = vpop.f32.mrf.mxu0
      %344 = vmatprep.mubr.f32.mxu0 %v263
      %345 = vmatmul.mubr.f32.gmra.mxu0 %v208
      %v346 = vpop.f32.mrf.mxu0
      %v347 = vadd.f32 %v250, %v346
      %v348 = vpop.f32.mrf.mxu0
      %349 = vdwg.mxu0
      %v350 = vmax.f32 %v332, 0.0
      %v351 = vmax.f32 %v337, 0.0
      %v352 = vmax.f32 %v342, 0.0
      %v353 = vmax.f32 %v347, 0.0
      %354 = vst.msk [vmem:[%s201] sm:$0xff] %vm252, %v350
      %355 = vst.msk [vmem:[%s201 + $0x8] sm:$0xff] %vm252, %v351
      %356 = vst.msk [vmem:[%s201 + $0x10] sm:$0xff] %vm252, %v352
      %357 = vst.msk [vmem:[%s201 + $0x18] sm:$0xff] %vm252, %v353
      %p358 = scmp.lt.s32.totalorder %s18, 1
      %s359 = scalar_select %p358, %s18, 1
      %p360 = scmp.lt.s32.totalorder %s19, 0
      %s361 = scalar_select %p360, %s19, 0
      %s362 = smul.addr %s359, 4
      %s363 = sadd.s32 %s361, %s362
      %s364 = smul.addr %s363, 8
      %s365 = scalar_lea.vmem %s3, %s364
      // Predicated region
      $region33: #{ma_unet_forward.11} parent=31 // pred_check
        %p366 = pneg %p116
      $region34: #{ma_unet_forward.11} parent=31 // pred_check_branch
        %368 = sbr.rel (%p366) target = $region36
      $region35: #{ma_unet_forward.11} parent=31 // pred_region
        _
      $region36: #{ma_unet_forward.11} parent=31 // pred_fallthru
        _
    $region32: #{ma_unet_forward.11} parent=5 // pred_fallthru
      _
    %p369 = scmp.le.s32.totalorder 2, %s9
    // Predicated region
    $region37: #{ma_unet_forward.11} parent=5 // pred_check
      %p370 = pneg %p369
    $region38: #{ma_unet_forward.11} parent=5 // pred_check_branch
      %372 = sbr.rel (%p370) target = $region40
    $region39: #{ma_unet_forward.11} parent=5 // pred_region
      %s373 = ssub.s32 %s9, 2
      // Predicated region
      $region41: #{ma_unet_forward.11} parent=39 // pred_check
        %p374 = pneg %p122
      $region42: #{ma_unet_forward.11} parent=39 // pred_check_branch
        %376 = sbr.rel (%p374) target = $region44
      $region43: #{ma_unet_forward.11} parent=39 // pred_region
        %p377 = scmp.lt.s32.totalorder %s20, 1
        %s378 = scalar_select %p377, %s20, 1
        %p379 = scmp.lt.s32.totalorder %s21, 0
        %s380 = scalar_select %p379, %s21, 0
        %s381 = smul.addr %s378, 4
        %s382 = sadd.s32 %s380, %s381
        %s383 = smul.addr %s382, 8
        %s384 = scalar_lea.vmem %s3, %s383
      $region44: #{ma_unet_forward.11} parent=39 // pred_fallthru
        _
    $region40: #{ma_unet_forward.11} parent=5 // pred_fallthru
      _
  $region6: #{ma_unet_forward.11} parent=0 // loop_footer
    %s13 = sadd.s32 1, %s9
  $region7: #{ma_unet_forward.11} parent=0 // loop_footer_branch
    %8 = sbr.rel target = $region3
  $region8: #{ma_unet_forward.11} parent=0 // loop_exit
    _

// kernel: ma_unet_forward.12
$region0: #{ma_unet_forward.12}
  #allocation0 [shape = 'u32[]', space=smem, size = 0x4, offset = 0x4, fixed_abs, tag = 'smem constant byte address 0x4 - core index']
  #allocation1 [shape = 'u32[144,128]{1,0:T(1,128)}', space=vmem, size = 0x12000, scoped, tag = 'internal scratch']
  %s0 = inlined_call_operand.vmem [shape: f32[2,288,16], index: 0, kind: input, shape index: {}]
  %s1 = inlined_call_operand.vmem [shape: f32[32,288], index: 1, kind: input, shape index: {}]
  %s2 = inlined_call_operand.vmem [shape: f32[32,1], index: 2, kind: input, shape index: {}]
  %s3 = inlined_call_operand.vmem [shape: f32[2,32,16], index: 3, kind: output, shape index: {}]
  %s4 = sld [smem:[#allocation0]]
  $region45: #{ma_unet_forward.12} parent=0
    _
  %s6 = ssub.s32 1, %s4
  %s7 = scalar_select 0, %s6, %s4
  loop: start=0, step=1, limit=4
  $region2: #{ma_unet_forward.12} parent=0 // loop_pre_header
    _
  $region3: #{ma_unet_forward.12} parent=0 // loop_header
    %s9 = sphi 0, %s13
    %p10 = scmp.ge.s32.totalorder %s9, 4
    %s16 = sphi 0, %s28
    %s17 = sphi 0, %s24
    %s18 = sphi 0, %s16
    %s19 = sphi 0, %s17
    %s20 = sphi 0, %s18
    %s21 = sphi 0, %s19
    %s33 = sphi 0, %s35
    %s36 = sphi 0, %s33
    %s37 = sphi 0, %s36
    %s53 = sphi 0, %s37
    %s57 = sphi 0, %s57
    %s59 = sphi 0, %s57
    %s60 = sphi 0, %s59
    %s74 = sphi 0, %s60
    %s78 = sphi 0, %s78
    %s80 = sphi 0, %s78
    %s81 = sphi 0, %s80
    %s95 = sphi 0, %s81
    %s103 = sphi 0, %s105
    %s106 = sphi 0, %s103
    %s107 = sphi 0, %s106
    %s123 = sphi 0, %s107
  $region4: #{ma_unet_forward.12} parent=0 // loop_header_branch
    %12 = sbr.rel (%p10) target = $region8
  $region5: #{ma_unet_forward.12} parent=0 // loop_body
    %s14 = ssub.s32 %s9, 1
    %s15 = ssub.s32 %s9, 2
    %s22 = sadd.s32 1, %s17
    %p23 = scmp.ge.s32.totalorder %s22, 1
    %s24 = scalar_select %p23, 0, %s22
    %s25 = sadd.s32 1, %s16
    %s26 = scalar_select %p23, %s25, %s16
    %p27 = scmp.ge.s32.totalorder %s26, 2
    %s28 = scalar_select %p27, 0, %s26
    %s29 = ssub.s32 %s16, %s28
    %s30 = ssub.s32 %s17, %s24
    %s31 = sor.u32 %s29, %s30
    %p32 = scmp.eq.s32.totalorder %s31, 0
    %s34 = sadd.s32 %s33, 1
    %s35 = scalar_select %p32, %s33, %s34
    %p38 = pneg %p32
    %p39 = scmp.eq.s32.totalorder %s9, 1
    %p40 = por %p38, %p39
    %p41 = scmp.ne.s32.totalorder %s33, %s36
    %p42 = scmp.eq.s32.totalorder %s9, 0
    %p43 = por %p41, %p42
    %p44 = scmp.ne.s32.totalorder %s33, %s36
    %p45 = scmp.eq.s32.totalorder %s14, 1
    %p46 = por %p44, %p45
    %p47 = scmp.ne.s32.totalorder %s36, %s37
    %p48 = scmp.eq.s32.totalorder %s14, 0
    %p49 = por %p47, %p48
    %p50 = scmp.ne.s32.totalorder %s36, %s37
    %p51 = scmp.eq.s32.totalorder %s15, 1
    %p52 = por %p50, %p51
    %p54 = scmp.ne.s32.totalorder %s37, %s53
    %p55 = scmp.eq.s32.totalorder %s15, 0
    %p56 = por %p54, %p55
    %s58 = sadd.s32 %s57, 1
    %p61 = scmp.eq.s32.totalorder %s9, 1
    %p62 = scmp.ne.s32.totalorder %s57, %s59
    %p63 = scmp.eq.s32.totalorder %s9, 0
    %p64 = por %p62, %p63
    %p65 = scmp.ne.s32.totalorder %s57, %s59
    %p66 = scmp.eq.s32.totalorder %s14, 1
    %p67 = por %p65, %p66
    %p68 = scmp.ne.s32.totalorder %s59, %s60
    %p69 = scmp.eq.s32.totalorder %s14, 0
    %p70 = por %p68, %p69
    %p71 = scmp.ne.s32.totalorder %s59, %s60
    %p72 = scmp.eq.s32.totalorder %s15, 1
    %p73 = por %p71, %p72
    %p75 = scmp.ne.s32.totalorder %s60, %s74
    %p76 = scmp.eq.s32.totalorder %s15, 0
    %p77 = por %p75, %p76
    %s79 = sadd.s32 %s78, 1
    %p82 = scmp.eq.s32.totalorder %s9, 1
    %p83 = scmp.ne.s32.totalorder %s78, %s80
    %p84 = scmp.eq.s32.totalorder %s9, 0
    %p85 = por %p83, %p84
    %p86 = scmp.ne.s32.totalorder %s78, %s80
    %p87 = scmp.eq.s32.totalorder %s14, 1
    %p88 = por %p86, %p87
    %p89 = scmp.ne.s32.totalorder %s80, %s81
    %p90 = scmp.eq.s32.totalorder %s14, 0
    %p91 = por %p89, %p90
    %p92 = scmp.ne.s32.totalorder %s80, %s81
    %p93 = scmp.eq.s32.totalorder %s15, 1
    %p94 = por %p92, %p93
    %p96 = scmp.ne.s32.totalorder %s81, %s95
    %p97 = scmp.eq.s32.totalorder %s15, 0
    %p98 = por %p96, %p97
    %s99 = ssub.s32 %s16, %s28
    %s100 = ssub.s32 %s17, %s24
    %s101 = sor.u32 %s99, %s100
    %p102 = scmp.eq.s32.totalorder %s101, 0
    %s104 = sadd.s32 %s103, 1
    %s105 = scalar_select %p102, %s103, %s104
    %p108 = pneg %p102
    %p109 = scmp.eq.s32.totalorder %s9, 1
    %p110 = por %p108, %p109
    %p111 = scmp.ne.s32.totalorder %s103, %s106
    %p112 = scmp.eq.s32.totalorder %s9, 0
    %p113 = por %p111, %p112
    %p114 = scmp.ne.s32.totalorder %s103, %s106
    %p115 = scmp.eq.s32.totalorder %s14, 1
    %p116 = por %p114, %p115
    %p117 = scmp.ne.s32.totalorder %s106, %s107
    %p118 = scmp.eq.s32.totalorder %s14, 0
    %p119 = por %p117, %p118
    %p120 = scmp.ne.s32.totalorder %s106, %s107
    %p121 = scmp.eq.s32.totalorder %s15, 1
    %p122 = por %p120, %p121
    %p124 = scmp.ne.s32.totalorder %s107, %s123
    %p125 = scmp.eq.s32.totalorder %s15, 0
    %p126 = por %p124, %p125
    %p127 = scmp.le.s32.totalorder 1, %s9
    %p128 = scmp.lt.s32.totalorder %s9, 3
    %p129 = pnand %p127, %p128
    %p130 = pneg %p129
    // Predicated region
    $region9: #{ma_unet_forward.12} parent=5 // pred_check
      _
    $region10: #{ma_unet_forward.12} parent=5 // pred_check_branch
      %132 = sbr.rel (%p129) target = $region12
    $region11: #{ma_unet_forward.12} parent=5 // pred_region
      %s133 = ssub.s32 %s9, 1
      // Predicated region
      $region13: #{ma_unet_forward.12} parent=11 // pred_check
        %p134 = pneg %p70
      $region14: #{ma_unet_forward.12} parent=11 // pred_check_branch
        %136 = sbr.rel (%p134) target = $region16
      $region15: #{ma_unet_forward.12} parent=11 // pred_region
        _
      $region16: #{ma_unet_forward.12} parent=11 // pred_fallthru
        _
      // Predicated region
      $region17: #{ma_unet_forward.12} parent=11 // pred_check
        %p137 = pneg %p91
      $region18: #{ma_unet_forward.12} parent=11 // pred_check_branch
        %139 = sbr.rel (%p137) target = $region20
      $region19: #{ma_unet_forward.12} parent=11 // pred_region
        _
      $region20: #{ma_unet_forward.12} parent=11 // pred_fallthru
        _
    $region12: #{ma_unet_forward.12} parent=5 // pred_fallthru
      _
    %p140 = scmp.lt.s32.totalorder %s9, 2
    // Predicated region
    $region21: #{ma_unet_forward.12} parent=5 // pred_check
      %p141 = pneg %p140
    $region22: #{ma_unet_forward.12} parent=5 // pred_check_branch
      %143 = sbr.rel (%p141) target = $region24
    $region23: #{ma_unet_forward.12} parent=5 // pred_region
      // Predicated region
      $region25: #{ma_unet_forward.12} parent=23 // pred_check
        %p144 = pneg %p43
      $region26: #{ma_unet_forward.12} parent=23 // pred_check_branch
        %146 = sbr.rel (%p144) target = $region28
      $region27: #{ma_unet_forward.12} parent=23 // pred_region
        %p147 = scmp.lt.s32.totalorder %s16, 1
        %s148 = scalar_select %p147, %s16, 1
        %p149 = scmp.lt.s32.totalorder %s17, 0
        %s150 = scalar_select %p149, %s17, 0
        %s151 = smul.addr %s148, 36
        %s152 = sadd.s32 %s150, %s151
        %s153 = smul.addr %s152, 8
        %s154 = scalar_lea.vmem %s0, %s153
      $region28: #{ma_unet_forward.12} parent=23 // pred_fallthru
        _
    $region24: #{ma_unet_forward.12} parent=5 // pred_fallthru
      _
    %p155 = scmp.le.s32.totalorder 1, %s9
    %p156 = scmp.lt.s32.totalorder %s9, 3
    %p157 = pnand %p155, %p156
    %p158 = pneg %p157
    // Predicated region
    $region29: #{ma_unet_forward.12} parent=5 // pred_check
      _
    $region30: #{ma_unet_forward.12} parent=5 // pred_check_branch
      %160 = sbr.rel (%p157) target = $region32
    $region31: #{ma_unet_forward.12} parent=5 // pred_region
      %s161 = ssub.s32 %s9, 1
      %p162 = scmp.lt.s32.totalorder %s18, 1
      %s163 = scalar_select %p162, %s18, 1
      %p164 = scmp.lt.s32.totalorder %s19, 0
      %s165 = scalar_select %p164, %s19, 0
      %s166 = smul.addr %s163, 36
      %s167 = sadd.s32 %s165, %s166
      %s168 = smul.addr %s167, 8
      %s169 = scalar_lea.vmem %s0, %s168
      %p170 = pneg %p49
      %p171 = pneg %p46
      %p172 = pneg %p70
      %p173 = pneg %p67
      %p174 = pneg %p91
      %p175 = pneg %p88
      %p176 = pneg %p119
      %p177 = pneg %p116
      %p178 = scmp.lt.s32.totalorder %s18, 1
      %s179 = scalar_select %p178, %s18, 1
      %p180 = scmp.lt.s32.totalorder %s19, 0
      %s181 = scalar_select %p180, %s19, 0
      %s182 = smul.addr %s179, 4
      %s183 = sadd.s32 %s181, %s182
      %s184 = smul.addr %s183, 8
      %s185 = scalar_lea.vmem %s3, %s184
      %p186 = scmp.lt.s32.totalorder %s18, 1
      %s187 = scalar_select %p186, %s18, 1
      %p188 = scmp.lt.s32.totalorder %s19, 0
      %s189 = scalar_select %p188, %s19, 0
      %s190 = smul.addr %s187, 36
      %s191 = sadd.s32 %s189, %s190
      %s192 = smul.addr %s191, 8
      %s193 = scalar_lea.vmem %s0, %s192
      %p194 = scmp.lt.s32.totalorder %s18, 1
      %s195 = scalar_select %p194, %s18, 1
      %p196 = scmp.lt.s32.totalorder %s19, 0
      %s197 = scalar_select %p196, %s19, 0
      %s198 = smul.addr %s195, 4
      %s199 = sadd.s32 %s197, %s198
      %s200 = smul.addr %s199, 8
      %s201 = scalar_lea.vmem %s3, %s200
      %v202 = vld [vmem:[%s1] sm:$0xff]
      %v203 = vld [vmem:[%s1 + $0x8] sm:$0xff]
      %v204 = vld [vmem:[%s1 + $0x10] sm:$0xff]
      %v205 = vld [vmem:[%s1 + $0x18] sm:$0xff]
      %v206 = vld [vmem:[%s1 + $0x20] sm:$0xff]
      %v207 = vld [vmem:[%s1 + $0x28] sm:$0xff]
      %v208 = vld [vmem:[%s1 + $0x30] sm:$0xff]
      %v209 = vld [vmem:[%s1 + $0x38] sm:$0xff]
      %v210 = vld [vmem:[%s1 + $0x40] sm:$0xff]
      %v211 = vld [vmem:[%s1 + $0x48] sm:$0xff]
      %v212 = vld [vmem:[%s1 + $0x50] sm:$0xff]
      %v213 = vld [vmem:[%s1 + $0x58] sm:$0xff]
      %v214 = vld [vmem:[%s193] sm:$0xff]
      %v215 = vld [vmem:[%s193 + $0x8] sm:$0xff]
      %v216 = vld [vmem:[%s193 + $0x10] sm:$0xff]
      %v217 = vld [vmem:[%s193 + $0x18] sm:$0xff]
      %v218 = vld [vmem:[%s193 + $0x20] sm:$0xff]
      %v219 = vld [vmem:[%s193 + $0x28] sm:$0xff]
      %v220 = vld [vmem:[%s193 + $0x30] sm:$0xff]
      %v221 = vld [vmem:[%s193 + $0x38] sm:$0xff]
      %v222 = vld [vmem:[%s193 + $0x40] sm:$0xff]
      %v223 = vld [vmem:[%s193 + $0x48] sm:$0xff]
      %v224 = vld [vmem:[%s193 + $0x50] sm:$0xff]
      %v225 = vld [vmem:[%s193 + $0x58] sm:$0xff]
      %v226 = vld [vmem:[%s193 + $0x60] sm:$0xff]
      %v227 = vld [vmem:[%s193 + $0x68] sm:$0xff]
      %v228 = vld [vmem:[%s193 + $0x70] sm:$0xff]
      %v229 = vld [vmem:[%s193 + $0x78] sm:$0xff]
      %v230 = vld [vmem:[%s193 + $0x80] sm:$0xff]
      %v231 = vld [vmem:[%s193 + $0x88] sm:$0xff]
      %v232 = vld [vmem:[%s193 + $0x90] sm:$0xff]
      %v233 = vld [vmem:[%s193 + $0x98] sm:$0xff]
      %v234 = vld [vmem:[%s193 + $0xa0] sm:$0xff]
      %v235 = vld [vmem:[%s193 + $0xa8] sm:$0xff]
      %v236 = vld [vmem:[%s193 + $0xb0] sm:$0xff]
      %v237 = vld [vmem:[%s193 + $0xb8] sm:$0xff]
      %v238 = vld [vmem:[%s193 + $0xc0] sm:$0xff]
      %v239 = vld [vmem:[%s193 + $0xc8] sm:$0xff]
      %v240 = vld [vmem:[%s193 + $0xd0] sm:$0xff]
      %v241 = vld [vmem:[%s193 + $0xd8] sm:$0xff]
      %v242 = vld [vmem:[%s193 + $0xe0] sm:$0xff]
      %v243 = vld [vmem:[%s193 + $0xe8] sm:$0xff]
      %v244 = vld [vmem:[%s193 + $0xf0] sm:$0xff]
      %v245 = vld [vmem:[%s193 + $0xf8] sm:$0xff]
      %v246 = vld [vmem:[%s193 + $0x100] sm:$0xff]
      %v247 = vld [vmem:[%s193 + $0x108] sm:$0xff]
      %v248 = vld [vmem:[%s193 + $0x110] sm:$0xff]
      %v249 = vld [vmem:[%s193 + $0x118] sm:$0xff]
      %v250 = vld [vmem:[%s2] sm:$0xff]
      %v251 = vld [vmem:[%s2 + $0x8] sm:$0xff]
      %v252 = vld [vmem:[%s2 + $0x10] sm:$0xff]
      %v253 = vld [vmem:[%s2 + $0x18] sm:$0xff]
      %255 = vset.pattern.permute.xlu0 0
      %256 = vperm.xlu0 %255, %v250
      %v257 = vpop.permute.xlu0 %256
      %260 = vset.pattern.permute.xlu0 0
      %261 = vperm.xlu0 %260, %v251
      %v262 = vpop.permute.xlu0 %261
      %265 = vset.pattern.permute.xlu0 0
      %266 = vperm.xlu0 %265, %v252
      %v267 = vpop.permute.xlu0 %266
      %270 = vset.pattern.permute.xlu0 0
      %271 = vperm.xlu0 %270, %v253
      %v272 = vpop.permute.xlu0 %271
      %vm274 = vcmask 261120
      %v276 = vsel %vm274, %v204, 0
      %v279 = vsel %vm274, %v207, 0
      %v282 = vsel %vm274, %v210, 0
      %v285 = vsel %vm274, %v213, 0
      %287 = vmatprep.subr.mxu0 0.0
      %288 = vmatpush1.msra.mxu0 %v229
      %289 = vmatprep.subr.mxu0 0.0
      %290 = vmatpush1.msra.mxu0 %v228
      %291 = vmatprep.subr.mxu0 0.0
      %292 = vmatpush1.msra.mxu0 %v227
      %293 = vmatprep.subr.mxu0 0.0
      %294 = vmatpush1.msra.mxu0 %v226
      %295 = vmatprep.subr.mxu0 0.0
      %296 = vmatpush1.msra.mxu0 %v225
      %297 = vmatprep.subr.mxu0 0.0
      %298 = vmatpush1.msra.mxu0 %v224
      %299 = vmatprep.subr.mxu0 0.0
      %300 = vmatpush1.msra.mxu0 %v223
      %301 = vmatprep.subr.mxu0 0.0
      %302 = vmatpush1.msra.mxu0 %v222
      %303 = vmatprep.subr.mxu0 0.0
      %304 = vmatpush1.msra.mxu0 %v221
      %305 = vmatprep.subr.mxu0 0.0
      %306 = vmatpush1.msra.mxu0 %v220
      %307 = vmatprep.subr.mxu0 0.0
      %308 = vmatpush1.msra.mxu0 %v219
      %309 = vmatprep.subr.mxu0 0.0
      %310 = vmatpush1.msra.mxu0 %v218
      %311 = vmatprep.subr.mxu0 0.0
      %312 = vmatpush1.msra.mxu0 %v217
      %313 = vmatprep.subr.mxu0 0.0
      %314 = vmatpush1.msra.mxu0 %v216
      %315 = vmatprep.subr.mxu0 0.0
      %316 = vmatpush1.msra.mxu0 %v215
      %317 = vmatprep.subr.mxu0 0.0
      %318 = vmatpush1.msra.mxu0 %v214
      %319 = vmatprep.subr.mxu0 0.0
      %320 = vmatpush2.msra.mxu0 %v245
      %321 = vmatprep.subr.mxu0 0.0
      %322 = vmatpush2.msra.mxu0 %v244
      %323 = vmatprep.subr.mxu0 0.0
      %324 = vmatpush2.msra.mxu0 %v243
      %325 = vmatprep.subr.mxu0 0.0
      %326 = vmatpush2.msra.mxu0 %v242
      %327 = vmatprep.subr.mxu0 0.0
      %328 = vmatpush2.msra.mxu0 %v241
      %329 = vmatprep.subr.mxu0 0.0
      %330 = vmatpush2.msra.mxu0 %v240
      %331 = vmatprep.subr.mxu0 0.0
      %332 = vmatpush2.msra.mxu0 %v239
      %333 = vmatprep.subr.mxu0 0.0
      %334 = vmatpush2.msra.mxu0 %v238
      %335 = vmatprep.subr.mxu0 0.0
      %336 = vmatpush2.msra.mxu0 %v237
      %337 = vmatprep.subr.mxu0 0.0
      %338 = vmatpush2.msra.mxu0 %v236
      %339 = vmatprep.subr.mxu0 0.0
      %340 = vmatpush2.msra.mxu0 %v235
      %341 = vmatprep.subr.mxu0 0.0
      %342 = vmatpush2.msra.mxu0 %v234
      %343 = vmatprep.subr.mxu0 0.0
      %344 = vmatpush2.msra.mxu0 %v233
      %345 = vmatprep.subr.mxu0 0.0
      %346 = vmatpush2.msra.mxu0 %v232
      %347 = vmatprep.subr.mxu0 0.0
      %348 = vmatpush2.msra.mxu0 %v231
      %349 = vmatprep.subr.mxu0 0.0
      %350 = vmatpush2.msra.mxu0 %v230
      %351 = vmatprep.mubr.f32.mxu0 %v203
      %352 = vmatmul.mubr.f32.gmra.mxu0 %v202
      %v353 = vpop.f32.mrf.mxu0
      %v354 = vadd.f32 %v257, %v353
      %v355 = vpop.f32.mrf.mxu0
      %356 = vmatprep.mubr.f32.mxu0 %v206
      %357 = vmatmul.mubr.f32.gmra.mxu0 %v205
      %v358 = vpop.f32.mrf.mxu0
      %v359 = vadd.f32 %v262, %v358
      %v360 = vpop.f32.mrf.mxu0
      %361 = vmatprep.mubr.f32.mxu0 %v209
      %362 = vmatmul.mubr.f32.gmra.mxu0 %v208
      %v363 = vpop.f32.mrf.mxu0
      %v364 = vadd.f32 %v267, %v363
      %v365 = vpop.f32.mrf.mxu0
      %366 = vmatprep.mubr.f32.mxu0 %v212
      %367 = vmatmul.mubr.f32.gmra.mxu0 %v211
      %v368 = vpop.f32.mrf.mxu0
      %v369 = vadd.f32 %v272, %v368
      %v370 = vpop.f32.mrf.mxu0
      %371 = vdwg.mxu0
      %372 = vmatprep.subr.mxu0 0.0
      %373 = vmatpush1.msra.mxu0 0.0
      %374 = vmatprep.subr.mxu0 0.0
      %375 = vmatpush1.msra.mxu0 0.0
      %376 = vmatprep.subr.mxu0 0.0
      %377 = vmatpush1.msra.mxu0 0.0
      %378 = vmatprep.subr.mxu0 0.0
      %379 = vmatpush1.msra.mxu0 0.0
      %380 = vmatprep.subr.mxu0 0.0
      %381 = vmatpush1.msra.mxu0 0.0
      %382 = vmatprep.subr.mxu0 0.0
      %383 = vmatpush1.msra.mxu0 0.0
      %384 = vmatprep.subr.mxu0 0.0
      %385 = vmatpush1.msra.mxu0 0.0
      %386 = vmatprep.subr.mxu0 0.0
      %387 = vmatpush1.msra.mxu0 0.0
      %388 = vmatprep.subr.mxu0 0.0
      %389 = vmatpush1.msra.mxu0 0.0
      %390 = vmatprep.subr.mxu0 0.0
      %391 = vmatpush1.msra.mxu0 0.0
      %392 = vmatprep.subr.mxu0 0.0
      %393 = vmatpush1.msra.mxu0 0.0
      %394 = vmatprep.subr.mxu0 0.0
      %395 = vmatpush1.msra.mxu0 0.0
      %396 = vmatprep.subr.mxu0 0.0
      %397 = vmatpush1.msra.mxu0 %v249
      %398 = vmatprep.subr.mxu0 0.0
      %399 = vmatpush1.msra.mxu0 %v248
      %400 = vmatprep.subr.mxu0 0.0
      %401 = vmatpush1.msra.mxu0 %v247
      %402 = vmatprep.subr.mxu0 0.0
      %403 = vmatpush1.msra.mxu0 %v246
      %404 = vmatprep.subr.mxu0 0.0
      %405 = vmatpush2.msra.mxu0 0.0
      %406 = vmatprep.subr.mxu0 0.0
      %407 = vmatpush2.msra.mxu0 0.0
      %408 = vmatprep.subr.mxu0 0.0
      %409 = vmatpush2.msra.mxu0 0.0
      %410 = vmatprep.subr.mxu0 0.0
      %411 = vmatpush2.msra.mxu0 0.0
      %412 = vmatprep.subr.mxu0 0.0
      %413 = vmatpush2.msra.mxu0 0.0
      %414 = vmatprep.subr.mxu0 0.0
      %415 = vmatpush2.msra.mxu0 0.0
      %416 = vmatprep.subr.mxu0 0.0
      %417 = vmatpush2.msra.mxu0 0.0
      %418 = vmatprep.subr.mxu0 0.0
      %419 = vmatpush2.msra.mxu0 0.0
      %420 = vmatprep.subr.mxu0 0.0
      %421 = vmatpush2.msra.mxu0 0.0
      %422 = vmatprep.subr.mxu0 0.0
      %423 = vmatpush2.msra.mxu0 0.0
      %424 = vmatprep.subr.mxu0 0.0
      %425 = vmatpush2.msra.mxu0 0.0
      %426 = vmatprep.subr.mxu0 0.0
      %427 = vmatpush2.msra.mxu0 0.0
      %428 = vmatprep.subr.mxu0 0.0
      %429 = vmatpush2.msra.mxu0 0.0
      %430 = vmatprep.subr.mxu0 0.0
      %431 = vmatpush2.msra.mxu0 0.0
      %432 = vmatprep.subr.mxu0 0.0
      %433 = vmatpush2.msra.mxu0 0.0
      %434 = vmatprep.subr.mxu0 0.0
      %435 = vmatpush2.msra.mxu0 0.0
      %436 = vmatprep.mubr.f32.mxu0 0.0
      %437 = vmatmul.mubr.f32.gmra.mxu0 %v276
      %v438 = vpop.f32.mrf.mxu0
      %v439 = vadd.f32 %v354, %v438
      %v440 = vpop.f32.mrf.mxu0
      %441 = vmatprep.mubr.f32.mxu0 0.0
      %442 = vmatmul.mubr.f32.gmra.mxu0 %v279
      %v443 = vpop.f32.mrf.mxu0
      %v444 = vadd.f32 %v359, %v443
      %v445 = vpop.f32.mrf.mxu0
      %446 = vmatprep.mubr.f32.mxu0 0.0
      %447 = vmatmul.mubr.f32.gmra.mxu0 %v282
      %v448 = vpop.f32.mrf.mxu0
      %v449 = vadd.f32 %v364, %v448
      %v450 = vpop.f32.mrf.mxu0
      %451 = vmatprep.mubr.f32.mxu0 0.0
      %452 = vmatmul.mubr.f32.gmra.mxu0 %v285
      %v453 = vpop.f32.mrf.mxu0
      %v454 = vadd.f32 %v369, %v453
      %v455 = vpop.f32.mrf.mxu0
      %456 = vdwg.mxu0
      %v457 = vmax.f32 %v439, 0.0
      %v458 = vmax.f32 %v444, 0.0
      %v459 = vmax.f32 %v449, 0.0
      %v460 = vmax.f32 %v454, 0.0
      %vm461 = vcmask 130048
      %462 = vst.msk [vmem:[%s201] sm:$0xff] %vm461, %v457
      %463 = vst.msk [vmem:[%s201 + $0x8] sm:$0xff] %vm461, %v458
      %464 = vst.msk [vmem:[%s201 + $0x10] sm:$0xff] %vm461, %v459
      %465 = vst.msk [vmem:[%s201 + $0x18] sm:$0xff] %vm461, %v460
      %p466 = scmp.lt.s32.totalorder %s18, 1
      %s467 = scalar_select %p466, %s18, 1
      %p468 = scmp.lt.s32.totalorder %s19, 0
      %s469 = scalar_select %p468, %s19, 0
      %s470 = smul.addr %s467, 4
      %s471 = sadd.s32 %s469, %s470
      %s472 = smul.addr %s471, 8
      %s473 = scalar_lea.vmem %s3, %s472
      // Predicated region
      $region33: #{ma_unet_forward.12} parent=31 // pred_check
        %p474 = pneg %p116
      $region34: #{ma_unet_forward.12} parent=31 // pred_check_branch
        %476 = sbr.rel (%p474) target = $region36
      $region35: #{ma_unet_forward.12} parent=31 // pred_region
        _
      $region36: #{ma_unet_forward.12} parent=31 // pred_fallthru
        _
    $region32: #{ma_unet_forward.12} parent=5 // pred_fallthru
      _
    %p477 = scmp.le.s32.totalorder 2, %s9
    // Predicated region
    $region37: #{ma_unet_forward.12} parent=5 // pred_check
      %p478 = pneg %p477
    $region38: #{ma_unet_forward.12} parent=5 // pred_check_branch
      %480 = sbr.rel (%p478) target = $region40
    $region39: #{ma_unet_forward.12} parent=5 // pred_region
      %s481 = ssub.s32 %s9, 2
      // Predicated region
      $region41: #{ma_unet_forward.12} parent=39 // pred_check
        %p482 = pneg %p122
      $region42: #{ma_unet_forward.12} parent=39 // pred_check_branch
        %484 = sbr.rel (%p482) target = $region44
      $region43: #{ma_unet_forward.12} parent=39 // pred_region
        %p485 = scmp.lt.s32.totalorder %s20, 1
        %s486 = scalar_select %p485, %s20, 1
        %p487 = scmp.lt.s32.totalorder %s21, 0
        %s488 = scalar_select %p487, %s21, 0
        %s489 = smul.addr %s486, 4
        %s490 = sadd.s32 %s488, %s489
        %s491 = smul.addr %s490, 8
        %s492 = scalar_lea.vmem %s3, %s491
      $region44: #{ma_unet_forward.12} parent=39 // pred_fallthru
        _
    $region40: #{ma_unet_forward.12} parent=5 // pred_fallthru
      _
  $region6: #{ma_unet_forward.12} parent=0 // loop_footer
    %s13 = sadd.s32 1, %s9
  $region7: #{ma_unet_forward.12} parent=0 // loop_footer_branch
    %8 = sbr.rel target = $region3
  $region8: #{ma_unet_forward.12} parent=0 // loop_exit
    _

// kernel: ma_unet_forward.13
$region0: #{ma_unet_forward.13}
  #allocation0 [shape = 'u32[]', space=smem, size = 0x4, offset = 0x4, fixed_abs, tag = 'smem constant byte address 0x4 - core index']
  #allocation1 [shape = 'u32[144,128]{1,0:T(1,128)}', space=vmem, size = 0x12000, scoped, tag = 'internal scratch']
  #allocation2 [shape = 'f32[1,1]{1,0:T(1,128)S(1)}', space=vmem, size = 0x200, scoped, tag = 'scoped memory for ma_unet_forward.13']
  %s0 = inlined_call_operand.vmem [shape: f32[2,32,64], index: 0, kind: input, shape index: {}]
  %s1 = inlined_call_operand.vmem [shape: f32[2,16,64], index: 1, kind: input, shape index: {}]
  %s2 = inlined_call_operand.vmem [shape: f32[16,32], index: 2, kind: input, shape index: {}]
  %s3 = inlined_call_operand.vmem [shape: f32[16,1], index: 3, kind: input, shape index: {}]
  %s4 = inlined_call_operand.vmem [shape: f32[16,16], index: 4, kind: input, shape index: {}]
  %s5 = inlined_call_operand.vmem [shape: f32[1,16], index: 5, kind: input, shape index: {}]
  %s6 = inlined_call_operand.<no memory space> [shape: f32[1,1], index: 6, kind: input, shape index: {}]
  %s7 = inlined_call_operand.vmem [shape: f32[2,16,64], index: 7, kind: output, shape index: {}]
  %s8 = sld [smem:[#allocation0]]
  $region61: #{ma_unet_forward.13} parent=0
    _
  %s10 = ssub.s32 1, %s8
  %s11 = scalar_select 0, %s10, %s8
  %v12 = vstv %s6
  %13 = vst [vmem:[#allocation2] sm:$0x1] %v12
  loop: start=0, step=1, limit=4
  $region2: #{ma_unet_forward.13} parent=0 // loop_pre_header
    _
  $region3: #{ma_unet_forward.13} parent=0 // loop_header
    %s15 = sphi 0, %s19
    %p16 = scmp.ge.s32.totalorder %s15, 4
    %s22 = sphi 0, %s34
    %s23 = sphi 0, %s30
    %s24 = sphi 0, %s22
    %s25 = sphi 0, %s23
    %s26 = sphi 0, %s24
    %s27 = sphi 0, %s25
    %s39 = sphi 0, %s41
    %s42 = sphi 0, %s39
    %s43 = sphi 0, %s42
    %s59 = sphi 0, %s43
    %s67 = sphi 0, %s69
    %s70 = sphi 0, %s67
    %s71 = sphi 0, %s70
    %s87 = sphi 0, %s71
    %s91 = sphi 0, %s91
    %s93 = sphi 0, %s91
    %s94 = sphi 0, %s93
    %s108 = sphi 0, %s94
    %s112 = sphi 0, %s112
    %s114 = sphi 0, %s112
    %s115 = sphi 0, %s114
    %s129 = sphi 0, %s115
    %s133 = sphi 0, %s133
    %s135 = sphi 0, %s133
    %s136 = sphi 0, %s135
    %s150 = sphi 0, %s136
    %s154 = sphi 0, %s154
    %s156 = sphi 0, %s154
    %s157 = sphi 0, %s156
    %s171 = sphi 0, %s157
    %s175 = sphi 0, %s175
    %s177 = sphi 0, %s175
    %s178 = sphi 0, %s177
    %s192 = sphi 0, %s178
    %s200 = sphi 0, %s202
    %s203 = sphi 0, %s200
    %s204 = sphi 0, %s203
    %s220 = sphi 0, %s204
  $region4: #{ma_unet_forward.13} parent=0 // loop_header_branch
    %18 = sbr.rel (%p16) target = $region8
  $region5: #{ma_unet_forward.13} parent=0 // loop_body
    %s20 = ssub.s32 %s15, 1
    %s21 = ssub.s32 %s15, 2
    %s28 = sadd.s32 1, %s23
    %p29 = scmp.ge.s32.totalorder %s28, 1
    %s30 = scalar_select %p29, 0, %s28
    %s31 = sadd.s32 1, %s22
    %s32 = scalar_select %p29, %s31, %s22
    %p33 = scmp.ge.s32.totalorder %s32, 2
    %s34 = scalar_select %p33, 0, %s32
    %s35 = ssub.s32 %s22, %s34
    %s36 = ssub.s32 %s23, %s30
    %s37 = sor.u32 %s35, %s36
    %p38 = scmp.eq.s32.totalorder %s37, 0
    %s40 = sadd.s32 %s39, 1
    %s41 = scalar_select %p38, %s39, %s40
    %p44 = pneg %p38
    %p45 = scmp.eq.s32.totalorder %s15, 1
    %p46 = por %p44, %p45
    %p47 = scmp.ne.s32.totalorder %s39, %s42
    %p48 = scmp.eq.s32.totalorder %s15, 0
    %p49 = por %p47, %p48
    %p50 = scmp.ne.s32.totalorder %s39, %s42
    %p51 = scmp.eq.s32.totalorder %s20, 1
    %p52 = por %p50, %p51
    %p53 = scmp.ne.s32.totalorder %s42, %s43
    %p54 = scmp.eq.s32.totalorder %s20, 0
    %p55 = por %p53, %p54
    %p56 = scmp.ne.s32.totalorder %s42, %s43
    %p57 = scmp.eq.s32.totalorder %s21, 1
    %p58 = por %p56, %p57
    %p60 = scmp.ne.s32.totalorder %s43, %s59
    %p61 = scmp.eq.s32.totalorder %s21, 0
    %p62 = por %p60, %p61
    %s63 = ssub.s32 %s22, %s34
    %s64 = ssub.s32 %s23, %s30
    %s65 = sor.u32 %s63, %s64
    %p66 = scmp.eq.s32.totalorder %s65, 0
    %s68 = sadd.s32 %s67, 1
    %s69 = scalar_select %p66, %s67, %s68
    %p72 = pneg %p66
    %p73 = scmp.eq.s32.totalorder %s15, 1
    %p74 = por %p72, %p73
    %p75 = scmp.ne.s32.totalorder %s67, %s70
    %p76 = scmp.eq.s32.totalorder %s15, 0
    %p77 = por %p75, %p76
    %p78 = scmp.ne.s32.totalorder %s67, %s70
    %p79 = scmp.eq.s32.totalorder %s20, 1
    %p80 = por %p78, %p79
    %p81 = scmp.ne.s32.totalorder %s70, %s71
    %p82 = scmp.eq.s32.totalorder %s20, 0
    %p83 = por %p81, %p82
    %p84 = scmp.ne.s32.totalorder %s70, %s71
    %p85 = scmp.eq.s32.totalorder %s21, 1
    %p86 = por %p84, %p85
    %p88 = scmp.ne.s32.totalorder %s71, %s87
    %p89 = scmp.eq.s32.totalorder %s21, 0
    %p90 = por %p88, %p89
    %s92 = sadd.s32 %s91, 1
    %p95 = scmp.eq.s32.totalorder %s15, 1
    %p96 = scmp.ne.s32.totalorder %s91, %s93
    %p97 = scmp.eq.s32.totalorder %s15, 0
    %p98 = por %p96, %p97
    %p99 = scmp.ne.s32.totalorder %s91, %s93
    %p100 = scmp.eq.s32.totalorder %s20, 1
    %p101 = por %p99, %p100
    %p102 = scmp.ne.s32.totalorder %s93, %s94
    %p103 = scmp.eq.s32.totalorder %s20, 0
    %p104 = por %p102, %p103
    %p105 = scmp.ne.s32.totalorder %s93, %s94
    %p106 = scmp.eq.s32.totalorder %s21, 1
    %p107 = por %p105, %p106
    %p109 = scmp.ne.s32.totalorder %s94, %s108
    %p110 = scmp.eq.s32.totalorder %s21, 0
    %p111 = por %p109, %p110
    %s113 = sadd.s32 %s112, 1
    %p116 = scmp.eq.s32.totalorder %s15, 1
    %p117 = scmp.ne.s32.totalorder %s112, %s114
    %p118 = scmp.eq.s32.totalorder %s15, 0
    %p119 = por %p117, %p118
    %p120 = scmp.ne.s32.totalorder %s112, %s114
    %p121 = scmp.eq.s32.totalorder %s20, 1
    %p122 = por %p120, %p121
    %p123 = scmp.ne.s32.totalorder %s114, %s115
    %p124 = scmp.eq.s32.totalorder %s20, 0
    %p125 = por %p123, %p124
    %p126 = scmp.ne.s32.totalorder %s114, %s115
    %p127 = scmp.eq.s32.totalorder %s21, 1
    %p128 = por %p126, %p127
    %p130 = scmp.ne.s32.totalorder %s115, %s129
    %p131 = scmp.eq.s32.totalorder %s21, 0
    %p132 = por %p130, %p131
    %s134 = sadd.s32 %s133, 1
    %p137 = scmp.eq.s32.totalorder %s15, 1
    %p138 = scmp.ne.s32.totalorder %s133, %s135
    %p139 = scmp.eq.s32.totalorder %s15, 0
    %p140 = por %p138, %p139
    %p141 = scmp.ne.s32.totalorder %s133, %s135
    %p142 = scmp.eq.s32.totalorder %s20, 1
    %p143 = por %p141, %p142
    %p144 = scmp.ne.s32.totalorder %s135, %s136
    %p145 = scmp.eq.s32.totalorder %s20, 0
    %p146 = por %p144, %p145
    %p147 = scmp.ne.s32.totalorder %s135, %s136
    %p148 = scmp.eq.s32.totalorder %s21, 1
    %p149 = por %p147, %p148
    %p151 = scmp.ne.s32.totalorder %s136, %s150
    %p152 = scmp.eq.s32.totalorder %s21, 0
    %p153 = por %p151, %p152
    %s155 = sadd.s32 %s154, 1
    %p158 = scmp.eq.s32.totalorder %s15, 1
    %p159 = scmp.ne.s32.totalorder %s154, %s156
    %p160 = scmp.eq.s32.totalorder %s15, 0
    %p161 = por %p159, %p160
    %p162 = scmp.ne.s32.totalorder %s154, %s156
    %p163 = scmp.eq.s32.totalorder %s20, 1
    %p164 = por %p162, %p163
    %p165 = scmp.ne.s32.totalorder %s156, %s157
    %p166 = scmp.eq.s32.totalorder %s20, 0
    %p167 = por %p165, %p166
    %p168 = scmp.ne.s32.totalorder %s156, %s157
    %p169 = scmp.eq.s32.totalorder %s21, 1
    %p170 = por %p168, %p169
    %p172 = scmp.ne.s32.totalorder %s157, %s171
    %p173 = scmp.eq.s32.totalorder %s21, 0
    %p174 = por %p172, %p173
    %s176 = sadd.s32 %s175, 1
    %p179 = scmp.eq.s32.totalorder %s15, 1
    %p180 = scmp.ne.s32.totalorder %s175, %s177
    %p181 = scmp.eq.s32.totalorder %s15, 0
    %p182 = por %p180, %p181
    %p183 = scmp.ne.s32.totalorder %s175, %s177
    %p184 = scmp.eq.s32.totalorder %s20, 1
    %p185 = por %p183, %p184
    %p186 = scmp.ne.s32.totalorder %s177, %s178
    %p187 = scmp.eq.s32.totalorder %s20, 0
    %p188 = por %p186, %p187
    %p189 = scmp.ne.s32.totalorder %s177, %s178
    %p190 = scmp.eq.s32.totalorder %s21, 1
    %p191 = por %p189, %p190
    %p193 = scmp.ne.s32.totalorder %s178, %s192
    %p194 = scmp.eq.s32.totalorder %s21, 0
    %p195 = por %p193, %p194
    %s196 = ssub.s32 %s22, %s34
    %s197 = ssub.s32 %s23, %s30
    %s198 = sor.u32 %s196, %s197
    %p199 = scmp.eq.s32.totalorder %s198, 0
    %s201 = sadd.s32 %s200, 1
    %s202 = scalar_select %p199, %s200, %s201
    %p205 = pneg %p199
    %p206 = scmp.eq.s32.totalorder %s15, 1
    %p207 = por %p205, %p206
    %p208 = scmp.ne.s32.totalorder %s200, %s203
    %p209 = scmp.eq.s32.totalorder %s15, 0
    %p210 = por %p208, %p209
    %p211 = scmp.ne.s32.totalorder %s200, %s203
    %p212 = scmp.eq.s32.totalorder %s20, 1
    %p213 = por %p211, %p212
    %p214 = scmp.ne.s32.totalorder %s203, %s204
    %p215 = scmp.eq.s32.totalorder %s20, 0
    %p216 = por %p214, %p215
    %p217 = scmp.ne.s32.totalorder %s203, %s204
    %p218 = scmp.eq.s32.totalorder %s21, 1
    %p219 = por %p217, %p218
    %p221 = scmp.ne.s32.totalorder %s204, %s220
    %p222 = scmp.eq.s32.totalorder %s21, 0
    %p223 = por %p221, %p222
    %p224 = scmp.le.s32.totalorder 1, %s15
    %p225 = scmp.lt.s32.totalorder %s15, 3
    %p226 = pnand %p224, %p225
    %p227 = pneg %p226
    // Predicated region
    $region9: #{ma_unet_forward.13} parent=5 // pred_check
      _
    $region10: #{ma_unet_forward.13} parent=5 // pred_check_branch
      %229 = sbr.rel (%p226) target = $region12
    $region11: #{ma_unet_forward.13} parent=5 // pred_region
      %s230 = ssub.s32 %s15, 1
      // Predicated region
      $region13: #{ma_unet_forward.13} parent=11 // pred_check
        %p231 = pneg %p104
      $region14: #{ma_unet_forward.13} parent=11 // pred_check_branch
        %233 = sbr.rel (%p231) target = $region16
      $region15: #{ma_unet_forward.13} parent=11 // pred_region
        _
      $region16: #{ma_unet_forward.13} parent=11 // pred_fallthru
        _
      // Predicated region
      $region17: #{ma_unet_forward.13} parent=11 // pred_check
        %p234 = pneg %p125
      $region18: #{ma_unet_forward.13} parent=11 // pred_check_branch
        %236 = sbr.rel (%p234) target = $region20
      $region19: #{ma_unet_forward.13} parent=11 // pred_region
        _
      $region20: #{ma_unet_forward.13} parent=11 // pred_fallthru
        _
      // Predicated region
      $region21: #{ma_unet_forward.13} parent=11 // pred_check
        %p237 = pneg %p146
      $region22: #{ma_unet_forward.13} parent=11 // pred_check_branch
        %239 = sbr.rel (%p237) target = $region24
      $region23: #{ma_unet_forward.13} parent=11 // pred_region
        _
      $region24: #{ma_unet_forward.13} parent=11 // pred_fallthru
        _
      // Predicated region
      $region25: #{ma_unet_forward.13} parent=11 // pred_check
        %p240 = pneg %p167
      $region26: #{ma_unet_forward.13} parent=11 // pred_check_branch
        %242 = sbr.rel (%p240) target = $region28
      $region27: #{ma_unet_forward.13} parent=11 // pred_region
        _
      $region28: #{ma_unet_forward.13} parent=11 // pred_fallthru
        _
      // Predicated region
      $region29: #{ma_unet_forward.13} parent=11 // pred_check
        %p243 = pneg %p188
      $region30: #{ma_unet_forward.13} parent=11 // pred_check_branch
        %245 = sbr.rel (%p243) target = $region32
      $region31: #{ma_unet_forward.13} parent=11 // pred_region
        _
      $region32: #{ma_unet_forward.13} parent=11 // pred_fallthru
        _
    $region12: #{ma_unet_forward.13} parent=5 // pred_fallthru
      _
    %p246 = scmp.lt.s32.totalorder %s15, 2
    // Predicated region
    $region33: #{ma_unet_forward.13} parent=5 // pred_check
      %p247 = pneg %p246
    $region34: #{ma_unet_forward.13} parent=5 // pred_check_branch
      %249 = sbr.rel (%p247) target = $region36
    $region35: #{ma_unet_forward.13} parent=5 // pred_region
      // Predicated region
      $region37: #{ma_unet_forward.13} parent=35 // pred_check
        %p250 = pneg %p49
      $region38: #{ma_unet_forward.13} parent=35 // pred_check_branch
        %252 = sbr.rel (%p250) target = $region40
      $region39: #{ma_unet_forward.13} parent=35 // pred_region
        %p253 = scmp.lt.s32.totalorder %s22, 1
        %s254 = scalar_select %p253, %s22, 1
        %p255 = scmp.lt.s32.totalorder %s23, 0
        %s256 = scalar_select %p255, %s23, 0
        %s257 = smul.addr %s254, 4
        %s258 = sadd.s32 %s256, %s257
        %s259 = smul.addr %s258, 8
        %s260 = scalar_lea.vmem %s0, %s259
      $region40: #{ma_unet_forward.13} parent=35 // pred_fallthru
        _
      // Predicated region
      $region41: #{ma_unet_forward.13} parent=35 // pred_check
        %p261 = pneg %p77
      $region42: #{ma_unet_forward.13} parent=35 // pred_check_branch
        %263 = sbr.rel (%p261) target = $region44
      $region43: #{ma_unet_forward.13} parent=35 // pred_region
        %p264 = scmp.lt.s32.totalorder %s22, 1
        %s265 = scalar_select %p264, %s22, 1
        %p266 = scmp.lt.s32.totalorder %s23, 0
        %s267 = scalar_select %p266, %s23, 0
        %s268 = smul.addr %s265, 2
        %s269 = sadd.s32 %s267, %s268
        %s270 = smul.addr %s269, 8
        %s271 = scalar_lea.vmem %s1, %s270
      $region44: #{ma_unet_forward.13} parent=35 // pred_fallthru
        _
    $region36: #{ma_unet_forward.13} parent=5 // pred_fallthru
      _
    %p272 = scmp.le.s32.totalorder 1, %s15
    %p273 = scmp.lt.s32.totalorder %s15, 3
    %p274 = pnand %p272, %p273
    %p275 = pneg %p274
    // Predicated region
    $region45: #{ma_unet_forward.13} parent=5 // pred_check
      _
    $region46: #{ma_unet_forward.13} parent=5 // pred_check_branch
      %277 = sbr.rel (%p274) target = $region48
    $region47: #{ma_unet_forward.13} parent=5 // pred_region
      %s278 = ssub.s32 %s15, 1
      %p279 = scmp.lt.s32.totalorder %s24, 1
      %s280 = scalar_select %p279, %s24, 1
      %p281 = scmp.lt.s32.totalorder %s25, 0
      %s282 = scalar_select %p281, %s25, 0
      %s283 = smul.addr %s280, 4
      %s284 = sadd.s32 %s282, %s283
      %s285 = smul.addr %s284, 8
      %s286 = scalar_lea.vmem %s0, %s285
      %p287 = pneg %p55
      %p288 = pneg %p52
      %p289 = scmp.lt.s32.totalorder %s24, 1
      %s290 = scalar_select %p289, %s24, 1
      %p291 = scmp.lt.s32.totalorder %s25, 0
      %s292 = scalar_select %p291, %s25, 0
      %s293 = smul.addr %s290, 2
      %s294 = sadd.s32 %s292, %s293
      %s295 = smul.addr %s294, 8
      %s296 = scalar_lea.vmem %s1, %s295
      %p297 = pneg %p83
      %p298 = pneg %p80
      %p299 = pneg %p104
      %p300 = pneg %p101
      %p301 = pneg %p125
      %p302 = pneg %p122
      %p303 = pneg %p146
      %p304 = pneg %p143
      %p305 = pneg %p167
      %p306 = pneg %p164
      %p307 = pneg %p188
      %p308 = pneg %p185
      %p309 = pneg %p216
      %p310 = pneg %p213
      %p311 = scmp.lt.s32.totalorder %s24, 1
      %s312 = scalar_select %p311, %s24, 1
      %p313 = scmp.lt.s32.totalorder %s25, 0
      %s314 = scalar_select %p313, %s25, 0
      %s315 = smul.addr %s312, 2
      %s316 = sadd.s32 %s314, %s315
      %s317 = smul.addr %s316, 8
      %s318 = scalar_lea.vmem %s7, %s317
      %p319 = scmp.lt.s32.totalorder %s24, 1
      %s320 = scalar_select %p319, %s24, 1
      %p321 = scmp.lt.s32.totalorder %s25, 0
      %s322 = scalar_select %p321, %s25, 0
      %s323 = smul.addr %s320, 4
      %s324 = sadd.s32 %s322, %s323
      %s325 = smul.addr %s324, 8
      %s326 = scalar_lea.vmem %s0, %s325
      %p327 = scmp.lt.s32.totalorder %s24, 1
      %s328 = scalar_select %p327, %s24, 1
      %p329 = scmp.lt.s32.totalorder %s25, 0
      %s330 = scalar_select %p329, %s25, 0
      %s331 = smul.addr %s328, 2
      %s332 = sadd.s32 %s330, %s331
      %s333 = smul.addr %s332, 8
      %s334 = scalar_lea.vmem %s1, %s333
      %p335 = scmp.lt.s32.totalorder %s24, 1
      %s336 = scalar_select %p335, %s24, 1
      %p337 = scmp.lt.s32.totalorder %s25, 0
      %s338 = scalar_select %p337, %s25, 0
      %s339 = smul.addr %s336, 2
      %s340 = sadd.s32 %s338, %s339
      %s341 = smul.addr %s340, 8
      %s342 = scalar_lea.vmem %s7, %s341
      %v343 = vld [vmem:[%s326] sm:$0xff]
      %v344 = vld [vmem:[%s326 + $0x8] sm:$0xff]
      %v345 = vld [vmem:[%s326 + $0x10] sm:$0xff]
      %v346 = vld [vmem:[%s326 + $0x18] sm:$0xff]
      %v347 = vld [vmem:[%s334] sm:$0xff]
      %v348 = vld [vmem:[%s334 + $0x8] sm:$0xff]
      %v349 = vld [vmem:[%s2] sm:$0xff]
      %v350 = vld [vmem:[%s2 + $0x8] sm:$0xff]
      %v351 = vld [vmem:[%s3] sm:$0xff]
      %v352 = vld [vmem:[%s3 + $0x8] sm:$0xff]
      %354 = vset.pattern.permute.xlu0 0
      %355 = vperm.xlu0 %354, %v351
      %v356 = vpop.permute.xlu0 %355
      %359 = vset.pattern.permute.xlu0 0
      %360 = vperm.xlu0 %359, %v352
      %v361 = vpop.permute.xlu0 %360
      %vm363 = vcmask 261120
      %v365 = vsel %vm363, %v349, 0
      %v368 = vsel %vm363, %v350, 0
      %370 = vmatprep.subr.mxu0 0.0
      %371 = vmatpush1.msra.mxu0 0.0
      %372 = vmatprep.subr.mxu0 0.0
      %373 = vmatpush1.msra.mxu0 0.0
      %374 = vmatprep.subr.mxu0 0.0
      %375 = vmatpush1.msra.mxu0 0.0
      %376 = vmatprep.subr.mxu0 0.0
      %377 = vmatpush1.msra.mxu0 0.0
      %378 = vmatprep.subr.mxu0 0.0
      %379 = vmatpush1.msra.mxu0 0.0
      %380 = vmatprep.subr.mxu0 0.0
      %381 = vmatpush1.msra.mxu0 0.0
      %382 = vmatprep.subr.mxu0 0.0
      %383 = vmatpush1.msra.mxu0 0.0
      %384 = vmatprep.subr.mxu0 0.0
      %385 = vmatpush1.msra.mxu0 0.0
      %386 = vmatprep.subr.mxu0 0.0
      %387 = vmatpush1.msra.mxu0 0.0
      %388 = vmatprep.subr.mxu0 0.0
      %389 = vmatpush1.msra.mxu0 0.0
      %390 = vmatprep.subr.mxu0 0.0
      %391 = vmatpush1.msra.mxu0 0.0
      %392 = vmatprep.subr.mxu0 0.0
      %393 = vmatpush1.msra.mxu0 0.0
      %394 = vmatprep.subr.mxu0 0.0
      %395 = vmatpush1.msra.mxu0 %v346
      %396 = vmatprep.subr.mxu0 0.0
      %397 = vmatpush1.msra.mxu0 %v345
      %398 = vmatprep.subr.mxu0 0.0
      %399 = vmatpush1.msra.mxu0 %v344
      %400 = vmatprep.subr.mxu0 0.0
      %401 = vmatpush1.msra.mxu0 %v343
      %402 = vmatprep.subr.mxu0 0.0
      %403 = vmatpush2.msra.mxu0 0.0
      %404 = vmatprep.subr.mxu0 0.0
      %405 = vmatpush2.msra.mxu0 0.0
      %406 = vmatprep.subr.mxu0 0.0
      %407 = vmatpush2.msra.mxu0 0.0
      %408 = vmatprep.subr.mxu0 0.0
      %409 = vmatpush2.msra.mxu0 0.0
      %410 = vmatprep.subr.mxu0 0.0
      %411 = vmatpush2.msra.mxu0 0.0
      %412 = vmatprep.subr.mxu0 0.0
      %413 = vmatpush2.msra.mxu0 0.0
      %414 = vmatprep.subr.mxu0 0.0
      %415 = vmatpush2.msra.mxu0 0.0
      %416 = vmatprep.subr.mxu0 0.0
      %417 = vmatpush2.msra.mxu0 0.0
      %418 = vmatprep.subr.mxu0 0.0
      %419 = vmatpush2.msra.mxu0 0.0
      %420 = vmatprep.subr.mxu0 0.0
      %421 = vmatpush2.msra.mxu0 0.0
      %422 = vmatprep.subr.mxu0 0.0
      %423 = vmatpush2.msra.mxu0 0.0
      %424 = vmatprep.subr.mxu0 0.0
      %425 = vmatpush2.msra.mxu0 0.0
      %426 = vmatprep.subr.mxu0 0.0
      %427 = vmatpush2.msra.mxu0 0.0
      %428 = vmatprep.subr.mxu0 0.0
      %429 = vmatpush2.msra.mxu0 0.0
      %430 = vmatprep.subr.mxu0 0.0
      %431 = vmatpush2.msra.mxu0 0.0
      %432 = vmatprep.subr.mxu0 0.0
      %433 = vmatpush2.msra.mxu0 0.0
      %434 = vmatprep.mubr.f32.mxu0 0.0
      %435 = vmatmul.mubr.f32.gmra.mxu0 %v365
      %v436 = vpop.f32.mrf.mxu0
      %v437 = vadd.f32 %v356, %v436
      %v438 = vpop.f32.mrf.mxu0
      %439 = vmatprep.mubr.f32.mxu0 0.0
      %440 = vmatmul.mubr.f32.gmra.mxu0 %v368
      %v441 = vpop.f32.mrf.mxu0
      %v442 = vadd.f32 %v361, %v441
      %v443 = vpop.f32.mrf.mxu0
      %444 = vdwg.mxu0
      %v445 = vld [vmem:[%s4] sm:$0xff]
      %v446 = vld [vmem:[%s4 + $0x8] sm:$0xff]
      %vm447 = vcmask 130048
      %v449 = vsel %vm447, %v445, 0
      %v452 = vsel %vm447, %v446, 0
      %454 = vmatprep.subr.mxu0 0.0
      %455 = vmatpush1.msra.mxu0 0.0
      %456 = vmatprep.subr.mxu0 0.0
      %457 = vmatpush1.msra.mxu0 0.0
      %458 = vmatprep.subr.mxu0 0.0
      %459 = vmatpush1.msra.mxu0 0.0
      %460 = vmatprep.subr.mxu0 0.0
      %461 = vmatpush1.msra.mxu0 0.0
      %462 = vmatprep.subr.mxu0 0.0
      %463 = vmatpush1.msra.mxu0 0.0
      %464 = vmatprep.subr.mxu0 0.0
      %465 = vmatpush1.msra.mxu0 0.0
      %466 = vmatprep.subr.mxu0 0.0
      %467 = vmatpush1.msra.mxu0 0.0
      %468 = vmatprep.subr.mxu0 0.0
      %469 = vmatpush1.msra.mxu0 0.0
      %470 = vmatprep.subr.mxu0 0.0
      %471 = vmatpush1.msra.mxu0 0.0
      %472 = vmatprep.subr.mxu0 0.0
      %473 = vmatpush1.msra.mxu0 0.0
      %474 = vmatprep.subr.mxu0 0.0
      %475 = vmatpush1.msra.mxu0 0.0
      %476 = vmatprep.subr.mxu0 0.0
      %477 = vmatpush1.msra.mxu0 0.0
      %478 = vmatprep.subr.mxu0 0.0
      %479 = vmatpush1.msra.mxu0 0.0
      %480 = vmatprep.subr.mxu0 0.0
      %481 = vmatpush1.msra.mxu0 0.0
      %482 = vmatprep.subr.mxu0 0.0
      %483 = vmatpush1.msra.mxu0 %v348
      %484 = vmatprep.subr.mxu0 0.0
      %485 = vmatpush1.msra.mxu0 %v347
      %486 = vmatprep.subr.mxu0 0.0
      %487 = vmatpush2.msra.mxu0 0.0
      %488 = vmatprep.subr.mxu0 0.0
      %489 = vmatpush2.msra.mxu0 0.0
      %490 = vmatprep.subr.mxu0 0.0
      %491 = vmatpush2.msra.mxu0 0.0
      %492 = vmatprep.subr.mxu0 0.0
      %493 = vmatpush2.msra.mxu0 0.0
      %494 = vmatprep.subr.mxu0 0.0
      %495 = vmatpush2.msra.mxu0 0.0
      %496 = vmatprep.subr.mxu0 0.0
      %497 = vmatpush2.msra.mxu0 0.0
      %498 = vmatprep.subr.mxu0 0.0
      %499 = vmatpush2.msra.mxu0 0.0
      %500 = vmatprep.subr.mxu0 0.0
      %501 = vmatpush2.msra.mxu0 0.0
      %502 = vmatprep.subr.mxu0 0.0
      %503 = vmatpush2.msra.mxu0 0.0
      %504 = vmatprep.subr.mxu0 0.0
      %505 = vmatpush2.msra.mxu0 0.0
      %506 = vmatprep.subr.mxu0 0.0
      %507 = vmatpush2.msra.mxu0 0.0
      %508 = vmatprep.subr.mxu0 0.0
      %509 = vmatpush2.msra.mxu0 0.0
      %510 = vmatprep.subr.mxu0 0.0
      %511 = vmatpush2.msra.mxu0 0.0
      %512 = vmatprep.subr.mxu0 0.0
      %513 = vmatpush2.msra.mxu0 0.0
      %514 = vmatprep.subr.mxu0 0.0
      %515 = vmatpush2.msra.mxu0 0.0
      %516 = vmatprep.subr.mxu0 0.0
      %517 = vmatpush2.msra.mxu0 0.0
      %518 = vmatprep.mubr.f32.mxu0 0.0
      %519 = vmatmul.mubr.f32.gmra.mxu0 %v449
      %v520 = vpop.f32.mrf.mxu0
      %v521 = vadd.f32 0.0, %v520
      %v522 = vpop.f32.mrf.mxu0
      %523 = vmatprep.mubr.f32.mxu0 0.0
      %524 = vmatmul.mubr.f32.gmra.mxu0 %v452
      %v525 = vpop.f32.mrf.mxu0
      %v526 = vadd.f32 0.0, %v525
      %v527 = vpop.f32.mrf.mxu0
      %528 = vdwg.mxu0
      %v529 = vadd.f32 %v437, %v521
      %v530 = vadd.f32 %v442, %v526
      %v531 = vmax.f32 %v529, 0.0
      %v532 = vmax.f32 %v530, 0.0
      %v533 = vld [vmem:[%s5] sm:$0x1]
      %v534 = vld [vmem:[#allocation2] sm:$0x1]
      %536 = vset.pattern.permute.xlu0 0
      %537 = vperm.xlu0 %536, %v534
      %v538 = vpop.permute.xlu0 %537
      %v540 = vlaneseq
      %v541 = vshrl.u32 %v540, 7
      %v542 = vsub.s32 0, %v541
      %v543 = vrot.slane %v538, %v542
      %v545 = vsel %vm447, %v533, 0
      %547 = vmatprep.subr.mxu0 0.0
      %548 = vmatpush1.msra.mxu0 0.0
      %549 = vmatprep.subr.mxu0 0.0
      %550 = vmatpush1.msra.mxu0 0.0
      %551 = vmatprep.subr.mxu0 0.0
      %552 = vmatpush1.msra.mxu0 0.0
      %553 = vmatprep.subr.mxu0 0.0
      %554 = vmatpush1.msra.mxu0 0.0
      %555 = vmatprep.subr.mxu0 0.0
      %556 = vmatpush1.msra.mxu0 0.0
      %557 = vmatprep.subr.mxu0 0.0
      %558 = vmatpush1.msra.mxu0 0.0
      %559 = vmatprep.subr.mxu0 0.0
      %560 = vmatpush1.msra.mxu0 0.0
      %561 = vmatprep.subr.mxu0 0.0
      %562 = vmatpush1.msra.mxu0 0.0
      %563 = vmatprep.subr.mxu0 0.0
      %564 = vmatpush1.msra.mxu0 0.0
      %565 = vmatprep.subr.mxu0 0.0
      %566 = vmatpush1.msra.mxu0 0.0
      %567 = vmatprep.subr.mxu0 0.0
      %568 = vmatpush1.msra.mxu0 0.0
      %569 = vmatprep.subr.mxu0 0.0
      %570 = vmatpush1.msra.mxu0 0.0
      %571 = vmatprep.subr.mxu0 0.0
      %572 = vmatpush1.msra.mxu0 0.0
      %573 = vmatprep.subr.mxu0 0.0
      %574 = vmatpush1.msra.mxu0 0.0
      %575 = vmatprep.subr.mxu0 0.0
      %576 = vmatpush1.msra.mxu0 %v532
      %577 = vmatprep.subr.mxu0 0.0
      %578 = vmatpush1.msra.mxu0 %v531
      %579 = vmatprep.subr.mxu0 0.0
      %580 = vmatpush2.msra.mxu0 0.0
      %581 = vmatprep.subr.mxu0 0.0
      %582 = vmatpush2.msra.mxu0 0.0
      %583 = vmatprep.subr.mxu0 0.0
      %584 = vmatpush2.msra.mxu0 0.0
      %585 = vmatprep.subr.mxu0 0.0
      %586 = vmatpush2.msra.mxu0 0.0
      %587 = vmatprep.subr.mxu0 0.0
      %588 = vmatpush2.msra.mxu0 0.0
      %589 = vmatprep.subr.mxu0 0.0
      %590 = vmatpush2.msra.mxu0 0.0
      %591 = vmatprep.subr.mxu0 0.0
      %592 = vmatpush2.msra.mxu0 0.0
      %593 = vmatprep.subr.mxu0 0.0
      %594 = vmatpush2.msra.mxu0 0.0
      %595 = vmatprep.subr.mxu0 0.0
      %596 = vmatpush2.msra.mxu0 0.0
      %597 = vmatprep.subr.mxu0 0.0
      %598 = vmatpush2.msra.mxu0 0.0
      %599 = vmatprep.subr.mxu0 0.0
      %600 = vmatpush2.msra.mxu0 0.0
      %601 = vmatprep.subr.mxu0 0.0
      %602 = vmatpush2.msra.mxu0 0.0
      %603 = vmatprep.subr.mxu0 0.0
      %604 = vmatpush2.msra.mxu0 0.0
      %605 = vmatprep.subr.mxu0 0.0
      %606 = vmatpush2.msra.mxu0 0.0
      %607 = vmatprep.subr.mxu0 0.0
      %608 = vmatpush2.msra.mxu0 0.0
      %609 = vmatprep.subr.mxu0 0.0
      %610 = vmatpush2.msra.mxu0 0.0
      %611 = vmatprep.mubr.f32.mxu0 0.0
      %612 = vmatmul.mubr.f32.gmra.mxu0 %v545
      %v613 = vpop.f32.mrf.mxu0
      %v614 = vadd.f32 %v543, %v613
      %v615 = vpop.f32.mrf.mxu0
      %616 = vdwg.mxu0
      %v617 = vxor.u32 %v614, 2147483648
      %v618 = vmul.f32 %v617, 1.442695
      %v619 = vpow.pop %v618
      %v620 = vadd.f32 %v619, 1.0
      %v621 = vrcp.pop %v620
      %v622 = vmul.f32 1.0, %v621
      %v623 = vlaneseq
      %v624 = vshrl.u32 %v623, 7
      %v625 = vsub.s32 0, %v624
      %v626 = vrot.slane %v622, %v625
      %v627 = vmul.f32 %v347, %v626
      %v628 = vmul.f32 %v348, %v626
      %vm629 = vcmask 523264
      %630 = vst.msk [vmem:[%s342] sm:$0xff] %vm629, %v627
      %631 = vst.msk [vmem:[%s342 + $0x8] sm:$0xff] %vm629, %v628
      %p632 = scmp.lt.s32.totalorder %s24, 1
      %s633 = scalar_select %p632, %s24, 1
      %p634 = scmp.lt.s32.totalorder %s25, 0
      %s635 = scalar_select %p634, %s25, 0
      %s636 = smul.addr %s633, 2
      %s637 = sadd.s32 %s635, %s636
      %s638 = smul.addr %s637, 8
      %s639 = scalar_lea.vmem %s7, %s638
      // Predicated region
      $region49: #{ma_unet_forward.13} parent=47 // pred_check
        %p640 = pneg %p213
      $region50: #{ma_unet_forward.13} parent=47 // pred_check_branch
        %642 = sbr.rel (%p640) target = $region52
      $region51: #{ma_unet_forward.13} parent=47 // pred_region
        _
      $region52: #{ma_unet_forward.13} parent=47 // pred_fallthru
        _
    $region48: #{ma_unet_forward.13} parent=5 // pred_fallthru
      _
    %p643 = scmp.le.s32.totalorder 2, %s15
    // Predicated region
    $region53: #{ma_unet_forward.13} parent=5 // pred_check
      %p644 = pneg %p643
    $region54: #{ma_unet_forward.13} parent=5 // pred_check_branch
      %646 = sbr.rel (%p644) target = $region56
    $region55: #{ma_unet_forward.13} parent=5 // pred_region
      %s647 = ssub.s32 %s15, 2
      // Predicated region
      $region57: #{ma_unet_forward.13} parent=55 // pred_check
        %p648 = pneg %p219
      $region58: #{ma_unet_forward.13} parent=55 // pred_check_branch
        %650 = sbr.rel (%p648) target = $region60
      $region59: #{ma_unet_forward.13} parent=55 // pred_region
        %p651 = scmp.lt.s32.totalorder %s26, 1
        %s652 = scalar_select %p651, %s26, 1
        %p653 = scmp.lt.s32.totalorder %s27, 0
        %s654 = scalar_select %p653, %s27, 0
        %s655 = smul.addr %s652, 2
        %s656 = sadd.s32 %s654, %s655
        %s657 = smul.addr %s656, 8
        %s658 = scalar_lea.vmem %s7, %s657
      $region60: #{ma_unet_forward.13} parent=55 // pred_fallthru
        _
    $region56: #{ma_unet_forward.13} parent=5 // pred_fallthru
      _
  $region6: #{ma_unet_forward.13} parent=0 // loop_footer
    %s19 = sadd.s32 1, %s15
  $region7: #{ma_unet_forward.13} parent=0 // loop_footer_branch
    %14 = sbr.rel target = $region3
  $region8: #{ma_unet_forward.13} parent=0 // loop_exit
    _

// kernel: ma_unet_forward.15
$region0: #{ma_unet_forward.15}
  #allocation0 [shape = 'u32[]', space=smem, size = 0x4, offset = 0x4, fixed_abs, tag = 'smem constant byte address 0x4 - core index']
  #allocation1 [shape = 'u32[144,128]{1,0:T(1,128)}', space=vmem, size = 0x12000, scoped, tag = 'internal scratch']
  #allocation2 [shape = 'f32[1,1]{1,0:T(1,128)S(1)}', space=vmem, size = 0x200, scoped, tag = 'scoped memory for ma_unet_forward.15']
  %s0 = inlined_call_operand.vmem [shape: f32[2,16,256], index: 0, kind: input, shape index: {}]
  %s1 = inlined_call_operand.vmem [shape: f32[2,8,256], index: 1, kind: input, shape index: {}]
  %s2 = inlined_call_operand.vmem [shape: f32[8,16], index: 2, kind: input, shape index: {}]
  %s3 = inlined_call_operand.vmem [shape: f32[8,1], index: 3, kind: input, shape index: {}]
  %s4 = inlined_call_operand.vmem [shape: f32[8,8], index: 4, kind: input, shape index: {}]
  %s5 = inlined_call_operand.vmem [shape: f32[1,8], index: 5, kind: input, shape index: {}]
  %s6 = inlined_call_operand.<no memory space> [shape: f32[1,1], index: 6, kind: input, shape index: {}]
  %s7 = inlined_call_operand.vmem [shape: f32[2,8,256], index: 7, kind: output, shape index: {}]
  %s8 = sld [smem:[#allocation0]]
  $region61: #{ma_unet_forward.15} parent=0
    _
  %s10 = ssub.s32 1, %s8
  %s11 = scalar_select 0, %s10, %s8
  %v12 = vstv %s6
  %13 = vst [vmem:[#allocation2] sm:$0x1] %v12
  loop: start=0, step=1, limit=4
  $region2: #{ma_unet_forward.15} parent=0 // loop_pre_header
    _
  $region3: #{ma_unet_forward.15} parent=0 // loop_header
    %s15 = sphi 0, %s19
    %p16 = scmp.ge.s32.totalorder %s15, 4
    %s22 = sphi 0, %s34
    %s23 = sphi 0, %s30
    %s24 = sphi 0, %s22
    %s25 = sphi 0, %s23
    %s26 = sphi 0, %s24
    %s27 = sphi 0, %s25
    %s39 = sphi 0, %s41
    %s42 = sphi 0, %s39
    %s43 = sphi 0, %s42
    %s59 = sphi 0, %s43
    %s67 = sphi 0, %s69
    %s70 = sphi 0, %s67
    %s71 = sphi 0, %s70
    %s87 = sphi 0, %s71
    %s91 = sphi 0, %s91
    %s93 = sphi 0, %s91
    %s94 = sphi 0, %s93
    %s108 = sphi 0, %s94
    %s112 = sphi 0, %s112
    %s114 = sphi 0, %s112
    %s115 = sphi 0, %s114
    %s129 = sphi 0, %s115
    %s133 = sphi 0, %s133
    %s135 = sphi 0, %s133
    %s136 = sphi 0, %s135
    %s150 = sphi 0, %s136
    %s154 = sphi 0, %s154
    %s156 = sphi 0, %s154
    %s157 = sphi 0, %s156
    %s171 = sphi 0, %s157
    %s175 = sphi 0, %s175
    %s177 = sphi 0, %s175
    %s178 = sphi 0, %s177
    %s192 = sphi 0, %s178
    %s200 = sphi 0, %s202
    %s203 = sphi 0, %s200
    %s204 = sphi 0, %s203
    %s220 = sphi 0, %s204
  $region4: #{ma_unet_forward.15} parent=0 // loop_header_branch
    %18 = sbr.rel (%p16) target = $region8
  $region5: #{ma_unet_forward.15} parent=0 // loop_body
    %s20 = ssub.s32 %s15, 1
    %s21 = ssub.s32 %s15, 2
    %s28 = sadd.s32 1, %s23
    %p29 = scmp.ge.s32.totalorder %s28, 1
    %s30 = scalar_select %p29, 0, %s28
    %s31 = sadd.s32 1, %s22
    %s32 = scalar_select %p29, %s31, %s22
    %p33 = scmp.ge.s32.totalorder %s32, 2
    %s34 = scalar_select %p33, 0, %s32
    %s35 = ssub.s32 %s22, %s34
    %s36 = ssub.s32 %s23, %s30
    %s37 = sor.u32 %s35, %s36
    %p38 = scmp.eq.s32.totalorder %s37, 0
    %s40 = sadd.s32 %s39, 1
    %s41 = scalar_select %p38, %s39, %s40
    %p44 = pneg %p38
    %p45 = scmp.eq.s32.totalorder %s15, 1
    %p46 = por %p44, %p45
    %p47 = scmp.ne.s32.totalorder %s39, %s42
    %p48 = scmp.eq.s32.totalorder %s15, 0
    %p49 = por %p47, %p48
    %p50 = scmp.ne.s32.totalorder %s39, %s42
    %p51 = scmp.eq.s32.totalorder %s20, 1
    %p52 = por %p50, %p51
    %p53 = scmp.ne.s32.totalorder %s42, %s43
    %p54 = scmp.eq.s32.totalorder %s20, 0
    %p55 = por %p53, %p54
    %p56 = scmp.ne.s32.totalorder %s42, %s43
    %p57 = scmp.eq.s32.totalorder %s21, 1
    %p58 = por %p56, %p57
    %p60 = scmp.ne.s32.totalorder %s43, %s59
    %p61 = scmp.eq.s32.totalorder %s21, 0
    %p62 = por %p60, %p61
    %s63 = ssub.s32 %s22, %s34
    %s64 = ssub.s32 %s23, %s30
    %s65 = sor.u32 %s63, %s64
    %p66 = scmp.eq.s32.totalorder %s65, 0
    %s68 = sadd.s32 %s67, 1
    %s69 = scalar_select %p66, %s67, %s68
    %p72 = pneg %p66
    %p73 = scmp.eq.s32.totalorder %s15, 1
    %p74 = por %p72, %p73
    %p75 = scmp.ne.s32.totalorder %s67, %s70
    %p76 = scmp.eq.s32.totalorder %s15, 0
    %p77 = por %p75, %p76
    %p78 = scmp.ne.s32.totalorder %s67, %s70
    %p79 = scmp.eq.s32.totalorder %s20, 1
    %p80 = por %p78, %p79
    %p81 = scmp.ne.s32.totalorder %s70, %s71
    %p82 = scmp.eq.s32.totalorder %s20, 0
    %p83 = por %p81, %p82
    %p84 = scmp.ne.s32.totalorder %s70, %s71
    %p85 = scmp.eq.s32.totalorder %s21, 1
    %p86 = por %p84, %p85
    %p88 = scmp.ne.s32.totalorder %s71, %s87
    %p89 = scmp.eq.s32.totalorder %s21, 0
    %p90 = por %p88, %p89
    %s92 = sadd.s32 %s91, 1
    %p95 = scmp.eq.s32.totalorder %s15, 1
    %p96 = scmp.ne.s32.totalorder %s91, %s93
    %p97 = scmp.eq.s32.totalorder %s15, 0
    %p98 = por %p96, %p97
    %p99 = scmp.ne.s32.totalorder %s91, %s93
    %p100 = scmp.eq.s32.totalorder %s20, 1
    %p101 = por %p99, %p100
    %p102 = scmp.ne.s32.totalorder %s93, %s94
    %p103 = scmp.eq.s32.totalorder %s20, 0
    %p104 = por %p102, %p103
    %p105 = scmp.ne.s32.totalorder %s93, %s94
    %p106 = scmp.eq.s32.totalorder %s21, 1
    %p107 = por %p105, %p106
    %p109 = scmp.ne.s32.totalorder %s94, %s108
    %p110 = scmp.eq.s32.totalorder %s21, 0
    %p111 = por %p109, %p110
    %s113 = sadd.s32 %s112, 1
    %p116 = scmp.eq.s32.totalorder %s15, 1
    %p117 = scmp.ne.s32.totalorder %s112, %s114
    %p118 = scmp.eq.s32.totalorder %s15, 0
    %p119 = por %p117, %p118
    %p120 = scmp.ne.s32.totalorder %s112, %s114
    %p121 = scmp.eq.s32.totalorder %s20, 1
    %p122 = por %p120, %p121
    %p123 = scmp.ne.s32.totalorder %s114, %s115
    %p124 = scmp.eq.s32.totalorder %s20, 0
    %p125 = por %p123, %p124
    %p126 = scmp.ne.s32.totalorder %s114, %s115
    %p127 = scmp.eq.s32.totalorder %s21, 1
    %p128 = por %p126, %p127
    %p130 = scmp.ne.s32.totalorder %s115, %s129
    %p131 = scmp.eq.s32.totalorder %s21, 0
    %p132 = por %p130, %p131
    %s134 = sadd.s32 %s133, 1
    %p137 = scmp.eq.s32.totalorder %s15, 1
    %p138 = scmp.ne.s32.totalorder %s133, %s135
    %p139 = scmp.eq.s32.totalorder %s15, 0
    %p140 = por %p138, %p139
    %p141 = scmp.ne.s32.totalorder %s133, %s135
    %p142 = scmp.eq.s32.totalorder %s20, 1
    %p143 = por %p141, %p142
    %p144 = scmp.ne.s32.totalorder %s135, %s136
    %p145 = scmp.eq.s32.totalorder %s20, 0
    %p146 = por %p144, %p145
    %p147 = scmp.ne.s32.totalorder %s135, %s136
    %p148 = scmp.eq.s32.totalorder %s21, 1
    %p149 = por %p147, %p148
    %p151 = scmp.ne.s32.totalorder %s136, %s150
    %p152 = scmp.eq.s32.totalorder %s21, 0
    %p153 = por %p151, %p152
    %s155 = sadd.s32 %s154, 1
    %p158 = scmp.eq.s32.totalorder %s15, 1
    %p159 = scmp.ne.s32.totalorder %s154, %s156
    %p160 = scmp.eq.s32.totalorder %s15, 0
    %p161 = por %p159, %p160
    %p162 = scmp.ne.s32.totalorder %s154, %s156
    %p163 = scmp.eq.s32.totalorder %s20, 1
    %p164 = por %p162, %p163
    %p165 = scmp.ne.s32.totalorder %s156, %s157
    %p166 = scmp.eq.s32.totalorder %s20, 0
    %p167 = por %p165, %p166
    %p168 = scmp.ne.s32.totalorder %s156, %s157
    %p169 = scmp.eq.s32.totalorder %s21, 1
    %p170 = por %p168, %p169
    %p172 = scmp.ne.s32.totalorder %s157, %s171
    %p173 = scmp.eq.s32.totalorder %s21, 0
    %p174 = por %p172, %p173
    %s176 = sadd.s32 %s175, 1
    %p179 = scmp.eq.s32.totalorder %s15, 1
    %p180 = scmp.ne.s32.totalorder %s175, %s177
    %p181 = scmp.eq.s32.totalorder %s15, 0
    %p182 = por %p180, %p181
    %p183 = scmp.ne.s32.totalorder %s175, %s177
    %p184 = scmp.eq.s32.totalorder %s20, 1
    %p185 = por %p183, %p184
    %p186 = scmp.ne.s32.totalorder %s177, %s178
    %p187 = scmp.eq.s32.totalorder %s20, 0
    %p188 = por %p186, %p187
    %p189 = scmp.ne.s32.totalorder %s177, %s178
    %p190 = scmp.eq.s32.totalorder %s21, 1
    %p191 = por %p189, %p190
    %p193 = scmp.ne.s32.totalorder %s178, %s192
    %p194 = scmp.eq.s32.totalorder %s21, 0
    %p195 = por %p193, %p194
    %s196 = ssub.s32 %s22, %s34
    %s197 = ssub.s32 %s23, %s30
    %s198 = sor.u32 %s196, %s197
    %p199 = scmp.eq.s32.totalorder %s198, 0
    %s201 = sadd.s32 %s200, 1
    %s202 = scalar_select %p199, %s200, %s201
    %p205 = pneg %p199
    %p206 = scmp.eq.s32.totalorder %s15, 1
    %p207 = por %p205, %p206
    %p208 = scmp.ne.s32.totalorder %s200, %s203
    %p209 = scmp.eq.s32.totalorder %s15, 0
    %p210 = por %p208, %p209
    %p211 = scmp.ne.s32.totalorder %s200, %s203
    %p212 = scmp.eq.s32.totalorder %s20, 1
    %p213 = por %p211, %p212
    %p214 = scmp.ne.s32.totalorder %s203, %s204
    %p215 = scmp.eq.s32.totalorder %s20, 0
    %p216 = por %p214, %p215
    %p217 = scmp.ne.s32.totalorder %s203, %s204
    %p218 = scmp.eq.s32.totalorder %s21, 1
    %p219 = por %p217, %p218
    %p221 = scmp.ne.s32.totalorder %s204, %s220
    %p222 = scmp.eq.s32.totalorder %s21, 0
    %p223 = por %p221, %p222
    %p224 = scmp.le.s32.totalorder 1, %s15
    %p225 = scmp.lt.s32.totalorder %s15, 3
    %p226 = pnand %p224, %p225
    %p227 = pneg %p226
    // Predicated region
    $region9: #{ma_unet_forward.15} parent=5 // pred_check
      _
    $region10: #{ma_unet_forward.15} parent=5 // pred_check_branch
      %229 = sbr.rel (%p226) target = $region12
    $region11: #{ma_unet_forward.15} parent=5 // pred_region
      %s230 = ssub.s32 %s15, 1
      // Predicated region
      $region13: #{ma_unet_forward.15} parent=11 // pred_check
        %p231 = pneg %p104
      $region14: #{ma_unet_forward.15} parent=11 // pred_check_branch
        %233 = sbr.rel (%p231) target = $region16
      $region15: #{ma_unet_forward.15} parent=11 // pred_region
        _
      $region16: #{ma_unet_forward.15} parent=11 // pred_fallthru
        _
      // Predicated region
      $region17: #{ma_unet_forward.15} parent=11 // pred_check
        %p234 = pneg %p125
      $region18: #{ma_unet_forward.15} parent=11 // pred_check_branch
        %236 = sbr.rel (%p234) target = $region20
      $region19: #{ma_unet_forward.15} parent=11 // pred_region
        _
      $region20: #{ma_unet_forward.15} parent=11 // pred_fallthru
        _
      // Predicated region
      $region21: #{ma_unet_forward.15} parent=11 // pred_check
        %p237 = pneg %p146
      $region22: #{ma_unet_forward.15} parent=11 // pred_check_branch
        %239 = sbr.rel (%p237) target = $region24
      $region23: #{ma_unet_forward.15} parent=11 // pred_region
        _
      $region24: #{ma_unet_forward.15} parent=11 // pred_fallthru
        _
      // Predicated region
      $region25: #{ma_unet_forward.15} parent=11 // pred_check
        %p240 = pneg %p167
      $region26: #{ma_unet_forward.15} parent=11 // pred_check_branch
        %242 = sbr.rel (%p240) target = $region28
      $region27: #{ma_unet_forward.15} parent=11 // pred_region
        _
      $region28: #{ma_unet_forward.15} parent=11 // pred_fallthru
        _
      // Predicated region
      $region29: #{ma_unet_forward.15} parent=11 // pred_check
        %p243 = pneg %p188
      $region30: #{ma_unet_forward.15} parent=11 // pred_check_branch
        %245 = sbr.rel (%p243) target = $region32
      $region31: #{ma_unet_forward.15} parent=11 // pred_region
        _
      $region32: #{ma_unet_forward.15} parent=11 // pred_fallthru
        _
    $region12: #{ma_unet_forward.15} parent=5 // pred_fallthru
      _
    %p246 = scmp.lt.s32.totalorder %s15, 2
    // Predicated region
    $region33: #{ma_unet_forward.15} parent=5 // pred_check
      %p247 = pneg %p246
    $region34: #{ma_unet_forward.15} parent=5 // pred_check_branch
      %249 = sbr.rel (%p247) target = $region36
    $region35: #{ma_unet_forward.15} parent=5 // pred_region
      // Predicated region
      $region37: #{ma_unet_forward.15} parent=35 // pred_check
        %p250 = pneg %p49
      $region38: #{ma_unet_forward.15} parent=35 // pred_check_branch
        %252 = sbr.rel (%p250) target = $region40
      $region39: #{ma_unet_forward.15} parent=35 // pred_region
        %s253 = smul.u32 2, %s23
        %p254 = scmp.lt.s32.totalorder %s22, 1
        %s255 = scalar_select %p254, %s22, 1
        %p256 = scmp.lt.s32.totalorder %s253, 1
        %s257 = scalar_select %p256, %s253, 1
        %s258 = smul.addr %s255, 4
        %s259 = sadd.s32 %s257, %s258
        %s260 = smul.addr %s259, 8
        %s261 = scalar_lea.vmem %s0, %s260
        %s262 = smul.u32 2, %s23
      $region40: #{ma_unet_forward.15} parent=35 // pred_fallthru
        _
      // Predicated region
      $region41: #{ma_unet_forward.15} parent=35 // pred_check
        %p263 = pneg %p77
      $region42: #{ma_unet_forward.15} parent=35 // pred_check_branch
        %265 = sbr.rel (%p263) target = $region44
      $region43: #{ma_unet_forward.15} parent=35 // pred_region
        %s266 = smul.u32 2, %s23
        %p267 = scmp.lt.s32.totalorder %s22, 1
        %s268 = scalar_select %p267, %s22, 1
        %p269 = scmp.lt.s32.totalorder %s266, 1
        %s270 = scalar_select %p269, %s266, 1
        %s271 = smul.addr %s268, 2
        %s272 = sadd.s32 %s270, %s271
        %s273 = smul.addr %s272, 8
        %s274 = scalar_lea.vmem %s1, %s273
        %s275 = smul.u32 2, %s23
      $region44: #{ma_unet_forward.15} parent=35 // pred_fallthru
        _
    $region36: #{ma_unet_forward.15} parent=5 // pred_fallthru
      _
    %p276 = scmp.le.s32.totalorder 1, %s15
    %p277 = scmp.lt.s32.totalorder %s15, 3
    %p278 = pnand %p276, %p277
    %p279 = pneg %p278
    // Predicated region
    $region45: #{ma_unet_forward.15} parent=5 // pred_check
      _
    $region46: #{ma_unet_forward.15} parent=5 // pred_check_branch
      %281 = sbr.rel (%p278) target = $region48
    $region47: #{ma_unet_forward.15} parent=5 // pred_region
      %s282 = ssub.s32 %s15, 1
      %s283 = smul.u32 2, %s25
      %p284 = scmp.lt.s32.totalorder %s24, 1
      %s285 = scalar_select %p284, %s24, 1
      %p286 = scmp.lt.s32.totalorder %s283, 1
      %s287 = scalar_select %p286, %s283, 1
      %s288 = smul.addr %s285, 4
      %s289 = sadd.s32 %s287, %s288
      %s290 = smul.addr %s289, 8
      %s291 = scalar_lea.vmem %s0, %s290
      %p292 = pneg %p55
      %p293 = pneg %p52
      %s294 = smul.u32 2, %s25
      %p295 = scmp.lt.s32.totalorder %s24, 1
      %s296 = scalar_select %p295, %s24, 1
      %p297 = scmp.lt.s32.totalorder %s294, 1
      %s298 = scalar_select %p297, %s294, 1
      %s299 = smul.addr %s296, 2
      %s300 = sadd.s32 %s298, %s299
      %s301 = smul.addr %s300, 8
      %s302 = scalar_lea.vmem %s1, %s301
      %p303 = pneg %p83
      %p304 = pneg %p80
      %p305 = pneg %p104
      %p306 = pneg %p101
      %p307 = pneg %p125
      %p308 = pneg %p122
      %p309 = pneg %p146
      %p310 = pneg %p143
      %p311 = pneg %p167
      %p312 = pneg %p164
      %p313 = pneg %p188
      %p314 = pneg %p185
      %p315 = pneg %p216
      %p316 = pneg %p213
      %s317 = smul.u32 2, %s25
      %p318 = scmp.lt.s32.totalorder %s24, 1
      %s319 = scalar_select %p318, %s24, 1
      %p320 = scmp.lt.s32.totalorder %s317, 1
      %s321 = scalar_select %p320, %s317, 1
      %s322 = smul.addr %s319, 2
      %s323 = sadd.s32 %s321, %s322
      %s324 = smul.addr %s323, 8
      %s325 = scalar_lea.vmem %s7, %s324
      %s326 = smul.u32 2, %s25
      %p327 = scmp.lt.s32.totalorder %s24, 1
      %s328 = scalar_select %p327, %s24, 1
      %p329 = scmp.lt.s32.totalorder %s326, 1
      %s330 = scalar_select %p329, %s326, 1
      %s331 = smul.addr %s328, 4
      %s332 = sadd.s32 %s330, %s331
      %s333 = smul.addr %s332, 8
      %s334 = scalar_lea.vmem %s0, %s333
      %s335 = smul.u32 2, %s25
      %s336 = smul.u32 2, %s25
      %p337 = scmp.lt.s32.totalorder %s24, 1
      %s338 = scalar_select %p337, %s24, 1
      %p339 = scmp.lt.s32.totalorder %s336, 1
      %s340 = scalar_select %p339, %s336, 1
      %s341 = smul.addr %s338, 2
      %s342 = sadd.s32 %s340, %s341
      %s343 = smul.addr %s342, 8
      %s344 = scalar_lea.vmem %s1, %s343
      %s345 = smul.u32 2, %s25
      %s346 = smul.u32 2, %s25
      %p347 = scmp.lt.s32.totalorder %s24, 1
      %s348 = scalar_select %p347, %s24, 1
      %p349 = scmp.lt.s32.totalorder %s346, 1
      %s350 = scalar_select %p349, %s346, 1
      %s351 = smul.addr %s348, 2
      %s352 = sadd.s32 %s350, %s351
      %s353 = smul.addr %s352, 8
      %s354 = scalar_lea.vmem %s7, %s353
      %s355 = smul.u32 2, %s25
      %v356 = vld [vmem:[%s334] sm:$0xff]
      %v357 = vld [vmem:[%s334 + $0x8] sm:$0xff]
      %v358 = vld [vmem:[%s334 + $0x10] sm:$0xff]
      %v359 = vld [vmem:[%s334 + $0x18] sm:$0xff]
      %v360 = vld [vmem:[%s344] sm:$0xff]
      %v361 = vld [vmem:[%s344 + $0x8] sm:$0xff]
      %v362 = vld [vmem:[%s2] sm:$0xff]
      %v363 = vld [vmem:[%s3] sm:$0xff]
      %365 = vset.pattern.permute.xlu0 0
      %366 = vperm.xlu0 %365, %v363
      %v367 = vpop.permute.xlu0 %366
      %vm369 = vcmask 130048
      %v371 = vsel %vm369, %v362, 0
      %373 = vmatprep.subr.mxu0 0.0
      %374 = vmatpush1.msra.mxu0 0.0
      %375 = vmatprep.subr.mxu0 0.0
      %376 = vmatpush1.msra.mxu0 0.0
      %377 = vmatprep.subr.mxu0 0.0
      %378 = vmatpush1.msra.mxu0 0.0
      %379 = vmatprep.subr.mxu0 0.0
      %380 = vmatpush1.msra.mxu0 0.0
      %381 = vmatprep.subr.mxu0 0.0
      %382 = vmatpush1.msra.mxu0 0.0
      %383 = vmatprep.subr.mxu0 0.0
      %384 = vmatpush1.msra.mxu0 0.0
      %385 = vmatprep.subr.mxu0 0.0
      %386 = vmatpush1.msra.mxu0 0.0
      %387 = vmatprep.subr.mxu0 0.0
      %388 = vmatpush1.msra.mxu0 0.0
      %389 = vmatprep.subr.mxu0 0.0
      %390 = vmatpush1.msra.mxu0 0.0
      %391 = vmatprep.subr.mxu0 0.0
      %392 = vmatpush1.msra.mxu0 0.0
      %393 = vmatprep.subr.mxu0 0.0
      %394 = vmatpush1.msra.mxu0 0.0
      %395 = vmatprep.subr.mxu0 0.0
      %396 = vmatpush1.msra.mxu0 0.0
      %397 = vmatprep.subr.mxu0 0.0
      %398 = vmatpush1.msra.mxu0 0.0
      %399 = vmatprep.subr.mxu0 0.0
      %400 = vmatpush1.msra.mxu0 0.0
      %401 = vmatprep.subr.mxu0 %v359
      %402 = vmatpush1.msra.mxu0 %v358
      %403 = vmatprep.subr.mxu0 %v357
      %404 = vmatpush1.msra.mxu0 %v356
      %405 = vmatprep.subr.mxu0 0.0
      %406 = vmatpush2.msra.mxu0 0.0
      %407 = vmatprep.subr.mxu0 0.0
      %408 = vmatpush2.msra.mxu0 0.0
      %409 = vmatprep.subr.mxu0 0.0
      %410 = vmatpush2.msra.mxu0 0.0
      %411 = vmatprep.subr.mxu0 0.0
      %412 = vmatpush2.msra.mxu0 0.0
      %413 = vmatprep.subr.mxu0 0.0
      %414 = vmatpush2.msra.mxu0 0.0
      %415 = vmatprep.subr.mxu0 0.0
      %416 = vmatpush2.msra.mxu0 0.0
      %417 = vmatprep.subr.mxu0 0.0
      %418 = vmatpush2.msra.mxu0 0.0
      %419 = vmatprep.subr.mxu0 0.0
      %420 = vmatpush2.msra.mxu0 0.0
      %421 = vmatprep.subr.mxu0 0.0
      %422 = vmatpush2.msra.mxu0 0.0
      %423 = vmatprep.subr.mxu0 0.0
      %424 = vmatpush2.msra.mxu0 0.0
      %425 = vmatprep.subr.mxu0 0.0
      %426 = vmatpush2.msra.mxu0 0.0
      %427 = vmatprep.subr.mxu0 0.0
      %428 = vmatpush2.msra.mxu0 0.0
      %429 = vmatprep.subr.mxu0 0.0
      %430 = vmatpush2.msra.mxu0 0.0
      %431 = vmatprep.subr.mxu0 0.0
      %432 = vmatpush2.msra.mxu0 0.0
      %433 = vmatprep.subr.mxu0 0.0
      %434 = vmatpush2.msra.mxu0 0.0
      %435 = vmatprep.subr.mxu0 0.0
      %436 = vmatpush2.msra.mxu0 0.0
      %437 = vmatprep.mubr.f32.mxu0 0.0
      %438 = vmatmul.mubr.f32.gmra.mxu0 %v371
      %v439 = vpop.f32.mrf.mxu0
      %v440 = vadd.f32 %v367, %v439
      %v441 = vpop.f32.mrf.mxu0
      %v442 = vadd.f32 %v367, %v441
      %443 = vdwg.mxu0
      %v444 = vld [vmem:[%s4] sm:$0xff]
      %vm445 = vcmask 64512
      %v447 = vsel %vm445, %v444, 0
      %449 = vmatprep.subr.mxu0 0.0
      %450 = vmatpush1.msra.mxu0 0.0
      %451 = vmatprep.subr.mxu0 0.0
      %452 = vmatpush1.msra.mxu0 0.0
      %453 = vmatprep.subr.mxu0 0.0
      %454 = vmatpush1.msra.mxu0 0.0
      %455 = vmatprep.subr.mxu0 0.0
      %456 = vmatpush1.msra.mxu0 0.0
      %457 = vmatprep.subr.mxu0 0.0
      %458 = vmatpush1.msra.mxu0 0.0
      %459 = vmatprep.subr.mxu0 0.0
      %460 = vmatpush1.msra.mxu0 0.0
      %461 = vmatprep.subr.mxu0 0.0
      %462 = vmatpush1.msra.mxu0 0.0
      %463 = vmatprep.subr.mxu0 0.0
      %464 = vmatpush1.msra.mxu0 0.0
      %465 = vmatprep.subr.mxu0 0.0
      %466 = vmatpush1.msra.mxu0 0.0
      %467 = vmatprep.subr.mxu0 0.0
      %468 = vmatpush1.msra.mxu0 0.0
      %469 = vmatprep.subr.mxu0 0.0
      %470 = vmatpush1.msra.mxu0 0.0
      %471 = vmatprep.subr.mxu0 0.0
      %472 = vmatpush1.msra.mxu0 0.0
      %473 = vmatprep.subr.mxu0 0.0
      %474 = vmatpush1.msra.mxu0 0.0
      %475 = vmatprep.subr.mxu0 0.0
      %476 = vmatpush1.msra.mxu0 0.0
      %477 = vmatprep.subr.mxu0 0.0
      %478 = vmatpush1.msra.mxu0 0.0
      %479 = vmatprep.subr.mxu0 %v361
      %480 = vmatpush1.msra.mxu0 %v360
      %481 = vmatprep.subr.mxu0 0.0
      %482 = vmatpush2.msra.mxu0 0.0
      %483 = vmatprep.subr.mxu0 0.0
      %484 = vmatpush2.msra.mxu0 0.0
      %485 = vmatprep.subr.mxu0 0.0
      %486 = vmatpush2.msra.mxu0 0.0
      %487 = vmatprep.subr.mxu0 0.0
      %488 = vmatpush2.msra.mxu0 0.0
      %489 = vmatprep.subr.mxu0 0.0
      %490 = vmatpush2.msra.mxu0 0.0
      %491 = vmatprep.subr.mxu0 0.0
      %492 = vmatpush2.msra.mxu0 0.0
      %493 = vmatprep.subr.mxu0 0.0
      %494 = vmatpush2.msra.mxu0 0.0
      %495 = vmatprep.subr.mxu0 0.0
      %496 = vmatpush2.msra.mxu0 0.0
      %497 = vmatprep.subr.mxu0 0.0
      %498 = vmatpush2.msra.mxu0 0.0
      %499 = vmatprep.subr.mxu0 0.0
      %500 = vmatpush2.msra.mxu0 0.0
      %501 = vmatprep.subr.mxu0 0.0
      %502 = vmatpush2.msra.mxu0 0.0
      %503 = vmatprep.subr.mxu0 0.0
      %504 = vmatpush2.msra.mxu0 0.0
      %505 = vmatprep.subr.mxu0 0.0
      %506 = vmatpush2.msra.mxu0 0.0
      %507 = vmatprep.subr.mxu0 0.0
      %508 = vmatpush2.msra.mxu0 0.0
      %509 = vmatprep.subr.mxu0 0.0
      %510 = vmatpush2.msra.mxu0 0.0
      %511 = vmatprep.subr.mxu0 0.0
      %512 = vmatpush2.msra.mxu0 0.0
      %513 = vmatprep.mubr.f32.mxu0 0.0
      %514 = vmatmul.mubr.f32.gmra.mxu0 %v447
      %v515 = vpop.f32.mrf.mxu0
      %v516 = vadd.f32 0.0, %v515
      %v517 = vpop.f32.mrf.mxu0
      %v518 = vadd.f32 0.0, %v517
      %519 = vdwg.mxu0
      %v520 = vadd.f32 %v440, %v516
      %v521 = vadd.f32 %v442, %v518
      %v522 = vmax.f32 %v520, 0.0
      %v523 = vmax.f32 %v521, 0.0
      %v524 = vld [vmem:[%s5] sm:$0x1]
      %v525 = vld [vmem:[#allocation2] sm:$0x1]
      %527 = vset.pattern.permute.xlu0 0
      %528 = vperm.xlu0 %527, %v525
      %v529 = vpop.permute.xlu0 %528
      %v531 = vlaneseq
      %v532 = vshrl.u32 %v531, 7
      %v533 = vsub.s32 0, %v532
      %v534 = vrot.slane %v529, %v533
      %v536 = vsel %vm445, %v524, 0
      %538 = vmatprep.subr.mxu0 0.0
      %539 = vmatpush1.msra.mxu0 0.0
      %540 = vmatprep.subr.mxu0 0.0
      %541 = vmatpush1.msra.mxu0 0.0
      %542 = vmatprep.subr.mxu0 0.0
      %543 = vmatpush1.msra.mxu0 0.0
      %544 = vmatprep.subr.mxu0 0.0
      %545 = vmatpush1.msra.mxu0 0.0
      %546 = vmatprep.subr.mxu0 0.0
      %547 = vmatpush1.msra.mxu0 0.0
      %548 = vmatprep.subr.mxu0 0.0
      %549 = vmatpush1.msra.mxu0 0.0
      %550 = vmatprep.subr.mxu0 0.0
      %551 = vmatpush1.msra.mxu0 0.0
      %552 = vmatprep.subr.mxu0 0.0
      %553 = vmatpush1.msra.mxu0 0.0
      %554 = vmatprep.subr.mxu0 0.0
      %555 = vmatpush1.msra.mxu0 0.0
      %556 = vmatprep.subr.mxu0 0.0
      %557 = vmatpush1.msra.mxu0 0.0
      %558 = vmatprep.subr.mxu0 0.0
      %559 = vmatpush1.msra.mxu0 0.0
      %560 = vmatprep.subr.mxu0 0.0
      %561 = vmatpush1.msra.mxu0 0.0
      %562 = vmatprep.subr.mxu0 0.0
      %563 = vmatpush1.msra.mxu0 0.0
      %564 = vmatprep.subr.mxu0 0.0
      %565 = vmatpush1.msra.mxu0 0.0
      %566 = vmatprep.subr.mxu0 0.0
      %567 = vmatpush1.msra.mxu0 0.0
      %568 = vmatprep.subr.mxu0 %v523
      %569 = vmatpush1.msra.mxu0 %v522
      %570 = vmatprep.subr.mxu0 0.0
      %571 = vmatpush2.msra.mxu0 0.0
      %572 = vmatprep.subr.mxu0 0.0
      %573 = vmatpush2.msra.mxu0 0.0
      %574 = vmatprep.subr.mxu0 0.0
      %575 = vmatpush2.msra.mxu0 0.0
      %576 = vmatprep.subr.mxu0 0.0
      %577 = vmatpush2.msra.mxu0 0.0
      %578 = vmatprep.subr.mxu0 0.0
      %579 = vmatpush2.msra.mxu0 0.0
      %580 = vmatprep.subr.mxu0 0.0
      %581 = vmatpush2.msra.mxu0 0.0
      %582 = vmatprep.subr.mxu0 0.0
      %583 = vmatpush2.msra.mxu0 0.0
      %584 = vmatprep.subr.mxu0 0.0
      %585 = vmatpush2.msra.mxu0 0.0
      %586 = vmatprep.subr.mxu0 0.0
      %587 = vmatpush2.msra.mxu0 0.0
      %588 = vmatprep.subr.mxu0 0.0
      %589 = vmatpush2.msra.mxu0 0.0
      %590 = vmatprep.subr.mxu0 0.0
      %591 = vmatpush2.msra.mxu0 0.0
      %592 = vmatprep.subr.mxu0 0.0
      %593 = vmatpush2.msra.mxu0 0.0
      %594 = vmatprep.subr.mxu0 0.0
      %595 = vmatpush2.msra.mxu0 0.0
      %596 = vmatprep.subr.mxu0 0.0
      %597 = vmatpush2.msra.mxu0 0.0
      %598 = vmatprep.subr.mxu0 0.0
      %599 = vmatpush2.msra.mxu0 0.0
      %600 = vmatprep.subr.mxu0 0.0
      %601 = vmatpush2.msra.mxu0 0.0
      %602 = vmatprep.mubr.f32.mxu0 0.0
      %603 = vmatmul.mubr.f32.gmra.mxu0 %v536
      %v604 = vpop.f32.mrf.mxu0
      %v605 = vadd.f32 %v534, %v604
      %v606 = vpop.f32.mrf.mxu0
      %v607 = vadd.f32 %v534, %v606
      %608 = vdwg.mxu0
      %v609 = vxor.u32 %v605, 2147483648
      %v610 = vxor.u32 %v607, 2147483648
      %v611 = vmul.f32 %v609, 1.442695
      %v612 = vpow.pop %v611
      %v613 = vmul.f32 %v610, 1.442695
      %v614 = vpow.pop %v613
      %v615 = vadd.f32 %v612, 1.0
      %v616 = vadd.f32 %v614, 1.0
      %v617 = vrcp.pop %v615
      %v618 = vmul.f32 1.0, %v617
      %v619 = vrcp.pop %v616
      %v620 = vmul.f32 1.0, %v619
      %v621 = vlaneseq
      %v622 = vshrl.u32 %v621, 7
      %v623 = vsub.s32 0, %v622
      %v624 = vrot.slane %v618, %v623
      %v625 = vlaneseq
      %v626 = vshrl.u32 %v625, 7
      %v627 = vsub.s32 0, %v626
      %v628 = vrot.slane %v620, %v627
      %v629 = vmul.f32 %v360, %v624
      %v630 = vmul.f32 %v361, %v628
      %631 = vst [vmem:[%s354] sm:$0xff] %v629
      %632 = vst [vmem:[%s354 + $0x8] sm:$0xff] %v630
      %s633 = smul.u32 2, %s25
      %p634 = scmp.lt.s32.totalorder %s24, 1
      %s635 = scalar_select %p634, %s24, 1
      %p636 = scmp.lt.s32.totalorder %s633, 1
      %s637 = scalar_select %p636, %s633, 1
      %s638 = smul.addr %s635, 2
      %s639 = sadd.s32 %s637, %s638
      %s640 = smul.addr %s639, 8
      %s641 = scalar_lea.vmem %s7, %s640
      // Predicated region
      $region49: #{ma_unet_forward.15} parent=47 // pred_check
        %p642 = pneg %p213
      $region50: #{ma_unet_forward.15} parent=47 // pred_check_branch
        %644 = sbr.rel (%p642) target = $region52
      $region51: #{ma_unet_forward.15} parent=47 // pred_region
        %s645 = smul.u32 2, %s25
      $region52: #{ma_unet_forward.15} parent=47 // pred_fallthru
        _
    $region48: #{ma_unet_forward.15} parent=5 // pred_fallthru
      _
    %p646 = scmp.le.s32.totalorder 2, %s15
    // Predicated region
    $region53: #{ma_unet_forward.15} parent=5 // pred_check
      %p647 = pneg %p646
    $region54: #{ma_unet_forward.15} parent=5 // pred_check_branch
      %649 = sbr.rel (%p647) target = $region56
    $region55: #{ma_unet_forward.15} parent=5 // pred_region
      %s650 = ssub.s32 %s15, 2
      // Predicated region
      $region57: #{ma_unet_forward.15} parent=55 // pred_check
        %p651 = pneg %p219
      $region58: #{ma_unet_forward.15} parent=55 // pred_check_branch
        %653 = sbr.rel (%p651) target = $region60
      $region59: #{ma_unet_forward.15} parent=55 // pred_region
        %s654 = smul.u32 2, %s27
        %p655 = scmp.lt.s32.totalorder %s26, 1
        %s656 = scalar_select %p655, %s26, 1
        %p657 = scmp.lt.s32.totalorder %s654, 1
        %s658 = scalar_select %p657, %s654, 1
        %s659 = smul.addr %s656, 2
        %s660 = sadd.s32 %s658, %s659
        %s661 = smul.addr %s660, 8
        %s662 = scalar_lea.vmem %s7, %s661
      $region60: #{ma_unet_forward.15} parent=55 // pred_fallthru
        _
    $region56: #{ma_unet_forward.15} parent=5 // pred_fallthru
      _
  $region6: #{ma_unet_forward.15} parent=0 // loop_footer
    %s19 = sadd.s32 1, %s15
  $region7: #{ma_unet_forward.15} parent=0 // loop_footer_branch
    %14 = sbr.rel target = $region3
  $region8: #{ma_unet_forward.15} parent=0 // loop_exit
    _

// kernel: ma_unet_forward.14
$region0: #{ma_unet_forward.14}
  #allocation0 [shape = 'u32[]', space=smem, size = 0x4, offset = 0x4, fixed_abs, tag = 'smem constant byte address 0x4 - core index']
  #allocation1 [shape = 'u32[144,128]{1,0:T(1,128)}', space=vmem, size = 0x12000, scoped, tag = 'internal scratch']
  %s0 = inlined_call_operand.vmem [shape: f32[2,288,64], index: 0, kind: input, shape index: {}]
  %s1 = inlined_call_operand.vmem [shape: f32[2,144,64], index: 1, kind: input, shape index: {}]
  %s2 = inlined_call_operand.vmem [shape: f32[16,288], index: 2, kind: input, shape index: {}]
  %s3 = inlined_call_operand.vmem [shape: f32[16,144], index: 3, kind: input, shape index: {}]
  %s4 = inlined_call_operand.vmem [shape: f32[16,1], index: 4, kind: input, shape index: {}]
  %s5 = inlined_call_operand.vmem [shape: f32[2,16,64], index: 5, kind: output, shape index: {}]
  %s6 = sld [smem:[#allocation0]]
  $region53: #{ma_unet_forward.14} parent=0
    _
  %s8 = ssub.s32 1, %s6
  %s9 = scalar_select 0, %s8, %s6
  loop: start=0, step=1, limit=4
  $region2: #{ma_unet_forward.14} parent=0 // loop_pre_header
    _
  $region3: #{ma_unet_forward.14} parent=0 // loop_header
    %s11 = sphi 0, %s15
    %p12 = scmp.ge.s32.totalorder %s11, 4
    %s18 = sphi 0, %s30
    %s19 = sphi 0, %s26
    %s20 = sphi 0, %s18
    %s21 = sphi 0, %s19
    %s22 = sphi 0, %s20
    %s23 = sphi 0, %s21
    %s35 = sphi 0, %s37
    %s38 = sphi 0, %s35
    %s39 = sphi 0, %s38
    %s55 = sphi 0, %s39
    %s63 = sphi 0, %s65
    %s66 = sphi 0, %s63
    %s67 = sphi 0, %s66
    %s83 = sphi 0, %s67
    %s87 = sphi 0, %s87
    %s89 = sphi 0, %s87
    %s90 = sphi 0, %s89
    %s104 = sphi 0, %s90
    %s108 = sphi 0, %s108
    %s110 = sphi 0, %s108
    %s111 = sphi 0, %s110
    %s125 = sphi 0, %s111
    %s129 = sphi 0, %s129
    %s131 = sphi 0, %s129
    %s132 = sphi 0, %s131
    %s146 = sphi 0, %s132
    %s154 = sphi 0, %s156
    %s157 = sphi 0, %s154
    %s158 = sphi 0, %s157
    %s174 = sphi 0, %s158
  $region4: #{ma_unet_forward.14} parent=0 // loop_header_branch
    %14 = sbr.rel (%p12) target = $region8
  $region5: #{ma_unet_forward.14} parent=0 // loop_body
    %s16 = ssub.s32 %s11, 1
    %s17 = ssub.s32 %s11, 2
    %s24 = sadd.s32 1, %s19
    %p25 = scmp.ge.s32.totalorder %s24, 1
    %s26 = scalar_select %p25, 0, %s24
    %s27 = sadd.s32 1, %s18
    %s28 = scalar_select %p25, %s27, %s18
    %p29 = scmp.ge.s32.totalorder %s28, 2
    %s30 = scalar_select %p29, 0, %s28
    %s31 = ssub.s32 %s18, %s30
    %s32 = ssub.s32 %s19, %s26
    %s33 = sor.u32 %s31, %s32
    %p34 = scmp.eq.s32.totalorder %s33, 0
    %s36 = sadd.s32 %s35, 1
    %s37 = scalar_select %p34, %s35, %s36
    %p40 = pneg %p34
    %p41 = scmp.eq.s32.totalorder %s11, 1
    %p42 = por %p40, %p41
    %p43 = scmp.ne.s32.totalorder %s35, %s38
    %p44 = scmp.eq.s32.totalorder %s11, 0
    %p45 = por %p43, %p44
    %p46 = scmp.ne.s32.totalorder %s35, %s38
    %p47 = scmp.eq.s32.totalorder %s16, 1
    %p48 = por %p46, %p47
    %p49 = scmp.ne.s32.totalorder %s38, %s39
    %p50 = scmp.eq.s32.totalorder %s16, 0
    %p51 = por %p49, %p50
    %p52 = scmp.ne.s32.totalorder %s38, %s39
    %p53 = scmp.eq.s32.totalorder %s17, 1
    %p54 = por %p52, %p53
    %p56 = scmp.ne.s32.totalorder %s39, %s55
    %p57 = scmp.eq.s32.totalorder %s17, 0
    %p58 = por %p56, %p57
    %s59 = ssub.s32 %s18, %s30
    %s60 = ssub.s32 %s19, %s26
    %s61 = sor.u32 %s59, %s60
    %p62 = scmp.eq.s32.totalorder %s61, 0
    %s64 = sadd.s32 %s63, 1
    %s65 = scalar_select %p62, %s63, %s64
    %p68 = pneg %p62
    %p69 = scmp.eq.s32.totalorder %s11, 1
    %p70 = por %p68, %p69
    %p71 = scmp.ne.s32.totalorder %s63, %s66
    %p72 = scmp.eq.s32.totalorder %s11, 0
    %p73 = por %p71, %p72
    %p74 = scmp.ne.s32.totalorder %s63, %s66
    %p75 = scmp.eq.s32.totalorder %s16, 1
    %p76 = por %p74, %p75
    %p77 = scmp.ne.s32.totalorder %s66, %s67
    %p78 = scmp.eq.s32.totalorder %s16, 0
    %p79 = por %p77, %p78
    %p80 = scmp.ne.s32.totalorder %s66, %s67
    %p81 = scmp.eq.s32.totalorder %s17, 1
    %p82 = por %p80, %p81
    %p84 = scmp.ne.s32.totalorder %s67, %s83
    %p85 = scmp.eq.s32.totalorder %s17, 0
    %p86 = por %p84, %p85
    %s88 = sadd.s32 %s87, 1
    %p91 = scmp.eq.s32.totalorder %s11, 1
    %p92 = scmp.ne.s32.totalorder %s87, %s89
    %p93 = scmp.eq.s32.totalorder %s11, 0
    %p94 = por %p92, %p93
    %p95 = scmp.ne.s32.totalorder %s87, %s89
    %p96 = scmp.eq.s32.totalorder %s16, 1
    %p97 = por %p95, %p96
    %p98 = scmp.ne.s32.totalorder %s89, %s90
    %p99 = scmp.eq.s32.totalorder %s16, 0
    %p100 = por %p98, %p99
    %p101 = scmp.ne.s32.totalorder %s89, %s90
    %p102 = scmp.eq.s32.totalorder %s17, 1
    %p103 = por %p101, %p102
    %p105 = scmp.ne.s32.totalorder %s90, %s104
    %p106 = scmp.eq.s32.totalorder %s17, 0
    %p107 = por %p105, %p106
    %s109 = sadd.s32 %s108, 1
    %p112 = scmp.eq.s32.totalorder %s11, 1
    %p113 = scmp.ne.s32.totalorder %s108, %s110
    %p114 = scmp.eq.s32.totalorder %s11, 0
    %p115 = por %p113, %p114
    %p116 = scmp.ne.s32.totalorder %s108, %s110
    %p117 = scmp.eq.s32.totalorder %s16, 1
    %p118 = por %p116, %p117
    %p119 = scmp.ne.s32.totalorder %s110, %s111
    %p120 = scmp.eq.s32.totalorder %s16, 0
    %p121 = por %p119, %p120
    %p122 = scmp.ne.s32.totalorder %s110, %s111
    %p123 = scmp.eq.s32.totalorder %s17, 1
    %p124 = por %p122, %p123
    %p126 = scmp.ne.s32.totalorder %s111, %s125
    %p127 = scmp.eq.s32.totalorder %s17, 0
    %p128 = por %p126, %p127
    %s130 = sadd.s32 %s129, 1
    %p133 = scmp.eq.s32.totalorder %s11, 1
    %p134 = scmp.ne.s32.totalorder %s129, %s131
    %p135 = scmp.eq.s32.totalorder %s11, 0
    %p136 = por %p134, %p135
    %p137 = scmp.ne.s32.totalorder %s129, %s131
    %p138 = scmp.eq.s32.totalorder %s16, 1
    %p139 = por %p137, %p138
    %p140 = scmp.ne.s32.totalorder %s131, %s132
    %p141 = scmp.eq.s32.totalorder %s16, 0
    %p142 = por %p140, %p141
    %p143 = scmp.ne.s32.totalorder %s131, %s132
    %p144 = scmp.eq.s32.totalorder %s17, 1
    %p145 = por %p143, %p144
    %p147 = scmp.ne.s32.totalorder %s132, %s146
    %p148 = scmp.eq.s32.totalorder %s17, 0
    %p149 = por %p147, %p148
    %s150 = ssub.s32 %s18, %s30
    %s151 = ssub.s32 %s19, %s26
    %s152 = sor.u32 %s150, %s151
    %p153 = scmp.eq.s32.totalorder %s152, 0
    %s155 = sadd.s32 %s154, 1
    %s156 = scalar_select %p153, %s154, %s155
    %p159 = pneg %p153
    %p160 = scmp.eq.s32.totalorder %s11, 1
    %p161 = por %p159, %p160
    %p162 = scmp.ne.s32.totalorder %s154, %s157
    %p163 = scmp.eq.s32.totalorder %s11, 0
    %p164 = por %p162, %p163
    %p165 = scmp.ne.s32.totalorder %s154, %s157
    %p166 = scmp.eq.s32.totalorder %s16, 1
    %p167 = por %p165, %p166
    %p168 = scmp.ne.s32.totalorder %s157, %s158
    %p169 = scmp.eq.s32.totalorder %s16, 0
    %p170 = por %p168, %p169
    %p171 = scmp.ne.s32.totalorder %s157, %s158
    %p172 = scmp.eq.s32.totalorder %s17, 1
    %p173 = por %p171, %p172
    %p175 = scmp.ne.s32.totalorder %s158, %s174
    %p176 = scmp.eq.s32.totalorder %s17, 0
    %p177 = por %p175, %p176
    %p178 = scmp.le.s32.totalorder 1, %s11
    %p179 = scmp.lt.s32.totalorder %s11, 3
    %p180 = pnand %p178, %p179
    %p181 = pneg %p180
    // Predicated region
    $region9: #{ma_unet_forward.14} parent=5 // pred_check
      _
    $region10: #{ma_unet_forward.14} parent=5 // pred_check_branch
      %183 = sbr.rel (%p180) target = $region12
    $region11: #{ma_unet_forward.14} parent=5 // pred_region
      %s184 = ssub.s32 %s11, 1
      // Predicated region
      $region13: #{ma_unet_forward.14} parent=11 // pred_check
        %p185 = pneg %p100
      $region14: #{ma_unet_forward.14} parent=11 // pred_check_branch
        %187 = sbr.rel (%p185) target = $region16
      $region15: #{ma_unet_forward.14} parent=11 // pred_region
        _
      $region16: #{ma_unet_forward.14} parent=11 // pred_fallthru
        _
      // Predicated region
      $region17: #{ma_unet_forward.14} parent=11 // pred_check
        %p188 = pneg %p121
      $region18: #{ma_unet_forward.14} parent=11 // pred_check_branch
        %190 = sbr.rel (%p188) target = $region20
      $region19: #{ma_unet_forward.14} parent=11 // pred_region
        _
      $region20: #{ma_unet_forward.14} parent=11 // pred_fallthru
        _
      // Predicated region
      $region21: #{ma_unet_forward.14} parent=11 // pred_check
        %p191 = pneg %p142
      $region22: #{ma_unet_forward.14} parent=11 // pred_check_branch
        %193 = sbr.rel (%p191) target = $region24
      $region23: #{ma_unet_forward.14} parent=11 // pred_region
        _
      $region24: #{ma_unet_forward.14} parent=11 // pred_fallthru
        _
    $region12: #{ma_unet_forward.14} parent=5 // pred_fallthru
      _
    %p194 = scmp.lt.s32.totalorder %s11, 2
    // Predicated region
    $region25: #{ma_unet_forward.14} parent=5 // pred_check
      %p195 = pneg %p194
    $region26: #{ma_unet_forward.14} parent=5 // pred_check_branch
      %197 = sbr.rel (%p195) target = $region28
    $region27: #{ma_unet_forward.14} parent=5 // pred_region
      // Predicated region
      $region29: #{ma_unet_forward.14} parent=27 // pred_check
        %p198 = pneg %p45
      $region30: #{ma_unet_forward.14} parent=27 // pred_check_branch
        %200 = sbr.rel (%p198) target = $region32
      $region31: #{ma_unet_forward.14} parent=27 // pred_region
        %p201 = scmp.lt.s32.totalorder %s18, 1
        %s202 = scalar_select %p201, %s18, 1
        %p203 = scmp.lt.s32.totalorder %s19, 0
        %s204 = scalar_select %p203, %s19, 0
        %s205 = smul.addr %s202, 36
        %s206 = sadd.s32 %s204, %s205
        %s207 = smul.addr %s206, 8
        %s208 = scalar_lea.vmem %s0, %s207
      $region32: #{ma_unet_forward.14} parent=27 // pred_fallthru
        _
      // Predicated region
      $region33: #{ma_unet_forward.14} parent=27 // pred_check
        %p209 = pneg %p73
      $region34: #{ma_unet_forward.14} parent=27 // pred_check_branch
        %211 = sbr.rel (%p209) target = $region36
      $region35: #{ma_unet_forward.14} parent=27 // pred_region
        %p212 = scmp.lt.s32.totalorder %s18, 1
        %s213 = scalar_select %p212, %s18, 1
        %p214 = scmp.lt.s32.totalorder %s19, 0
        %s215 = scalar_select %p214, %s19, 0
        %s216 = smul.addr %s213, 18
        %s217 = sadd.s32 %s215, %s216
        %s218 = smul.addr %s217, 8
        %s219 = scalar_lea.vmem %s1, %s218
      $region36: #{ma_unet_forward.14} parent=27 // pred_fallthru
        _
    $region28: #{ma_unet_forward.14} parent=5 // pred_fallthru
      _
    %p220 = scmp.le.s32.totalorder 1, %s11
    %p221 = scmp.lt.s32.totalorder %s11, 3
    %p222 = pnand %p220, %p221
    %p223 = pneg %p222
    // Predicated region
    $region37: #{ma_unet_forward.14} parent=5 // pred_check
      _
    $region38: #{ma_unet_forward.14} parent=5 // pred_check_branch
      %225 = sbr.rel (%p222) target = $region40
    $region39: #{ma_unet_forward.14} parent=5 // pred_region
      %s226 = ssub.s32 %s11, 1
      %p227 = scmp.lt.s32.totalorder %s20, 1
      %s228 = scalar_select %p227, %s20, 1
      %p229 = scmp.lt.s32.totalorder %s21, 0
      %s230 = scalar_select %p229, %s21, 0
      %s231 = smul.addr %s228, 36
      %s232 = sadd.s32 %s230, %s231
      %s233 = smul.addr %s232, 8
      %s234 = scalar_lea.vmem %s0, %s233
      %p235 = pneg %p51
      %p236 = pneg %p48
      %p237 = scmp.lt.s32.totalorder %s20, 1
      %s238 = scalar_select %p237, %s20, 1
      %p239 = scmp.lt.s32.totalorder %s21, 0
      %s240 = scalar_select %p239, %s21, 0
      %s241 = smul.addr %s238, 18
      %s242 = sadd.s32 %s240, %s241
      %s243 = smul.addr %s242, 8
      %s244 = scalar_lea.vmem %s1, %s243
      %p245 = pneg %p79
      %p246 = pneg %p76
      %p247 = pneg %p100
      %p248 = pneg %p97
      %p249 = pneg %p121
      %p250 = pneg %p118
      %p251 = pneg %p142
      %p252 = pneg %p139
      %p253 = pneg %p170
      %p254 = pneg %p167
      %p255 = scmp.lt.s32.totalorder %s20, 1
      %s256 = scalar_select %p255, %s20, 1
      %p257 = scmp.lt.s32.totalorder %s21, 0
      %s258 = scalar_select %p257, %s21, 0
      %s259 = smul.addr %s256, 2
      %s260 = sadd.s32 %s258, %s259
      %s261 = smul.addr %s260, 8
      %s262 = scalar_lea.vmem %s5, %s261
      %p263 = scmp.lt.s32.totalorder %s20, 1
      %s264 = scalar_select %p263, %s20, 1
      %p265 = scmp.lt.s32.totalorder %s21, 0
      %s266 = scalar_select %p265, %s21, 0
      %s267 = smul.addr %s264, 36
      %s268 = sadd.s32 %s266, %s267
      %s269 = smul.addr %s268, 8
      %s270 = scalar_lea.vmem %s0, %s269
      %p271 = scmp.lt.s32.totalorder %s20, 1
      %s272 = scalar_select %p271, %s20, 1
      %p273 = scmp.lt.s32.totalorder %s21, 0
      %s274 = scalar_select %p273, %s21, 0
      %s275 = smul.addr %s272, 18
      %s276 = sadd.s32 %s274, %s275
      %s277 = smul.addr %s276, 8
      %s278 = scalar_lea.vmem %s1, %s277
      %p279 = scmp.lt.s32.totalorder %s20, 1
      %s280 = scalar_select %p279, %s20, 1
      %p281 = scmp.lt.s32.totalorder %s21, 0
      %s282 = scalar_select %p281, %s21, 0
      %s283 = smul.addr %s280, 2
      %s284 = sadd.s32 %s282, %s283
      %s285 = smul.addr %s284, 8
      %s286 = scalar_lea.vmem %s5, %s285
      %v287 = vld [vmem:[%s2] sm:$0xff]
      %v288 = vld [vmem:[%s2 + $0x8] sm:$0xff]
      %v289 = vld [vmem:[%s2 + $0x10] sm:$0xff]
      %v290 = vld [vmem:[%s2 + $0x18] sm:$0xff]
      %v291 = vld [vmem:[%s2 + $0x20] sm:$0xff]
      %v292 = vld [vmem:[%s2 + $0x28] sm:$0xff]
      %v293 = vld [vmem:[%s270] sm:$0xff]
      %v294 = vld [vmem:[%s270 + $0x8] sm:$0xff]
      %v295 = vld [vmem:[%s270 + $0x10] sm:$0xff]
      %v296 = vld [vmem:[%s270 + $0x18] sm:$0xff]
      %v297 = vld [vmem:[%s270 + $0x20] sm:$0xff]
      %v298 = vld [vmem:[%s270 + $0x28] sm:$0xff]
      %v299 = vld [vmem:[%s270 + $0x30] sm:$0xff]
      %v300 = vld [vmem:[%s270 + $0x38] sm:$0xff]
      %v301 = vld [vmem:[%s270 + $0x40] sm:$0xff]
      %v302 = vld [vmem:[%s270 + $0x48] sm:$0xff]
      %v303 = vld [vmem:[%s270 + $0x50] sm:$0xff]
      %v304 = vld [vmem:[%s270 + $0x58] sm:$0xff]
      %v305 = vld [vmem:[%s270 + $0x60] sm:$0xff]
      %v306 = vld [vmem:[%s270 + $0x68] sm:$0xff]
      %v307 = vld [vmem:[%s270 + $0x70] sm:$0xff]
      %v308 = vld [vmem:[%s270 + $0x78] sm:$0xff]
      %v309 = vld [vmem:[%s270 + $0x80] sm:$0xff]
      %v310 = vld [vmem:[%s270 + $0x88] sm:$0xff]
      %v311 = vld [vmem:[%s270 + $0x90] sm:$0xff]
      %v312 = vld [vmem:[%s270 + $0x98] sm:$0xff]
      %v313 = vld [vmem:[%s270 + $0xa0] sm:$0xff]
      %v314 = vld [vmem:[%s270 + $0xa8] sm:$0xff]
      %v315 = vld [vmem:[%s270 + $0xb0] sm:$0xff]
      %v316 = vld [vmem:[%s270 + $0xb8] sm:$0xff]
      %v317 = vld [vmem:[%s270 + $0xc0] sm:$0xff]
      %v318 = vld [vmem:[%s270 + $0xc8] sm:$0xff]
      %v319 = vld [vmem:[%s270 + $0xd0] sm:$0xff]
      %v320 = vld [vmem:[%s270 + $0xd8] sm:$0xff]
      %v321 = vld [vmem:[%s270 + $0xe0] sm:$0xff]
      %v322 = vld [vmem:[%s270 + $0xe8] sm:$0xff]
      %v323 = vld [vmem:[%s270 + $0xf0] sm:$0xff]
      %v324 = vld [vmem:[%s270 + $0xf8] sm:$0xff]
      %v325 = vld [vmem:[%s270 + $0x100] sm:$0xff]
      %v326 = vld [vmem:[%s270 + $0x108] sm:$0xff]
      %v327 = vld [vmem:[%s270 + $0x110] sm:$0xff]
      %v328 = vld [vmem:[%s270 + $0x118] sm:$0xff]
      %v329 = vld [vmem:[%s3] sm:$0xff]
      %v330 = vld [vmem:[%s3 + $0x8] sm:$0xff]
      %v331 = vld [vmem:[%s3 + $0x10] sm:$0xff]
      %v332 = vld [vmem:[%s3 + $0x18] sm:$0xff]
      %v333 = vld [vmem:[%s278] sm:$0xff]
      %v334 = vld [vmem:[%s278 + $0x8] sm:$0xff]
      %v335 = vld [vmem:[%s278 + $0x10] sm:$0xff]
      %v336 = vld [vmem:[%s278 + $0x18] sm:$0xff]
      %v337 = vld [vmem:[%s278 + $0x20] sm:$0xff]
      %v338 = vld [vmem:[%s278 + $0x28] sm:$0xff]
      %v339 = vld [vmem:[%s278 + $0x30] sm:$0xff]
      %v340 = vld [vmem:[%s278 + $0x38] sm:$0xff]
      %v341 = vld [vmem:[%s278 + $0x40] sm:$0xff]
      %v342 = vld [vmem:[%s278 + $0x48] sm:$0xff]
      %v343 = vld [vmem:[%s278 + $0x50] sm:$0xff]
      %v344 = vld [vmem:[%s278 + $0x58] sm:$0xff]
      %v345 = vld [vmem:[%s278 + $0x60] sm:$0xff]
      %v346 = vld [vmem:[%s278 + $0x68] sm:$0xff]
      %v347 = vld [vmem:[%s278 + $0x70] sm:$0xff]
      %v348 = vld [vmem:[%s278 + $0x78] sm:$0xff]
      %v349 = vld [vmem:[%s278 + $0x80] sm:$0xff]
      %v350 = vld [vmem:[%s278 + $0x88] sm:$0xff]
      %vm351 = vcmask 130048
      %v353 = vsel %vm351, %v330, 0
      %v356 = vsel %vm351, %v332, 0
      %358 = vmatprep.subr.mxu0 0.0
      %359 = vmatpush1.msra.mxu0 %v348
      %360 = vmatprep.subr.mxu0 0.0
      %361 = vmatpush1.msra.mxu0 %v347
      %362 = vmatprep.subr.mxu0 0.0
      %363 = vmatpush1.msra.mxu0 %v346
      %364 = vmatprep.subr.mxu0 0.0
      %365 = vmatpush1.msra.mxu0 %v345
      %366 = vmatprep.subr.mxu0 0.0
      %367 = vmatpush1.msra.mxu0 %v344
      %368 = vmatprep.subr.mxu0 0.0
      %369 = vmatpush1.msra.mxu0 %v343
      %370 = vmatprep.subr.mxu0 0.0
      %371 = vmatpush1.msra.mxu0 %v342
      %372 = vmatprep.subr.mxu0 0.0
      %373 = vmatpush1.msra.mxu0 %v341
      %374 = vmatprep.subr.mxu0 0.0
      %375 = vmatpush1.msra.mxu0 %v340
      %376 = vmatprep.subr.mxu0 0.0
      %377 = vmatpush1.msra.mxu0 %v339
      %378 = vmatprep.subr.mxu0 0.0
      %379 = vmatpush1.msra.mxu0 %v338
      %380 = vmatprep.subr.mxu0 0.0
      %381 = vmatpush1.msra.mxu0 %v337
      %382 = vmatprep.subr.mxu0 0.0
      %383 = vmatpush1.msra.mxu0 %v336
      %384 = vmatprep.subr.mxu0 0.0
      %385 = vmatpush1.msra.mxu0 %v335
      %386 = vmatprep.subr.mxu0 0.0
      %387 = vmatpush1.msra.mxu0 %v334
      %388 = vmatprep.subr.mxu0 0.0
      %389 = vmatpush1.msra.mxu0 %v333
      %390 = vmatprep.subr.mxu0 0.0
      %391 = vmatpush2.msra.mxu0 0.0
      %392 = vmatprep.subr.mxu0 0.0
      %393 = vmatpush2.msra.mxu0 0.0
      %394 = vmatprep.subr.mxu0 0.0
      %395 = vmatpush2.msra.mxu0 0.0
      %396 = vmatprep.subr.mxu0 0.0
      %397 = vmatpush2.msra.mxu0 0.0
      %398 = vmatprep.subr.mxu0 0.0
      %399 = vmatpush2.msra.mxu0 0.0
      %400 = vmatprep.subr.mxu0 0.0
      %401 = vmatpush2.msra.mxu0 0.0
      %402 = vmatprep.subr.mxu0 0.0
      %403 = vmatpush2.msra.mxu0 0.0
      %404 = vmatprep.subr.mxu0 0.0
      %405 = vmatpush2.msra.mxu0 0.0
      %406 = vmatprep.subr.mxu0 0.0
      %407 = vmatpush2.msra.mxu0 0.0
      %408 = vmatprep.subr.mxu0 0.0
      %409 = vmatpush2.msra.mxu0 0.0
      %410 = vmatprep.subr.mxu0 0.0
      %411 = vmatpush2.msra.mxu0 0.0
      %412 = vmatprep.subr.mxu0 0.0
      %413 = vmatpush2.msra.mxu0 0.0
      %414 = vmatprep.subr.mxu0 0.0
      %415 = vmatpush2.msra.mxu0 0.0
      %416 = vmatprep.subr.mxu0 0.0
      %417 = vmatpush2.msra.mxu0 0.0
      %418 = vmatprep.subr.mxu0 0.0
      %419 = vmatpush2.msra.mxu0 %v350
      %420 = vmatprep.subr.mxu0 0.0
      %421 = vmatpush2.msra.mxu0 %v349
      %422 = vmatprep.mubr.f32.mxu0 %v353
      %423 = vmatmul.mubr.f32.gmra.mxu0 %v329
      %v424 = vpop.f32.mrf.mxu0
      %v425 = vadd.f32 0.0, %v424
      %v426 = vpop.f32.mrf.mxu0
      %427 = vmatprep.mubr.f32.mxu0 %v356
      %428 = vmatmul.mubr.f32.gmra.mxu0 %v331
      %v429 = vpop.f32.mrf.mxu0
      %v430 = vadd.f32 0.0, %v429
      %v431 = vpop.f32.mrf.mxu0
      %432 = vdwg.mxu0
      %vm433 = vcmask 261120
      %v435 = vsel %vm433, %v289, 0
      %v438 = vsel %vm433, %v292, 0
      %440 = vmatprep.subr.mxu0 0.0
      %441 = vmatpush1.msra.mxu0 %v308
      %442 = vmatprep.subr.mxu0 0.0
      %443 = vmatpush1.msra.mxu0 %v307
      %444 = vmatprep.subr.mxu0 0.0
      %445 = vmatpush1.msra.mxu0 %v306
      %446 = vmatprep.subr.mxu0 0.0
      %447 = vmatpush1.msra.mxu0 %v305
      %448 = vmatprep.subr.mxu0 0.0
      %449 = vmatpush1.msra.mxu0 %v304
      %450 = vmatprep.subr.mxu0 0.0
      %451 = vmatpush1.msra.mxu0 %v303
      %452 = vmatprep.subr.mxu0 0.0
      %453 = vmatpush1.msra.mxu0 %v302
      %454 = vmatprep.subr.mxu0 0.0
      %455 = vmatpush1.msra.mxu0 %v301
      %456 = vmatprep.subr.mxu0 0.0
      %457 = vmatpush1.msra.mxu0 %v300
      %458 = vmatprep.subr.mxu0 0.0
      %459 = vmatpush1.msra.mxu0 %v299
      %460 = vmatprep.subr.mxu0 0.0
      %461 = vmatpush1.msra.mxu0 %v298
      %462 = vmatprep.subr.mxu0 0.0
      %463 = vmatpush1.msra.mxu0 %v297
      %464 = vmatprep.subr.mxu0 0.0
      %465 = vmatpush1.msra.mxu0 %v296
      %466 = vmatprep.subr.mxu0 0.0
      %467 = vmatpush1.msra.mxu0 %v295
      %468 = vmatprep.subr.mxu0 0.0
      %469 = vmatpush1.msra.mxu0 %v294
      %470 = vmatprep.subr.mxu0 0.0
      %471 = vmatpush1.msra.mxu0 %v293
      %472 = vmatprep.subr.mxu0 0.0
      %473 = vmatpush2.msra.mxu0 %v324
      %474 = vmatprep.subr.mxu0 0.0
      %475 = vmatpush2.msra.mxu0 %v323
      %476 = vmatprep.subr.mxu0 0.0
      %477 = vmatpush2.msra.mxu0 %v322
      %478 = vmatprep.subr.mxu0 0.0
      %479 = vmatpush2.msra.mxu0 %v321
      %480 = vmatprep.subr.mxu0 0.0
      %481 = vmatpush2.msra.mxu0 %v320
      %482 = vmatprep.subr.mxu0 0.0
      %483 = vmatpush2.msra.mxu0 %v319
      %484 = vmatprep.subr.mxu0 0.0
      %485 = vmatpush2.msra.mxu0 %v318
      %486 = vmatprep.subr.mxu0 0.0
      %487 = vmatpush2.msra.mxu0 %v317
      %488 = vmatprep.subr.mxu0 0.0
      %489 = vmatpush2.msra.mxu0 %v316
      %490 = vmatprep.subr.mxu0 0.0
      %491 = vmatpush2.msra.mxu0 %v315
      %492 = vmatprep.subr.mxu0 0.0
      %493 = vmatpush2.msra.mxu0 %v314
      %494 = vmatprep.subr.mxu0 0.0
      %495 = vmatpush2.msra.mxu0 %v313
      %496 = vmatprep.subr.mxu0 0.0
      %497 = vmatpush2.msra.mxu0 %v312
      %498 = vmatprep.subr.mxu0 0.0
      %499 = vmatpush2.msra.mxu0 %v311
      %500 = vmatprep.subr.mxu0 0.0
      %501 = vmatpush2.msra.mxu0 %v310
      %502 = vmatprep.subr.mxu0 0.0
      %503 = vmatpush2.msra.mxu0 %v309
      %504 = vmatprep.mubr.f32.mxu0 %v288
      %505 = vmatmul.mubr.f32.gmra.mxu0 %v287
      %v506 = vpop.f32.mrf.mxu0
      %v507 = vadd.f32 %v425, %v506
      %v508 = vpop.f32.mrf.mxu0
      %509 = vmatprep.mubr.f32.mxu0 %v291
      %510 = vmatmul.mubr.f32.gmra.mxu0 %v290
      %v511 = vpop.f32.mrf.mxu0
      %v512 = vadd.f32 %v430, %v511
      %v513 = vpop.f32.mrf.mxu0
      %514 = vdwg.mxu0
      %515 = vmatprep.subr.mxu0 0.0
      %516 = vmatpush1.msra.mxu0 0.0
      %517 = vmatprep.subr.mxu0 0.0
      %518 = vmatpush1.msra.mxu0 0.0
      %519 = vmatprep.subr.mxu0 0.0
      %520 = vmatpush1.msra.mxu0 0.0
      %521 = vmatprep.subr.mxu0 0.0
      %522 = vmatpush1.msra.mxu0 0.0
      %523 = vmatprep.subr.mxu0 0.0
      %524 = vmatpush1.msra.mxu0 0.0
      %525 = vmatprep.subr.mxu0 0.0
      %526 = vmatpush1.msra.mxu0 0.0
      %527 = vmatprep.subr.mxu0 0.0
      %528 = vmatpush1.msra.mxu0 0.0
      %529 = vmatprep.subr.mxu0 0.0
      %530 = vmatpush1.msra.mxu0 0.0
      %531 = vmatprep.subr.mxu0 0.0
      %532 = vmatpush1.msra.mxu0 0.0
      %533 = vmatprep.subr.mxu0 0.0
      %534 = vmatpush1.msra.mxu0 0.0
      %535 = vmatprep.subr.mxu0 0.0
      %536 = vmatpush1.msra.mxu0 0.0
      %537 = vmatprep.subr.mxu0 0.0
      %538 = vmatpush1.msra.mxu0 0.0
      %539 = vmatprep.subr.mxu0 0.0
      %540 = vmatpush1.msra.mxu0 %v328
      %541 = vmatprep.subr.mxu0 0.0
      %542 = vmatpush1.msra.mxu0 %v327
      %543 = vmatprep.subr.mxu0 0.0
      %544 = vmatpush1.msra.mxu0 %v326
      %545 = vmatprep.subr.mxu0 0.0
      %546 = vmatpush1.msra.mxu0 %v325
      %547 = vmatprep.subr.mxu0 0.0
      %548 = vmatpush2.msra.mxu0 0.0
      %549 = vmatprep.subr.mxu0 0.0
      %550 = vmatpush2.msra.mxu0 0.0
      %551 = vmatprep.subr.mxu0 0.0
      %552 = vmatpush2.msra.mxu0 0.0
      %553 = vmatprep.subr.mxu0 0.0
      %554 = vmatpush2.msra.mxu0 0.0
      %555 = vmatprep.subr.mxu0 0.0
      %556 = vmatpush2.msra.mxu0 0.0
      %557 = vmatprep.subr.mxu0 0.0
      %558 = vmatpush2.msra.mxu0 0.0
      %559 = vmatprep.subr.mxu0 0.0
      %560 = vmatpush2.msra.mxu0 0.0
      %561 = vmatprep.subr.mxu0 0.0
      %562 = vmatpush2.msra.mxu0 0.0
      %563 = vmatprep.subr.mxu0 0.0
      %564 = vmatpush2.msra.mxu0 0.0
      %565 = vmatprep.subr.mxu0 0.0
      %566 = vmatpush2.msra.mxu0 0.0
      %567 = vmatprep.subr.mxu0 0.0
      %568 = vmatpush2.msra.mxu0 0.0
      %569 = vmatprep.subr.mxu0 0.0
      %570 = vmatpush2.msra.mxu0 0.0
      %571 = vmatprep.subr.mxu0 0.0
      %572 = vmatpush2.msra.mxu0 0.0
      %573 = vmatprep.subr.mxu0 0.0
      %574 = vmatpush2.msra.mxu0 0.0
      %575 = vmatprep.subr.mxu0 0.0
      %576 = vmatpush2.msra.mxu0 0.0
      %577 = vmatprep.subr.mxu0 0.0
      %578 = vmatpush2.msra.mxu0 0.0
      %579 = vmatprep.mubr.f32.mxu0 0.0
      %580 = vmatmul.mubr.f32.gmra.mxu0 %v435
      %v581 = vpop.f32.mrf.mxu0
      %v582 = vadd.f32 %v507, %v581
      %v583 = vpop.f32.mrf.mxu0
      %584 = vmatprep.mubr.f32.mxu0 0.0
      %585 = vmatmul.mubr.f32.gmra.mxu0 %v438
      %v586 = vpop.f32.mrf.mxu0
      %v587 = vadd.f32 %v512, %v586
      %v588 = vpop.f32.mrf.mxu0
      %589 = vdwg.mxu0
      %v590 = vld [vmem:[%s4] sm:$0xff]
      %v591 = vld [vmem:[%s4 + $0x8] sm:$0xff]
      %593 = vset.pattern.permute.xlu0 0
      %594 = vperm.xlu0 %593, %v590
      %v595 = vpop.permute.xlu0 %594
      %598 = vset.pattern.permute.xlu0 0
      %599 = vperm.xlu0 %598, %v591
      %v600 = vpop.permute.xlu0 %599
      %v602 = vadd.f32 %v582, %v595
      %v603 = vadd.f32 %v587, %v600
      %v604 = vmax.f32 %v602, 0.0
      %v605 = vmax.f32 %v603, 0.0
      %vm606 = vcmask 523264
      %607 = vst.msk [vmem:[%s286] sm:$0xff] %vm606, %v604
      %608 = vst.msk [vmem:[%s286 + $0x8] sm:$0xff] %vm606, %v605
      %p609 = scmp.lt.s32.totalorder %s20, 1
      %s610 = scalar_select %p609, %s20, 1
      %p611 = scmp.lt.s32.totalorder %s21, 0
      %s612 = scalar_select %p611, %s21, 0
      %s613 = smul.addr %s610, 2
      %s614 = sadd.s32 %s612, %s613
      %s615 = smul.addr %s614, 8
      %s616 = scalar_lea.vmem %s5, %s615
      // Predicated region
      $region41: #{ma_unet_forward.14} parent=39 // pred_check
        %p617 = pneg %p167
      $region42: #{ma_unet_forward.14} parent=39 // pred_check_branch
        %619 = sbr.rel (%p617) target = $region44
      $region43: #{ma_unet_forward.14} parent=39 // pred_region
        _
      $region44: #{ma_unet_forward.14} parent=39 // pred_fallthru
        _
    $region40: #{ma_unet_forward.14} parent=5 // pred_fallthru
      _
    %p620 = scmp.le.s32.totalorder 2, %s11
    // Predicated region
    $region45: #{ma_unet_forward.14} parent=5 // pred_check
      %p621 = pneg %p620
    $region46: #{ma_unet_forward.14} parent=5 // pred_check_branch
      %623 = sbr.rel (%p621) target = $region48
    $region47: #{ma_unet_forward.14} parent=5 // pred_region
      %s624 = ssub.s32 %s11, 2
      // Predicated region
      $region49: #{ma_unet_forward.14} parent=47 // pred_check
        %p625 = pneg %p173
      $region50: #{ma_unet_forward.14} parent=47 // pred_check_branch
        %627 = sbr.rel (%p625) target = $region52
      $region51: #{ma_unet_forward.14} parent=47 // pred_region
        %p628 = scmp.lt.s32.totalorder %s22, 1
        %s629 = scalar_select %p628, %s22, 1
        %p630 = scmp.lt.s32.totalorder %s23, 0
        %s631 = scalar_select %p630, %s23, 0
        %s632 = smul.addr %s629, 2
        %s633 = sadd.s32 %s631, %s632
        %s634 = smul.addr %s633, 8
        %s635 = scalar_lea.vmem %s5, %s634
      $region52: #{ma_unet_forward.14} parent=47 // pred_fallthru
        _
    $region48: #{ma_unet_forward.14} parent=5 // pred_fallthru
      _
  $region6: #{ma_unet_forward.14} parent=0 // loop_footer
    %s15 = sadd.s32 1, %s11
  $region7: #{ma_unet_forward.14} parent=0 // loop_footer_branch
    %10 = sbr.rel target = $region3
  $region8: #{ma_unet_forward.14} parent=0 // loop_exit
    _

// kernel: ma_unet_forward.16
$region0: #{ma_unet_forward.16}
  #allocation0 [shape = 'u32[]', space=smem, size = 0x4, offset = 0x4, fixed_abs, tag = 'smem constant byte address 0x4 - core index']
  #allocation1 [shape = 'u32[144,128]{1,0:T(1,128)}', space=vmem, size = 0x12000, scoped, tag = 'internal scratch']
  %s0 = inlined_call_operand.vmem [shape: f32[2,144,256], index: 0, kind: input, shape index: {}]
  %s1 = inlined_call_operand.vmem [shape: f32[2,72,256], index: 1, kind: input, shape index: {}]
  %s2 = inlined_call_operand.vmem [shape: f32[8,144], index: 2, kind: input, shape index: {}]
  %s3 = inlined_call_operand.vmem [shape: f32[8,72], index: 3, kind: input, shape index: {}]
  %s4 = inlined_call_operand.vmem [shape: f32[8,1], index: 4, kind: input, shape index: {}]
  %s5 = inlined_call_operand.vmem [shape: f32[2,8,256], index: 5, kind: output, shape index: {}]
  %s6 = sld [smem:[#allocation0]]
  $region53: #{ma_unet_forward.16} parent=0
    _
  %s8 = ssub.s32 1, %s6
  %s9 = scalar_select 0, %s8, %s6
  loop: start=0, step=1, limit=4
  $region2: #{ma_unet_forward.16} parent=0 // loop_pre_header
    _
  $region3: #{ma_unet_forward.16} parent=0 // loop_header
    %s11 = sphi 0, %s15
    %p12 = scmp.ge.s32.totalorder %s11, 4
    %s18 = sphi 0, %s30
    %s19 = sphi 0, %s26
    %s20 = sphi 0, %s18
    %s21 = sphi 0, %s19
    %s22 = sphi 0, %s20
    %s23 = sphi 0, %s21
    %s35 = sphi 0, %s37
    %s38 = sphi 0, %s35
    %s39 = sphi 0, %s38
    %s55 = sphi 0, %s39
    %s63 = sphi 0, %s65
    %s66 = sphi 0, %s63
    %s67 = sphi 0, %s66
    %s83 = sphi 0, %s67
    %s87 = sphi 0, %s87
    %s89 = sphi 0, %s87
    %s90 = sphi 0, %s89
    %s104 = sphi 0, %s90
    %s108 = sphi 0, %s108
    %s110 = sphi 0, %s108
    %s111 = sphi 0, %s110
    %s125 = sphi 0, %s111
    %s129 = sphi 0, %s129
    %s131 = sphi 0, %s129
    %s132 = sphi 0, %s131
    %s146 = sphi 0, %s132
    %s154 = sphi 0, %s156
    %s157 = sphi 0, %s154
    %s158 = sphi 0, %s157
    %s174 = sphi 0, %s158
  $region4: #{ma_unet_forward.16} parent=0 // loop_header_branch
    %14 = sbr.rel (%p12) target = $region8
  $region5: #{ma_unet_forward.16} parent=0 // loop_body
    %s16 = ssub.s32 %s11, 1
    %s17 = ssub.s32 %s11, 2
    %s24 = sadd.s32 1, %s19
    %p25 = scmp.ge.s32.totalorder %s24, 1
    %s26 = scalar_select %p25, 0, %s24
    %s27 = sadd.s32 1, %s18
    %s28 = scalar_select %p25, %s27, %s18
    %p29 = scmp.ge.s32.totalorder %s28, 2
    %s30 = scalar_select %p29, 0, %s28
    %s31 = ssub.s32 %s18, %s30
    %s32 = ssub.s32 %s19, %s26
    %s33 = sor.u32 %s31, %s32
    %p34 = scmp.eq.s32.totalorder %s33, 0
    %s36 = sadd.s32 %s35, 1
    %s37 = scalar_select %p34, %s35, %s36
    %p40 = pneg %p34
    %p41 = scmp.eq.s32.totalorder %s11, 1
    %p42 = por %p40, %p41
    %p43 = scmp.ne.s32.totalorder %s35, %s38
    %p44 = scmp.eq.s32.totalorder %s11, 0
    %p45 = por %p43, %p44
    %p46 = scmp.ne.s32.totalorder %s35, %s38
    %p47 = scmp.eq.s32.totalorder %s16, 1
    %p48 = por %p46, %p47
    %p49 = scmp.ne.s32.totalorder %s38, %s39
    %p50 = scmp.eq.s32.totalorder %s16, 0
    %p51 = por %p49, %p50
    %p52 = scmp.ne.s32.totalorder %s38, %s39
    %p53 = scmp.eq.s32.totalorder %s17, 1
    %p54 = por %p52, %p53
    %p56 = scmp.ne.s32.totalorder %s39, %s55
    %p57 = scmp.eq.s32.totalorder %s17, 0
    %p58 = por %p56, %p57
    %s59 = ssub.s32 %s18, %s30
    %s60 = ssub.s32 %s19, %s26
    %s61 = sor.u32 %s59, %s60
    %p62 = scmp.eq.s32.totalorder %s61, 0
    %s64 = sadd.s32 %s63, 1
    %s65 = scalar_select %p62, %s63, %s64
    %p68 = pneg %p62
    %p69 = scmp.eq.s32.totalorder %s11, 1
    %p70 = por %p68, %p69
    %p71 = scmp.ne.s32.totalorder %s63, %s66
    %p72 = scmp.eq.s32.totalorder %s11, 0
    %p73 = por %p71, %p72
    %p74 = scmp.ne.s32.totalorder %s63, %s66
    %p75 = scmp.eq.s32.totalorder %s16, 1
    %p76 = por %p74, %p75
    %p77 = scmp.ne.s32.totalorder %s66, %s67
    %p78 = scmp.eq.s32.totalorder %s16, 0
    %p79 = por %p77, %p78
    %p80 = scmp.ne.s32.totalorder %s66, %s67
    %p81 = scmp.eq.s32.totalorder %s17, 1
    %p82 = por %p80, %p81
    %p84 = scmp.ne.s32.totalorder %s67, %s83
    %p85 = scmp.eq.s32.totalorder %s17, 0
    %p86 = por %p84, %p85
    %s88 = sadd.s32 %s87, 1
    %p91 = scmp.eq.s32.totalorder %s11, 1
    %p92 = scmp.ne.s32.totalorder %s87, %s89
    %p93 = scmp.eq.s32.totalorder %s11, 0
    %p94 = por %p92, %p93
    %p95 = scmp.ne.s32.totalorder %s87, %s89
    %p96 = scmp.eq.s32.totalorder %s16, 1
    %p97 = por %p95, %p96
    %p98 = scmp.ne.s32.totalorder %s89, %s90
    %p99 = scmp.eq.s32.totalorder %s16, 0
    %p100 = por %p98, %p99
    %p101 = scmp.ne.s32.totalorder %s89, %s90
    %p102 = scmp.eq.s32.totalorder %s17, 1
    %p103 = por %p101, %p102
    %p105 = scmp.ne.s32.totalorder %s90, %s104
    %p106 = scmp.eq.s32.totalorder %s17, 0
    %p107 = por %p105, %p106
    %s109 = sadd.s32 %s108, 1
    %p112 = scmp.eq.s32.totalorder %s11, 1
    %p113 = scmp.ne.s32.totalorder %s108, %s110
    %p114 = scmp.eq.s32.totalorder %s11, 0
    %p115 = por %p113, %p114
    %p116 = scmp.ne.s32.totalorder %s108, %s110
    %p117 = scmp.eq.s32.totalorder %s16, 1
    %p118 = por %p116, %p117
    %p119 = scmp.ne.s32.totalorder %s110, %s111
    %p120 = scmp.eq.s32.totalorder %s16, 0
    %p121 = por %p119, %p120
    %p122 = scmp.ne.s32.totalorder %s110, %s111
    %p123 = scmp.eq.s32.totalorder %s17, 1
    %p124 = por %p122, %p123
    %p126 = scmp.ne.s32.totalorder %s111, %s125
    %p127 = scmp.eq.s32.totalorder %s17, 0
    %p128 = por %p126, %p127
    %s130 = sadd.s32 %s129, 1
    %p133 = scmp.eq.s32.totalorder %s11, 1
    %p134 = scmp.ne.s32.totalorder %s129, %s131
    %p135 = scmp.eq.s32.totalorder %s11, 0
    %p136 = por %p134, %p135
    %p137 = scmp.ne.s32.totalorder %s129, %s131
    %p138 = scmp.eq.s32.totalorder %s16, 1
    %p139 = por %p137, %p138
    %p140 = scmp.ne.s32.totalorder %s131, %s132
    %p141 = scmp.eq.s32.totalorder %s16, 0
    %p142 = por %p140, %p141
    %p143 = scmp.ne.s32.totalorder %s131, %s132
    %p144 = scmp.eq.s32.totalorder %s17, 1
    %p145 = por %p143, %p144
    %p147 = scmp.ne.s32.totalorder %s132, %s146
    %p148 = scmp.eq.s32.totalorder %s17, 0
    %p149 = por %p147, %p148
    %s150 = ssub.s32 %s18, %s30
    %s151 = ssub.s32 %s19, %s26
    %s152 = sor.u32 %s150, %s151
    %p153 = scmp.eq.s32.totalorder %s152, 0
    %s155 = sadd.s32 %s154, 1
    %s156 = scalar_select %p153, %s154, %s155
    %p159 = pneg %p153
    %p160 = scmp.eq.s32.totalorder %s11, 1
    %p161 = por %p159, %p160
    %p162 = scmp.ne.s32.totalorder %s154, %s157
    %p163 = scmp.eq.s32.totalorder %s11, 0
    %p164 = por %p162, %p163
    %p165 = scmp.ne.s32.totalorder %s154, %s157
    %p166 = scmp.eq.s32.totalorder %s16, 1
    %p167 = por %p165, %p166
    %p168 = scmp.ne.s32.totalorder %s157, %s158
    %p169 = scmp.eq.s32.totalorder %s16, 0
    %p170 = por %p168, %p169
    %p171 = scmp.ne.s32.totalorder %s157, %s158
    %p172 = scmp.eq.s32.totalorder %s17, 1
    %p173 = por %p171, %p172
    %p175 = scmp.ne.s32.totalorder %s158, %s174
    %p176 = scmp.eq.s32.totalorder %s17, 0
    %p177 = por %p175, %p176
    %p178 = scmp.le.s32.totalorder 1, %s11
    %p179 = scmp.lt.s32.totalorder %s11, 3
    %p180 = pnand %p178, %p179
    %p181 = pneg %p180
    // Predicated region
    $region9: #{ma_unet_forward.16} parent=5 // pred_check
      _
    $region10: #{ma_unet_forward.16} parent=5 // pred_check_branch
      %183 = sbr.rel (%p180) target = $region12
    $region11: #{ma_unet_forward.16} parent=5 // pred_region
      %s184 = ssub.s32 %s11, 1
      // Predicated region
      $region13: #{ma_unet_forward.16} parent=11 // pred_check
        %p185 = pneg %p100
      $region14: #{ma_unet_forward.16} parent=11 // pred_check_branch
        %187 = sbr.rel (%p185) target = $region16
      $region15: #{ma_unet_forward.16} parent=11 // pred_region
        _
      $region16: #{ma_unet_forward.16} parent=11 // pred_fallthru
        _
      // Predicated region
      $region17: #{ma_unet_forward.16} parent=11 // pred_check
        %p188 = pneg %p121
      $region18: #{ma_unet_forward.16} parent=11 // pred_check_branch
        %190 = sbr.rel (%p188) target = $region20
      $region19: #{ma_unet_forward.16} parent=11 // pred_region
        _
      $region20: #{ma_unet_forward.16} parent=11 // pred_fallthru
        _
      // Predicated region
      $region21: #{ma_unet_forward.16} parent=11 // pred_check
        %p191 = pneg %p142
      $region22: #{ma_unet_forward.16} parent=11 // pred_check_branch
        %193 = sbr.rel (%p191) target = $region24
      $region23: #{ma_unet_forward.16} parent=11 // pred_region
        _
      $region24: #{ma_unet_forward.16} parent=11 // pred_fallthru
        _
    $region12: #{ma_unet_forward.16} parent=5 // pred_fallthru
      _
    %p194 = scmp.lt.s32.totalorder %s11, 2
    // Predicated region
    $region25: #{ma_unet_forward.16} parent=5 // pred_check
      %p195 = pneg %p194
    $region26: #{ma_unet_forward.16} parent=5 // pred_check_branch
      %197 = sbr.rel (%p195) target = $region28
    $region27: #{ma_unet_forward.16} parent=5 // pred_region
      // Predicated region
      $region29: #{ma_unet_forward.16} parent=27 // pred_check
        %p198 = pneg %p45
      $region30: #{ma_unet_forward.16} parent=27 // pred_check_branch
        %200 = sbr.rel (%p198) target = $region32
      $region31: #{ma_unet_forward.16} parent=27 // pred_region
        %s201 = smul.u32 2, %s19
        %p202 = scmp.lt.s32.totalorder %s18, 1
        %s203 = scalar_select %p202, %s18, 1
        %p204 = scmp.lt.s32.totalorder %s201, 1
        %s205 = scalar_select %p204, %s201, 1
        %s206 = smul.addr %s203, 36
        %s207 = sadd.s32 %s205, %s206
        %s208 = smul.addr %s207, 8
        %s209 = scalar_lea.vmem %s0, %s208
        %s210 = smul.u32 2, %s19
      $region32: #{ma_unet_forward.16} parent=27 // pred_fallthru
        _
      // Predicated region
      $region33: #{ma_unet_forward.16} parent=27 // pred_check
        %p211 = pneg %p73
      $region34: #{ma_unet_forward.16} parent=27 // pred_check_branch
        %213 = sbr.rel (%p211) target = $region36
      $region35: #{ma_unet_forward.16} parent=27 // pred_region
        %s214 = smul.u32 2, %s19
        %p215 = scmp.lt.s32.totalorder %s18, 1
        %s216 = scalar_select %p215, %s18, 1
        %p217 = scmp.lt.s32.totalorder %s214, 1
        %s218 = scalar_select %p217, %s214, 1
        %s219 = smul.addr %s216, 18
        %s220 = sadd.s32 %s218, %s219
        %s221 = smul.addr %s220, 8
        %s222 = scalar_lea.vmem %s1, %s221
        %s223 = smul.u32 2, %s19
      $region36: #{ma_unet_forward.16} parent=27 // pred_fallthru
        _
    $region28: #{ma_unet_forward.16} parent=5 // pred_fallthru
      _
    %p224 = scmp.le.s32.totalorder 1, %s11
    %p225 = scmp.lt.s32.totalorder %s11, 3
    %p226 = pnand %p224, %p225
    %p227 = pneg %p226
    // Predicated region
    $region37: #{ma_unet_forward.16} parent=5 // pred_check
      _
    $region38: #{ma_unet_forward.16} parent=5 // pred_check_branch
      %229 = sbr.rel (%p226) target = $region40
    $region39: #{ma_unet_forward.16} parent=5 // pred_region
      %s230 = ssub.s32 %s11, 1
      %s231 = smul.u32 2, %s21
      %p232 = scmp.lt.s32.totalorder %s20, 1
      %s233 = scalar_select %p232, %s20, 1
      %p234 = scmp.lt.s32.totalorder %s231, 1
      %s235 = scalar_select %p234, %s231, 1
      %s236 = smul.addr %s233, 36
      %s237 = sadd.s32 %s235, %s236
      %s238 = smul.addr %s237, 8
      %s239 = scalar_lea.vmem %s0, %s238
      %p240 = pneg %p51
      %p241 = pneg %p48
      %s242 = smul.u32 2, %s21
      %p243 = scmp.lt.s32.totalorder %s20, 1
      %s244 = scalar_select %p243, %s20, 1
      %p245 = scmp.lt.s32.totalorder %s242, 1
      %s246 = scalar_select %p245, %s242, 1
      %s247 = smul.addr %s244, 18
      %s248 = sadd.s32 %s246, %s247
      %s249 = smul.addr %s248, 8
      %s250 = scalar_lea.vmem %s1, %s249
      %p251 = pneg %p79
      %p252 = pneg %p76
      %p253 = pneg %p100
      %p254 = pneg %p97
      %p255 = pneg %p121
      %p256 = pneg %p118
      %p257 = pneg %p142
      %p258 = pneg %p139
      %p259 = pneg %p170
      %p260 = pneg %p167
      %s261 = smul.u32 2, %s21
      %p262 = scmp.lt.s32.totalorder %s20, 1
      %s263 = scalar_select %p262, %s20, 1
      %p264 = scmp.lt.s32.totalorder %s261, 1
      %s265 = scalar_select %p264, %s261, 1
      %s266 = smul.addr %s263, 2
      %s267 = sadd.s32 %s265, %s266
      %s268 = smul.addr %s267, 8
      %s269 = scalar_lea.vmem %s5, %s268
      %s270 = smul.u32 2, %s21
      %p271 = scmp.lt.s32.totalorder %s20, 1
      %s272 = scalar_select %p271, %s20, 1
      %p273 = scmp.lt.s32.totalorder %s270, 1
      %s274 = scalar_select %p273, %s270, 1
      %s275 = smul.addr %s272, 36
      %s276 = sadd.s32 %s274, %s275
      %s277 = smul.addr %s276, 8
      %s278 = scalar_lea.vmem %s0, %s277
      %s279 = smul.u32 2, %s21
      %s280 = smul.u32 2, %s21
      %p281 = scmp.lt.s32.totalorder %s20, 1
      %s282 = scalar_select %p281, %s20, 1
      %p283 = scmp.lt.s32.totalorder %s280, 1
      %s284 = scalar_select %p283, %s280, 1
      %s285 = smul.addr %s282, 18
      %s286 = sadd.s32 %s284, %s285
      %s287 = smul.addr %s286, 8
      %s288 = scalar_lea.vmem %s1, %s287
      %s289 = smul.u32 2, %s21
      %s290 = smul.u32 2, %s21
      %p291 = scmp.lt.s32.totalorder %s20, 1
      %s292 = scalar_select %p291, %s20, 1
      %p293 = scmp.lt.s32.totalorder %s290, 1
      %s294 = scalar_select %p293, %s290, 1
      %s295 = smul.addr %s292, 2
      %s296 = sadd.s32 %s294, %s295
      %s297 = smul.addr %s296, 8
      %s298 = scalar_lea.vmem %s5, %s297
      %s299 = smul.u32 2, %s21
      %v300 = vld [vmem:[%s2] sm:$0xff]
      %v301 = vld [vmem:[%s2 + $0x8] sm:$0xff]
      %v302 = vld [vmem:[%s278] sm:$0xff]
      %v303 = vld [vmem:[%s278 + $0x8] sm:$0xff]
      %v304 = vld [vmem:[%s278 + $0x10] sm:$0xff]
      %v305 = vld [vmem:[%s278 + $0x18] sm:$0xff]
      %v306 = vld [vmem:[%s278 + $0x20] sm:$0xff]
      %v307 = vld [vmem:[%s278 + $0x28] sm:$0xff]
      %v308 = vld [vmem:[%s278 + $0x30] sm:$0xff]
      %v309 = vld [vmem:[%s278 + $0x38] sm:$0xff]
      %v310 = vld [vmem:[%s278 + $0x40] sm:$0xff]
      %v311 = vld [vmem:[%s278 + $0x48] sm:$0xff]
      %v312 = vld [vmem:[%s278 + $0x50] sm:$0xff]
      %v313 = vld [vmem:[%s278 + $0x58] sm:$0xff]
      %v314 = vld [vmem:[%s278 + $0x60] sm:$0xff]
      %v315 = vld [vmem:[%s278 + $0x68] sm:$0xff]
      %v316 = vld [vmem:[%s278 + $0x70] sm:$0xff]
      %v317 = vld [vmem:[%s278 + $0x78] sm:$0xff]
      %v318 = vld [vmem:[%s278 + $0x80] sm:$0xff]
      %v319 = vld [vmem:[%s278 + $0x88] sm:$0xff]
      %v320 = vld [vmem:[%s278 + $0x90] sm:$0xff]
      %v321 = vld [vmem:[%s278 + $0x98] sm:$0xff]
      %v322 = vld [vmem:[%s278 + $0xa0] sm:$0xff]
      %v323 = vld [vmem:[%s278 + $0xa8] sm:$0xff]
      %v324 = vld [vmem:[%s278 + $0xb0] sm:$0xff]
      %v325 = vld [vmem:[%s278 + $0xb8] sm:$0xff]
      %v326 = vld [vmem:[%s278 + $0xc0] sm:$0xff]
      %v327 = vld [vmem:[%s278 + $0xc8] sm:$0xff]
      %v328 = vld [vmem:[%s278 + $0xd0] sm:$0xff]
      %v329 = vld [vmem:[%s278 + $0xd8] sm:$0xff]
      %v330 = vld [vmem:[%s278 + $0xe0] sm:$0xff]
      %v331 = vld [vmem:[%s278 + $0xe8] sm:$0xff]
      %v332 = vld [vmem:[%s278 + $0xf0] sm:$0xff]
      %v333 = vld [vmem:[%s278 + $0xf8] sm:$0xff]
      %v334 = vld [vmem:[%s278 + $0x100] sm:$0xff]
      %v335 = vld [vmem:[%s278 + $0x108] sm:$0xff]
      %v336 = vld [vmem:[%s278 + $0x110] sm:$0xff]
      %v337 = vld [vmem:[%s278 + $0x118] sm:$0xff]
      %v338 = vld [vmem:[%s3] sm:$0xff]
      %v339 = vld [vmem:[%s288] sm:$0xff]
      %v340 = vld [vmem:[%s288 + $0x8] sm:$0xff]
      %v341 = vld [vmem:[%s288 + $0x10] sm:$0xff]
      %v342 = vld [vmem:[%s288 + $0x18] sm:$0xff]
      %v343 = vld [vmem:[%s288 + $0x20] sm:$0xff]
      %v344 = vld [vmem:[%s288 + $0x28] sm:$0xff]
      %v345 = vld [vmem:[%s288 + $0x30] sm:$0xff]
      %v346 = vld [vmem:[%s288 + $0x38] sm:$0xff]
      %v347 = vld [vmem:[%s288 + $0x40] sm:$0xff]
      %v348 = vld [vmem:[%s288 + $0x48] sm:$0xff]
      %v349 = vld [vmem:[%s288 + $0x50] sm:$0xff]
      %v350 = vld [vmem:[%s288 + $0x58] sm:$0xff]
      %v351 = vld [vmem:[%s288 + $0x60] sm:$0xff]
      %v352 = vld [vmem:[%s288 + $0x68] sm:$0xff]
      %v353 = vld [vmem:[%s288 + $0x70] sm:$0xff]
      %v354 = vld [vmem:[%s288 + $0x78] sm:$0xff]
      %v355 = vld [vmem:[%s288 + $0x80] sm:$0xff]
      %v356 = vld [vmem:[%s288 + $0x88] sm:$0xff]
      %vm357 = vcmask 588800
      %v359 = vsel %vm357, %v338, 0
      %361 = vmatprep.subr.mxu0 0.0
      %362 = vmatpush1.msra.mxu0 0.0
      %363 = vmatprep.subr.mxu0 0.0
      %364 = vmatpush1.msra.mxu0 0.0
      %365 = vmatprep.subr.mxu0 0.0
      %366 = vmatpush1.msra.mxu0 0.0
      %367 = vmatprep.subr.mxu0 0.0
      %368 = vmatpush1.msra.mxu0 0.0
      %369 = vmatprep.subr.mxu0 0.0
      %370 = vmatpush1.msra.mxu0 0.0
      %371 = vmatprep.subr.mxu0 0.0
      %372 = vmatpush1.msra.mxu0 0.0
      %373 = vmatprep.subr.mxu0 0.0
      %374 = vmatpush1.msra.mxu0 0.0
      %375 = vmatprep.subr.mxu0 %v356
      %376 = vmatpush1.msra.mxu0 %v355
      %377 = vmatprep.subr.mxu0 %v354
      %378 = vmatpush1.msra.mxu0 %v353
      %379 = vmatprep.subr.mxu0 %v352
      %380 = vmatpush1.msra.mxu0 %v351
      %381 = vmatprep.subr.mxu0 %v350
      %382 = vmatpush1.msra.mxu0 %v349
      %383 = vmatprep.subr.mxu0 %v348
      %384 = vmatpush1.msra.mxu0 %v347
      %385 = vmatprep.subr.mxu0 %v346
      %386 = vmatpush1.msra.mxu0 %v345
      %387 = vmatprep.subr.mxu0 %v344
      %388 = vmatpush1.msra.mxu0 %v343
      %389 = vmatprep.subr.mxu0 %v342
      %390 = vmatpush1.msra.mxu0 %v341
      %391 = vmatprep.subr.mxu0 %v340
      %392 = vmatpush1.msra.mxu0 %v339
      %393 = vmatprep.subr.mxu0 0.0
      %394 = vmatpush2.msra.mxu0 0.0
      %395 = vmatprep.subr.mxu0 0.0
      %396 = vmatpush2.msra.mxu0 0.0
      %397 = vmatprep.subr.mxu0 0.0
      %398 = vmatpush2.msra.mxu0 0.0
      %399 = vmatprep.subr.mxu0 0.0
      %400 = vmatpush2.msra.mxu0 0.0
      %401 = vmatprep.subr.mxu0 0.0
      %402 = vmatpush2.msra.mxu0 0.0
      %403 = vmatprep.subr.mxu0 0.0
      %404 = vmatpush2.msra.mxu0 0.0
      %405 = vmatprep.subr.mxu0 0.0
      %406 = vmatpush2.msra.mxu0 0.0
      %407 = vmatprep.subr.mxu0 0.0
      %408 = vmatpush2.msra.mxu0 0.0
      %409 = vmatprep.subr.mxu0 0.0
      %410 = vmatpush2.msra.mxu0 0.0
      %411 = vmatprep.subr.mxu0 0.0
      %412 = vmatpush2.msra.mxu0 0.0
      %413 = vmatprep.subr.mxu0 0.0
      %414 = vmatpush2.msra.mxu0 0.0
      %415 = vmatprep.subr.mxu0 0.0
      %416 = vmatpush2.msra.mxu0 0.0
      %417 = vmatprep.subr.mxu0 0.0
      %418 = vmatpush2.msra.mxu0 0.0
      %419 = vmatprep.subr.mxu0 0.0
      %420 = vmatpush2.msra.mxu0 0.0
      %421 = vmatprep.subr.mxu0 0.0
      %422 = vmatpush2.msra.mxu0 0.0
      %423 = vmatprep.subr.mxu0 0.0
      %424 = vmatpush2.msra.mxu0 0.0
      %425 = vmatprep.mubr.f32.mxu0 0.0
      %426 = vmatmul.mubr.f32.gmra.mxu0 %v359
      %v427 = vpop.f32.mrf.mxu0
      %v428 = vadd.f32 0.0, %v427
      %v429 = vpop.f32.mrf.mxu0
      %v430 = vadd.f32 0.0, %v429
      %431 = vdwg.mxu0
      %vm432 = vcmask 130048
      %v434 = vsel %vm432, %v301, 0
      %436 = vmatprep.subr.mxu0 %v333
      %437 = vmatpush1.msra.mxu0 %v332
      %438 = vmatprep.subr.mxu0 %v331
      %439 = vmatpush1.msra.mxu0 %v330
      %440 = vmatprep.subr.mxu0 %v329
      %441 = vmatpush1.msra.mxu0 %v328
      %442 = vmatprep.subr.mxu0 %v327
      %443 = vmatpush1.msra.mxu0 %v326
      %444 = vmatprep.subr.mxu0 %v325
      %445 = vmatpush1.msra.mxu0 %v324
      %446 = vmatprep.subr.mxu0 %v323
      %447 = vmatpush1.msra.mxu0 %v322
      %448 = vmatprep.subr.mxu0 %v321
      %449 = vmatpush1.msra.mxu0 %v320
      %450 = vmatprep.subr.mxu0 %v319
      %451 = vmatpush1.msra.mxu0 %v318
      %452 = vmatprep.subr.mxu0 %v317
      %453 = vmatpush1.msra.mxu0 %v316
      %454 = vmatprep.subr.mxu0 %v315
      %455 = vmatpush1.msra.mxu0 %v314
      %456 = vmatprep.subr.mxu0 %v313
      %457 = vmatpush1.msra.mxu0 %v312
      %458 = vmatprep.subr.mxu0 %v311
      %459 = vmatpush1.msra.mxu0 %v310
      %460 = vmatprep.subr.mxu0 %v309
      %461 = vmatpush1.msra.mxu0 %v308
      %462 = vmatprep.subr.mxu0 %v307
      %463 = vmatpush1.msra.mxu0 %v306
      %464 = vmatprep.subr.mxu0 %v305
      %465 = vmatpush1.msra.mxu0 %v304
      %466 = vmatprep.subr.mxu0 %v303
      %467 = vmatpush1.msra.mxu0 %v302
      %468 = vmatprep.subr.mxu0 0.0
      %469 = vmatpush2.msra.mxu0 0.0
      %470 = vmatprep.subr.mxu0 0.0
      %471 = vmatpush2.msra.mxu0 0.0
      %472 = vmatprep.subr.mxu0 0.0
      %473 = vmatpush2.msra.mxu0 0.0
      %474 = vmatprep.subr.mxu0 0.0
      %475 = vmatpush2.msra.mxu0 0.0
      %476 = vmatprep.subr.mxu0 0.0
      %477 = vmatpush2.msra.mxu0 0.0
      %478 = vmatprep.subr.mxu0 0.0
      %479 = vmatpush2.msra.mxu0 0.0
      %480 = vmatprep.subr.mxu0 0.0
      %481 = vmatpush2.msra.mxu0 0.0
      %482 = vmatprep.subr.mxu0 0.0
      %483 = vmatpush2.msra.mxu0 0.0
      %484 = vmatprep.subr.mxu0 0.0
      %485 = vmatpush2.msra.mxu0 0.0
      %486 = vmatprep.subr.mxu0 0.0
      %487 = vmatpush2.msra.mxu0 0.0
      %488 = vmatprep.subr.mxu0 0.0
      %489 = vmatpush2.msra.mxu0 0.0
      %490 = vmatprep.subr.mxu0 0.0
      %491 = vmatpush2.msra.mxu0 0.0
      %492 = vmatprep.subr.mxu0 0.0
      %493 = vmatpush2.msra.mxu0 0.0
      %494 = vmatprep.subr.mxu0 0.0
      %495 = vmatpush2.msra.mxu0 0.0
      %496 = vmatprep.subr.mxu0 %v337
      %497 = vmatpush2.msra.mxu0 %v336
      %498 = vmatprep.subr.mxu0 %v335
      %499 = vmatpush2.msra.mxu0 %v334
      %500 = vmatprep.mubr.f32.mxu0 %v434
      %501 = vmatmul.mubr.f32.gmra.mxu0 %v300
      %v502 = vpop.f32.mrf.mxu0
      %v503 = vadd.f32 %v428, %v502
      %v504 = vpop.f32.mrf.mxu0
      %v505 = vadd.f32 %v430, %v504
      %506 = vdwg.mxu0
      %v507 = vld [vmem:[%s4] sm:$0xff]
      %509 = vset.pattern.permute.xlu0 0
      %510 = vperm.xlu0 %509, %v507
      %v511 = vpop.permute.xlu0 %510
      %v513 = vadd.f32 %v503, %v511
      %v514 = vadd.f32 %v505, %v511
      %v515 = vmax.f32 %v513, 0.0
      %v516 = vmax.f32 %v514, 0.0
      %517 = vst [vmem:[%s298] sm:$0xff] %v515
      %518 = vst [vmem:[%s298 + $0x8] sm:$0xff] %v516
      %s519 = smul.u32 2, %s21
      %p520 = scmp.lt.s32.totalorder %s20, 1
      %s521 = scalar_select %p520, %s20, 1
      %p522 = scmp.lt.s32.totalorder %s519, 1
      %s523 = scalar_select %p522, %s519, 1
      %s524 = smul.addr %s521, 2
      %s525 = sadd.s32 %s523, %s524
      %s526 = smul.addr %s525, 8
      %s527 = scalar_lea.vmem %s5, %s526
      // Predicated region
      $region41: #{ma_unet_forward.16} parent=39 // pred_check
        %p528 = pneg %p167
      $region42: #{ma_unet_forward.16} parent=39 // pred_check_branch
        %530 = sbr.rel (%p528) target = $region44
      $region43: #{ma_unet_forward.16} parent=39 // pred_region
        %s531 = smul.u32 2, %s21
      $region44: #{ma_unet_forward.16} parent=39 // pred_fallthru
        _
    $region40: #{ma_unet_forward.16} parent=5 // pred_fallthru
      _
    %p532 = scmp.le.s32.totalorder 2, %s11
    // Predicated region
    $region45: #{ma_unet_forward.16} parent=5 // pred_check
      %p533 = pneg %p532
    $region46: #{ma_unet_forward.16} parent=5 // pred_check_branch
      %535 = sbr.rel (%p533) target = $region48
    $region47: #{ma_unet_forward.16} parent=5 // pred_region
      %s536 = ssub.s32 %s11, 2
      // Predicated region
      $region49: #{ma_unet_forward.16} parent=47 // pred_check
        %p537 = pneg %p173
      $region50: #{ma_unet_forward.16} parent=47 // pred_check_branch
        %539 = sbr.rel (%p537) target = $region52
      $region51: #{ma_unet_forward.16} parent=47 // pred_region
        %s540 = smul.u32 2, %s23
        %p541 = scmp.lt.s32.totalorder %s22, 1
        %s542 = scalar_select %p541, %s22, 1
        %p543 = scmp.lt.s32.totalorder %s540, 1
        %s544 = scalar_select %p543, %s540, 1
        %s545 = smul.addr %s542, 2
        %s546 = sadd.s32 %s544, %s545
        %s547 = smul.addr %s546, 8
        %s548 = scalar_lea.vmem %s5, %s547
      $region52: #{ma_unet_forward.16} parent=47 // pred_fallthru
        _
    $region48: #{ma_unet_forward.16} parent=5 // pred_fallthru
      _
  $region6: #{ma_unet_forward.16} parent=0 // loop_footer
    %s15 = sadd.s32 1, %s11
  $region7: #{ma_unet_forward.16} parent=0 // loop_footer_branch
    %10 = sbr.rel target = $region3
  $region8: #{ma_unet_forward.16} parent=0 // loop_exit
    _

// kernel: ma_unet_forward.17
$region0: #{ma_unet_forward.17}
  #allocation0 [shape = 'u32[]', space=smem, size = 0x4, offset = 0x4, fixed_abs, tag = 'smem constant byte address 0x4 - core index']
  #allocation1 [shape = 'u32[144,128]{1,0:T(1,128)}', space=vmem, size = 0x12000, scoped, tag = 'internal scratch']
  #allocation2 [shape = 'f32[1,1]{1,0:T(1,128)S(1)}', space=vmem, size = 0x200, scoped, tag = 'scoped memory for ma_unet_forward.17']
  %s0 = inlined_call_operand.vmem [shape: f32[2,8,256], index: 0, kind: input, shape index: {}]
  %s1 = inlined_call_operand.vmem [shape: f32[2,16,256], index: 1, kind: input, shape index: {}]
  %s2 = inlined_call_operand.vmem [shape: f32[8,8], index: 2, kind: input, shape index: {}]
  %s3 = inlined_call_operand.vmem [shape: f32[8,16], index: 3, kind: input, shape index: {}]
  %s4 = inlined_call_operand.vmem [shape: f32[8,1], index: 4, kind: input, shape index: {}]
  %s5 = inlined_call_operand.vmem [shape: f32[1,8], index: 5, kind: input, shape index: {}]
  %s6 = inlined_call_operand.<no memory space> [shape: f32[1,1], index: 6, kind: input, shape index: {}]
  %s7 = inlined_call_operand.vmem [shape: f32[2,1,256], index: 7, kind: output, shape index: {}]
  %s8 = sld [smem:[#allocation0]]
  $region61: #{ma_unet_forward.17} parent=0
    _
  %s10 = ssub.s32 1, %s8
  %s11 = scalar_select 0, %s10, %s8
  %v12 = vstv %s6
  %13 = vst [vmem:[#allocation2] sm:$0x1] %v12
  loop: start=0, step=1, limit=4
  $region2: #{ma_unet_forward.17} parent=0 // loop_pre_header
    _
  $region3: #{ma_unet_forward.17} parent=0 // loop_header
    %s15 = sphi 0, %s19
    %p16 = scmp.ge.s32.totalorder %s15, 4
    %s25 = sphi 0, %s27
    %s28 = sphi 0, %s25
    %s29 = sphi 0, %s28
    %s45 = sphi 0, %s29
    %s51 = sphi 0, %s53
    %s54 = sphi 0, %s51
    %s55 = sphi 0, %s54
    %s71 = sphi 0, %s55
    %s75 = sphi 0, %s75
    %s77 = sphi 0, %s75
    %s78 = sphi 0, %s77
    %s92 = sphi 0, %s78
    %s96 = sphi 0, %s96
    %s98 = sphi 0, %s96
    %s99 = sphi 0, %s98
    %s113 = sphi 0, %s99
    %s117 = sphi 0, %s117
    %s119 = sphi 0, %s117
    %s120 = sphi 0, %s119
    %s134 = sphi 0, %s120
    %s138 = sphi 0, %s138
    %s140 = sphi 0, %s138
    %s141 = sphi 0, %s140
    %s155 = sphi 0, %s141
    %s159 = sphi 0, %s159
    %s161 = sphi 0, %s159
    %s162 = sphi 0, %s161
    %s176 = sphi 0, %s162
    %s182 = sphi 0, %s184
    %s185 = sphi 0, %s182
    %s186 = sphi 0, %s185
    %s202 = sphi 0, %s186
  $region4: #{ma_unet_forward.17} parent=0 // loop_header_branch
    %18 = sbr.rel (%p16) target = $region8
  $region5: #{ma_unet_forward.17} parent=0 // loop_body
    %s20 = ssub.s32 %s15, 1
    %s21 = ssub.s32 %s15, 2
    %s22 = sadd.s32 %s15, 1
    %s23 = ssub.s32 %s15, %s22
    %p24 = scmp.eq.s32.totalorder %s23, 0
    %s26 = sadd.s32 %s25, 1
    %s27 = scalar_select %p24, %s25, %s26
    %p30 = pneg %p24
    %p31 = scmp.eq.s32.totalorder %s15, 1
    %p32 = por %p30, %p31
    %p33 = scmp.ne.s32.totalorder %s25, %s28
    %p34 = scmp.eq.s32.totalorder %s15, 0
    %p35 = por %p33, %p34
    %p36 = scmp.ne.s32.totalorder %s25, %s28
    %p37 = scmp.eq.s32.totalorder %s20, 1
    %p38 = por %p36, %p37
    %p39 = scmp.ne.s32.totalorder %s28, %s29
    %p40 = scmp.eq.s32.totalorder %s20, 0
    %p41 = por %p39, %p40
    %p42 = scmp.ne.s32.totalorder %s28, %s29
    %p43 = scmp.eq.s32.totalorder %s21, 1
    %p44 = por %p42, %p43
    %p46 = scmp.ne.s32.totalorder %s29, %s45
    %p47 = scmp.eq.s32.totalorder %s21, 0
    %p48 = por %p46, %p47
    %s49 = ssub.s32 %s15, %s22
    %p50 = scmp.eq.s32.totalorder %s49, 0
    %s52 = sadd.s32 %s51, 1
    %s53 = scalar_select %p50, %s51, %s52
    %p56 = pneg %p50
    %p57 = scmp.eq.s32.totalorder %s15, 1
    %p58 = por %p56, %p57
    %p59 = scmp.ne.s32.totalorder %s51, %s54
    %p60 = scmp.eq.s32.totalorder %s15, 0
    %p61 = por %p59, %p60
    %p62 = scmp.ne.s32.totalorder %s51, %s54
    %p63 = scmp.eq.s32.totalorder %s20, 1
    %p64 = por %p62, %p63
    %p65 = scmp.ne.s32.totalorder %s54, %s55
    %p66 = scmp.eq.s32.totalorder %s20, 0
    %p67 = por %p65, %p66
    %p68 = scmp.ne.s32.totalorder %s54, %s55
    %p69 = scmp.eq.s32.totalorder %s21, 1
    %p70 = por %p68, %p69
    %p72 = scmp.ne.s32.totalorder %s55, %s71
    %p73 = scmp.eq.s32.totalorder %s21, 0
    %p74 = por %p72, %p73
    %s76 = sadd.s32 %s75, 1
    %p79 = scmp.eq.s32.totalorder %s15, 1
    %p80 = scmp.ne.s32.totalorder %s75, %s77
    %p81 = scmp.eq.s32.totalorder %s15, 0
    %p82 = por %p80, %p81
    %p83 = scmp.ne.s32.totalorder %s75, %s77
    %p84 = scmp.eq.s32.totalorder %s20, 1
    %p85 = por %p83, %p84
    %p86 = scmp.ne.s32.totalorder %s77, %s78
    %p87 = scmp.eq.s32.totalorder %s20, 0
    %p88 = por %p86, %p87
    %p89 = scmp.ne.s32.totalorder %s77, %s78
    %p90 = scmp.eq.s32.totalorder %s21, 1
    %p91 = por %p89, %p90
    %p93 = scmp.ne.s32.totalorder %s78, %s92
    %p94 = scmp.eq.s32.totalorder %s21, 0
    %p95 = por %p93, %p94
    %s97 = sadd.s32 %s96, 1
    %p100 = scmp.eq.s32.totalorder %s15, 1
    %p101 = scmp.ne.s32.totalorder %s96, %s98
    %p102 = scmp.eq.s32.totalorder %s15, 0
    %p103 = por %p101, %p102
    %p104 = scmp.ne.s32.totalorder %s96, %s98
    %p105 = scmp.eq.s32.totalorder %s20, 1
    %p106 = por %p104, %p105
    %p107 = scmp.ne.s32.totalorder %s98, %s99
    %p108 = scmp.eq.s32.totalorder %s20, 0
    %p109 = por %p107, %p108
    %p110 = scmp.ne.s32.totalorder %s98, %s99
    %p111 = scmp.eq.s32.totalorder %s21, 1
    %p112 = por %p110, %p111
    %p114 = scmp.ne.s32.totalorder %s99, %s113
    %p115 = scmp.eq.s32.totalorder %s21, 0
    %p116 = por %p114, %p115
    %s118 = sadd.s32 %s117, 1
    %p121 = scmp.eq.s32.totalorder %s15, 1
    %p122 = scmp.ne.s32.totalorder %s117, %s119
    %p123 = scmp.eq.s32.totalorder %s15, 0
    %p124 = por %p122, %p123
    %p125 = scmp.ne.s32.totalorder %s117, %s119
    %p126 = scmp.eq.s32.totalorder %s20, 1
    %p127 = por %p125, %p126
    %p128 = scmp.ne.s32.totalorder %s119, %s120
    %p129 = scmp.eq.s32.totalorder %s20, 0
    %p130 = por %p128, %p129
    %p131 = scmp.ne.s32.totalorder %s119, %s120
    %p132 = scmp.eq.s32.totalorder %s21, 1
    %p133 = por %p131, %p132
    %p135 = scmp.ne.s32.totalorder %s120, %s134
    %p136 = scmp.eq.s32.totalorder %s21, 0
    %p137 = por %p135, %p136
    %s139 = sadd.s32 %s138, 1
    %p142 = scmp.eq.s32.totalorder %s15, 1
    %p143 = scmp.ne.s32.totalorder %s138, %s140
    %p144 = scmp.eq.s32.totalorder %s15, 0
    %p145 = por %p143, %p144
    %p146 = scmp.ne.s32.totalorder %s138, %s140
    %p147 = scmp.eq.s32.totalorder %s20, 1
    %p148 = por %p146, %p147
    %p149 = scmp.ne.s32.totalorder %s140, %s141
    %p150 = scmp.eq.s32.totalorder %s20, 0
    %p151 = por %p149, %p150
    %p152 = scmp.ne.s32.totalorder %s140, %s141
    %p153 = scmp.eq.s32.totalorder %s21, 1
    %p154 = por %p152, %p153
    %p156 = scmp.ne.s32.totalorder %s141, %s155
    %p157 = scmp.eq.s32.totalorder %s21, 0
    %p158 = por %p156, %p157
    %s160 = sadd.s32 %s159, 1
    %p163 = scmp.eq.s32.totalorder %s15, 1
    %p164 = scmp.ne.s32.totalorder %s159, %s161
    %p165 = scmp.eq.s32.totalorder %s15, 0
    %p166 = por %p164, %p165
    %p167 = scmp.ne.s32.totalorder %s159, %s161
    %p168 = scmp.eq.s32.totalorder %s20, 1
    %p169 = por %p167, %p168
    %p170 = scmp.ne.s32.totalorder %s161, %s162
    %p171 = scmp.eq.s32.totalorder %s20, 0
    %p172 = por %p170, %p171
    %p173 = scmp.ne.s32.totalorder %s161, %s162
    %p174 = scmp.eq.s32.totalorder %s21, 1
    %p175 = por %p173, %p174
    %p177 = scmp.ne.s32.totalorder %s162, %s176
    %p178 = scmp.eq.s32.totalorder %s21, 0
    %p179 = por %p177, %p178
    %s180 = ssub.s32 %s15, %s22
    %p181 = scmp.eq.s32.totalorder %s180, 0
    %s183 = sadd.s32 %s182, 1
    %s184 = scalar_select %p181, %s182, %s183
    %p187 = pneg %p181
    %p188 = scmp.eq.s32.totalorder %s15, 1
    %p189 = por %p187, %p188
    %p190 = scmp.ne.s32.totalorder %s182, %s185
    %p191 = scmp.eq.s32.totalorder %s15, 0
    %p192 = por %p190, %p191
    %p193 = scmp.ne.s32.totalorder %s182, %s185
    %p194 = scmp.eq.s32.totalorder %s20, 1
    %p195 = por %p193, %p194
    %p196 = scmp.ne.s32.totalorder %s185, %s186
    %p197 = scmp.eq.s32.totalorder %s20, 0
    %p198 = por %p196, %p197
    %p199 = scmp.ne.s32.totalorder %s185, %s186
    %p200 = scmp.eq.s32.totalorder %s21, 1
    %p201 = por %p199, %p200
    %p203 = scmp.ne.s32.totalorder %s186, %s202
    %p204 = scmp.eq.s32.totalorder %s21, 0
    %p205 = por %p203, %p204
    %p206 = scmp.le.s32.totalorder 1, %s15
    %p207 = scmp.lt.s32.totalorder %s15, 3
    %p208 = pnand %p206, %p207
    %p209 = pneg %p208
    // Predicated region
    $region9: #{ma_unet_forward.17} parent=5 // pred_check
      _
    $region10: #{ma_unet_forward.17} parent=5 // pred_check_branch
      %211 = sbr.rel (%p208) target = $region12
    $region11: #{ma_unet_forward.17} parent=5 // pred_region
      %s212 = ssub.s32 %s15, 1
      // Predicated region
      $region13: #{ma_unet_forward.17} parent=11 // pred_check
        %p213 = pneg %p88
      $region14: #{ma_unet_forward.17} parent=11 // pred_check_branch
        %215 = sbr.rel (%p213) target = $region16
      $region15: #{ma_unet_forward.17} parent=11 // pred_region
        _
      $region16: #{ma_unet_forward.17} parent=11 // pred_fallthru
        _
      // Predicated region
      $region17: #{ma_unet_forward.17} parent=11 // pred_check
        %p216 = pneg %p109
      $region18: #{ma_unet_forward.17} parent=11 // pred_check_branch
        %218 = sbr.rel (%p216) target = $region20
      $region19: #{ma_unet_forward.17} parent=11 // pred_region
        _
      $region20: #{ma_unet_forward.17} parent=11 // pred_fallthru
        _
      // Predicated region
      $region21: #{ma_unet_forward.17} parent=11 // pred_check
        %p219 = pneg %p130
      $region22: #{ma_unet_forward.17} parent=11 // pred_check_branch
        %221 = sbr.rel (%p219) target = $region24
      $region23: #{ma_unet_forward.17} parent=11 // pred_region
        _
      $region24: #{ma_unet_forward.17} parent=11 // pred_fallthru
        _
      // Predicated region
      $region25: #{ma_unet_forward.17} parent=11 // pred_check
        %p222 = pneg %p151
      $region26: #{ma_unet_forward.17} parent=11 // pred_check_branch
        %224 = sbr.rel (%p222) target = $region28
      $region27: #{ma_unet_forward.17} parent=11 // pred_region
        _
      $region28: #{ma_unet_forward.17} parent=11 // pred_fallthru
        _
      // Predicated region
      $region29: #{ma_unet_forward.17} parent=11 // pred_check
        %p225 = pneg %p172
      $region30: #{ma_unet_forward.17} parent=11 // pred_check_branch
        %227 = sbr.rel (%p225) target = $region32
      $region31: #{ma_unet_forward.17} parent=11 // pred_region
        _
      $region32: #{ma_unet_forward.17} parent=11 // pred_fallthru
        _
    $region12: #{ma_unet_forward.17} parent=5 // pred_fallthru
      _
    %p228 = scmp.lt.s32.totalorder %s15, 2
    // Predicated region
    $region33: #{ma_unet_forward.17} parent=5 // pred_check
      %p229 = pneg %p228
    $region34: #{ma_unet_forward.17} parent=5 // pred_check_branch
      %231 = sbr.rel (%p229) target = $region36
    $region35: #{ma_unet_forward.17} parent=5 // pred_region
      // Predicated region
      $region37: #{ma_unet_forward.17} parent=35 // pred_check
        %p232 = pneg %p35
      $region38: #{ma_unet_forward.17} parent=35 // pred_check_branch
        %234 = sbr.rel (%p232) target = $region40
      $region39: #{ma_unet_forward.17} parent=35 // pred_region
        %p235 = scmp.lt.s32.totalorder %s15, 1
        %s236 = scalar_select %p235, %s15, 1
        %s237 = smul.addr %s236, 2
        %s238 = smul.addr %s237, 8
        %s239 = scalar_lea.vmem %s0, %s238
      $region40: #{ma_unet_forward.17} parent=35 // pred_fallthru
        _
      // Predicated region
      $region41: #{ma_unet_forward.17} parent=35 // pred_check
        %p240 = pneg %p61
      $region42: #{ma_unet_forward.17} parent=35 // pred_check_branch
        %242 = sbr.rel (%p240) target = $region44
      $region43: #{ma_unet_forward.17} parent=35 // pred_region
        %p243 = scmp.lt.s32.totalorder %s15, 1
        %s244 = scalar_select %p243, %s15, 1
        %s245 = smul.addr %s244, 4
        %s246 = smul.addr %s245, 8
        %s247 = scalar_lea.vmem %s1, %s246
      $region44: #{ma_unet_forward.17} parent=35 // pred_fallthru
        _
    $region36: #{ma_unet_forward.17} parent=5 // pred_fallthru
      _
    %p248 = scmp.le.s32.totalorder 1, %s15
    %p249 = scmp.lt.s32.totalorder %s15, 3
    %p250 = pnand %p248, %p249
    %p251 = pneg %p250
    // Predicated region
    $region45: #{ma_unet_forward.17} parent=5 // pred_check
      _
    $region46: #{ma_unet_forward.17} parent=5 // pred_check_branch
      %253 = sbr.rel (%p250) target = $region48
    $region47: #{ma_unet_forward.17} parent=5 // pred_region
      %s254 = ssub.s32 %s15, 1
      %p255 = scmp.lt.s32.totalorder %s20, 1
      %s256 = scalar_select %p255, %s20, 1
      %s257 = smul.addr %s256, 2
      %s258 = smul.addr %s257, 8
      %s259 = scalar_lea.vmem %s0, %s258
      %p260 = pneg %p41
      %p261 = pneg %p38
      %p262 = scmp.lt.s32.totalorder %s20, 1
      %s263 = scalar_select %p262, %s20, 1
      %s264 = smul.addr %s263, 4
      %s265 = smul.addr %s264, 8
      %s266 = scalar_lea.vmem %s1, %s265
      %p267 = pneg %p67
      %p268 = pneg %p64
      %p269 = pneg %p88
      %p270 = pneg %p85
      %p271 = pneg %p109
      %p272 = pneg %p106
      %p273 = pneg %p130
      %p274 = pneg %p127
      %p275 = pneg %p151
      %p276 = pneg %p148
      %p277 = pneg %p172
      %p278 = pneg %p169
      %p279 = pneg %p198
      %p280 = pneg %p195
      %p281 = scmp.lt.s32.totalorder %s20, 1
      %s282 = scalar_select %p281, %s20, 1
      %s283 = smul.addr %s282, 2
      %s284 = scalar_lea.vmem %s7, %s283
      %p285 = scmp.lt.s32.totalorder %s20, 1
      %s286 = scalar_select %p285, %s20, 1
      %s287 = smul.addr %s286, 2
      %s288 = smul.addr %s287, 8
      %s289 = scalar_lea.vmem %s0, %s288
      %p290 = scmp.lt.s32.totalorder %s20, 1
      %s291 = scalar_select %p290, %s20, 1
      %s292 = smul.addr %s291, 4
      %s293 = smul.addr %s292, 8
      %s294 = scalar_lea.vmem %s1, %s293
      %p295 = scmp.lt.s32.totalorder %s20, 1
      %s296 = scalar_select %p295, %s20, 1
      %s297 = smul.addr %s296, 2
      %s298 = scalar_lea.vmem %s7, %s297
      %v299 = vld [vmem:[%s2] sm:$0xff]
      %v300 = vld [vmem:[%s289] sm:$0xff]
      %v301 = vld [vmem:[%s289 + $0x8] sm:$0xff]
      %v302 = vld [vmem:[%s3] sm:$0xff]
      %v303 = vld [vmem:[%s294] sm:$0xff]
      %v304 = vld [vmem:[%s294 + $0x8] sm:$0xff]
      %v305 = vld [vmem:[%s294 + $0x10] sm:$0xff]
      %v306 = vld [vmem:[%s294 + $0x18] sm:$0xff]
      %vm307 = vcmask 130048
      %v309 = vsel %vm307, %v302, 0
      %311 = vmatprep.subr.mxu0 0.0
      %312 = vmatpush1.msra.mxu0 0.0
      %313 = vmatprep.subr.mxu0 0.0
      %314 = vmatpush1.msra.mxu0 0.0
      %315 = vmatprep.subr.mxu0 0.0
      %316 = vmatpush1.msra.mxu0 0.0
      %317 = vmatprep.subr.mxu0 0.0
      %318 = vmatpush1.msra.mxu0 0.0
      %319 = vmatprep.subr.mxu0 0.0
      %320 = vmatpush1.msra.mxu0 0.0
      %321 = vmatprep.subr.mxu0 0.0
      %322 = vmatpush1.msra.mxu0 0.0
      %323 = vmatprep.subr.mxu0 0.0
      %324 = vmatpush1.msra.mxu0 0.0
      %325 = vmatprep.subr.mxu0 0.0
      %326 = vmatpush1.msra.mxu0 0.0
      %327 = vmatprep.subr.mxu0 0.0
      %328 = vmatpush1.msra.mxu0 0.0
      %329 = vmatprep.subr.mxu0 0.0
      %330 = vmatpush1.msra.mxu0 0.0
      %331 = vmatprep.subr.mxu0 0.0
      %332 = vmatpush1.msra.mxu0 0.0
      %333 = vmatprep.subr.mxu0 0.0
      %334 = vmatpush1.msra.mxu0 0.0
      %335 = vmatprep.subr.mxu0 0.0
      %336 = vmatpush1.msra.mxu0 0.0
      %337 = vmatprep.subr.mxu0 0.0
      %338 = vmatpush1.msra.mxu0 0.0
      %339 = vmatprep.subr.mxu0 %v306
      %340 = vmatpush1.msra.mxu0 %v305
      %341 = vmatprep.subr.mxu0 %v304
      %342 = vmatpush1.msra.mxu0 %v303
      %343 = vmatprep.subr.mxu0 0.0
      %344 = vmatpush2.msra.mxu0 0.0
      %345 = vmatprep.subr.mxu0 0.0
      %346 = vmatpush2.msra.mxu0 0.0
      %347 = vmatprep.subr.mxu0 0.0
      %348 = vmatpush2.msra.mxu0 0.0
      %349 = vmatprep.subr.mxu0 0.0
      %350 = vmatpush2.msra.mxu0 0.0
      %351 = vmatprep.subr.mxu0 0.0
      %352 = vmatpush2.msra.mxu0 0.0
      %353 = vmatprep.subr.mxu0 0.0
      %354 = vmatpush2.msra.mxu0 0.0
      %355 = vmatprep.subr.mxu0 0.0
      %356 = vmatpush2.msra.mxu0 0.0
      %357 = vmatprep.subr.mxu0 0.0
      %358 = vmatpush2.msra.mxu0 0.0
      %359 = vmatprep.subr.mxu0 0.0
      %360 = vmatpush2.msra.mxu0 0.0
      %361 = vmatprep.subr.mxu0 0.0
      %362 = vmatpush2.msra.mxu0 0.0
      %363 = vmatprep.subr.mxu0 0.0
      %364 = vmatpush2.msra.mxu0 0.0
      %365 = vmatprep.subr.mxu0 0.0
      %366 = vmatpush2.msra.mxu0 0.0
      %367 = vmatprep.subr.mxu0 0.0
      %368 = vmatpush2.msra.mxu0 0.0
      %369 = vmatprep.subr.mxu0 0.0
      %370 = vmatpush2.msra.mxu0 0.0
      %371 = vmatprep.subr.mxu0 0.0
      %372 = vmatpush2.msra.mxu0 0.0
      %373 = vmatprep.subr.mxu0 0.0
      %374 = vmatpush2.msra.mxu0 0.0
      %375 = vmatprep.mubr.f32.mxu0 0.0
      %376 = vmatmul.mubr.f32.gmra.mxu0 %v309
      %v377 = vpop.f32.mrf.mxu0
      %v378 = vadd.f32 0.0, %v377
      %v379 = vpop.f32.mrf.mxu0
      %v380 = vadd.f32 0.0, %v379
      %381 = vdwg.mxu0
      %vm382 = vcmask 64512
      %v384 = vsel %vm382, %v299, 0
      %386 = vmatprep.subr.mxu0 0.0
      %387 = vmatpush1.msra.mxu0 0.0
      %388 = vmatprep.subr.mxu0 0.0
      %389 = vmatpush1.msra.mxu0 0.0
      %390 = vmatprep.subr.mxu0 0.0
      %391 = vmatpush1.msra.mxu0 0.0
      %392 = vmatprep.subr.mxu0 0.0
      %393 = vmatpush1.msra.mxu0 0.0
      %394 = vmatprep.subr.mxu0 0.0
      %395 = vmatpush1.msra.mxu0 0.0
      %396 = vmatprep.subr.mxu0 0.0
      %397 = vmatpush1.msra.mxu0 0.0
      %398 = vmatprep.subr.mxu0 0.0
      %399 = vmatpush1.msra.mxu0 0.0
      %400 = vmatprep.subr.mxu0 0.0
      %401 = vmatpush1.msra.mxu0 0.0
      %402 = vmatprep.subr.mxu0 0.0
      %403 = vmatpush1.msra.mxu0 0.0
      %404 = vmatprep.subr.mxu0 0.0
      %405 = vmatpush1.msra.mxu0 0.0
      %406 = vmatprep.subr.mxu0 0.0
      %407 = vmatpush1.msra.mxu0 0.0
      %408 = vmatprep.subr.mxu0 0.0
      %409 = vmatpush1.msra.mxu0 0.0
      %410 = vmatprep.subr.mxu0 0.0
      %411 = vmatpush1.msra.mxu0 0.0
      %412 = vmatprep.subr.mxu0 0.0
      %413 = vmatpush1.msra.mxu0 0.0
      %414 = vmatprep.subr.mxu0 0.0
      %415 = vmatpush1.msra.mxu0 0.0
      %416 = vmatprep.subr.mxu0 %v301
      %417 = vmatpush1.msra.mxu0 %v300
      %418 = vmatprep.subr.mxu0 0.0
      %419 = vmatpush2.msra.mxu0 0.0
      %420 = vmatprep.subr.mxu0 0.0
      %421 = vmatpush2.msra.mxu0 0.0
      %422 = vmatprep.subr.mxu0 0.0
      %423 = vmatpush2.msra.mxu0 0.0
      %424 = vmatprep.subr.mxu0 0.0
      %425 = vmatpush2.msra.mxu0 0.0
      %426 = vmatprep.subr.mxu0 0.0
      %427 = vmatpush2.msra.mxu0 0.0
      %428 = vmatprep.subr.mxu0 0.0
      %429 = vmatpush2.msra.mxu0 0.0
      %430 = vmatprep.subr.mxu0 0.0
      %431 = vmatpush2.msra.mxu0 0.0
      %432 = vmatprep.subr.mxu0 0.0
      %433 = vmatpush2.msra.mxu0 0.0
      %434 = vmatprep.subr.mxu0 0.0
      %435 = vmatpush2.msra.mxu0 0.0
      %436 = vmatprep.subr.mxu0 0.0
      %437 = vmatpush2.msra.mxu0 0.0
      %438 = vmatprep.subr.mxu0 0.0
      %439 = vmatpush2.msra.mxu0 0.0
      %440 = vmatprep.subr.mxu0 0.0
      %441 = vmatpush2.msra.mxu0 0.0
      %442 = vmatprep.subr.mxu0 0.0
      %443 = vmatpush2.msra.mxu0 0.0
      %444 = vmatprep.subr.mxu0 0.0
      %445 = vmatpush2.msra.mxu0 0.0
      %446 = vmatprep.subr.mxu0 0.0
      %447 = vmatpush2.msra.mxu0 0.0
      %448 = vmatprep.subr.mxu0 0.0
      %449 = vmatpush2.msra.mxu0 0.0
      %450 = vmatprep.mubr.f32.mxu0 0.0
      %451 = vmatmul.mubr.f32.gmra.mxu0 %v384
      %v452 = vpop.f32.mrf.mxu0
      %v453 = vadd.f32 %v378, %v452
      %v454 = vpop.f32.mrf.mxu0
      %v455 = vadd.f32 %v380, %v454
      %456 = vdwg.mxu0
      %v457 = vld [vmem:[%s4] sm:$0xff]
      %459 = vset.pattern.permute.xlu0 0
      %460 = vperm.xlu0 %459, %v457
      %v461 = vpop.permute.xlu0 %460
      %v463 = vadd.f32 %v453, %v461
      %v464 = vadd.f32 %v455, %v461
      %v465 = vadd.f32 %v463, %v464
      %466 = vadd.xlane.f32.xlu0 %v465
      %v467 = vpop.xlane.xlu0 %466
      %v468 = vrcp.pop 256.0
      %v469 = vmul.f32 %v467, %v468
      %v470 = vxor.u32 %v469, 2147483648
      %v471 = vmul.f32 %v470, 1.442695
      %v472 = vpow.pop %v471
      %v473 = vadd.f32 %v472, 1.0
      %v474 = vrcp.pop %v473
      %v475 = vmul.f32 1.0, %v474
      %v476 = vmul.f32 %v463, %v475
      %v477 = vmul.f32 %v464, %v475
      %v478 = vld [vmem:[%s5] sm:$0x1]
      %v479 = vld [vmem:[#allocation2] sm:$0x1]
      %481 = vset.pattern.permute.xlu0 0
      %482 = vperm.xlu0 %481, %v479
      %v483 = vpop.permute.xlu0 %482
      %v485 = vlaneseq
      %v486 = vshrl.u32 %v485, 7
      %v487 = vsub.s32 0, %v486
      %v488 = vrot.slane %v483, %v487
      %v490 = vsel %vm382, %v478, 0
      %492 = vmatprep.subr.mxu0 0.0
      %493 = vmatpush1.msra.mxu0 0.0
      %494 = vmatprep.subr.mxu0 0.0
      %495 = vmatpush1.msra.mxu0 0.0
      %496 = vmatprep.subr.mxu0 0.0
      %497 = vmatpush1.msra.mxu0 0.0
      %498 = vmatprep.subr.mxu0 0.0
      %499 = vmatpush1.msra.mxu0 0.0
      %500 = vmatprep.subr.mxu0 0.0
      %501 = vmatpush1.msra.mxu0 0.0
      %502 = vmatprep.subr.mxu0 0.0
      %503 = vmatpush1.msra.mxu0 0.0
      %504 = vmatprep.subr.mxu0 0.0
      %505 = vmatpush1.msra.mxu0 0.0
      %506 = vmatprep.subr.mxu0 0.0
      %507 = vmatpush1.msra.mxu0 0.0
      %508 = vmatprep.subr.mxu0 0.0
      %509 = vmatpush1.msra.mxu0 0.0
      %510 = vmatprep.subr.mxu0 0.0
      %511 = vmatpush1.msra.mxu0 0.0
      %512 = vmatprep.subr.mxu0 0.0
      %513 = vmatpush1.msra.mxu0 0.0
      %514 = vmatprep.subr.mxu0 0.0
      %515 = vmatpush1.msra.mxu0 0.0
      %516 = vmatprep.subr.mxu0 0.0
      %517 = vmatpush1.msra.mxu0 0.0
      %518 = vmatprep.subr.mxu0 0.0
      %519 = vmatpush1.msra.mxu0 0.0
      %520 = vmatprep.subr.mxu0 0.0
      %521 = vmatpush1.msra.mxu0 0.0
      %522 = vmatprep.subr.mxu0 %v464
      %523 = vmatpush1.msra.mxu0 %v463
      %524 = vmatprep.subr.mxu0 0.0
      %525 = vmatpush2.msra.mxu0 0.0
      %526 = vmatprep.subr.mxu0 0.0
      %527 = vmatpush2.msra.mxu0 0.0
      %528 = vmatprep.subr.mxu0 0.0
      %529 = vmatpush2.msra.mxu0 0.0
      %530 = vmatprep.subr.mxu0 0.0
      %531 = vmatpush2.msra.mxu0 0.0
      %532 = vmatprep.subr.mxu0 0.0
      %533 = vmatpush2.msra.mxu0 0.0
      %534 = vmatprep.subr.mxu0 0.0
      %535 = vmatpush2.msra.mxu0 0.0
      %536 = vmatprep.subr.mxu0 0.0
      %537 = vmatpush2.msra.mxu0 0.0
      %538 = vmatprep.subr.mxu0 0.0
      %539 = vmatpush2.msra.mxu0 0.0
      %540 = vmatprep.subr.mxu0 0.0
      %541 = vmatpush2.msra.mxu0 0.0
      %542 = vmatprep.subr.mxu0 0.0
      %543 = vmatpush2.msra.mxu0 0.0
      %544 = vmatprep.subr.mxu0 0.0
      %545 = vmatpush2.msra.mxu0 0.0
      %546 = vmatprep.subr.mxu0 0.0
      %547 = vmatpush2.msra.mxu0 0.0
      %548 = vmatprep.subr.mxu0 0.0
      %549 = vmatpush2.msra.mxu0 0.0
      %550 = vmatprep.subr.mxu0 0.0
      %551 = vmatpush2.msra.mxu0 0.0
      %552 = vmatprep.subr.mxu0 0.0
      %553 = vmatpush2.msra.mxu0 0.0
      %554 = vmatprep.subr.mxu0 0.0
      %555 = vmatpush2.msra.mxu0 0.0
      %556 = vmatprep.mubr.f32.mxu0 0.0
      %557 = vmatmul.mubr.f32.gmra.mxu0 %v490
      %v558 = vpop.f32.mrf.mxu0
      %v559 = vadd.f32 %v488, %v558
      %v560 = vpop.f32.mrf.mxu0
      %v561 = vadd.f32 %v488, %v560
      %562 = vdwg.mxu0
      %v563 = vxor.u32 %v559, 2147483648
      %v564 = vxor.u32 %v561, 2147483648
      %v565 = vmul.f32 %v563, 1.442695
      %v566 = vpow.pop %v565
      %v567 = vmul.f32 %v564, 1.442695
      %v568 = vpow.pop %v567
      %v569 = vadd.f32 %v566, 1.0
      %v570 = vadd.f32 %v568, 1.0
      %v571 = vrcp.pop %v569
      %v572 = vmul.f32 1.0, %v571
      %v573 = vrcp.pop %v570
      %v574 = vmul.f32 1.0, %v573
      %v575 = vlaneseq
      %v576 = vshrl.u32 %v575, 7
      %v577 = vsub.s32 0, %v576
      %v578 = vrot.slane %v572, %v577
      %v579 = vlaneseq
      %v580 = vshrl.u32 %v579, 7
      %v581 = vsub.s32 0, %v580
      %v582 = vrot.slane %v574, %v581
      %v583 = vmul.f32 %v463, %v578
      %v584 = vmul.f32 %v464, %v582
      %v585 = vrot.slane %v476, 4
      %v586 = vadd.f32 %v476, %v585
      %v587 = vrot.slane %v586, 2
      %v588 = vadd.f32 %v586, %v587
      %v589 = vrot.slane %v588, 1
      %v590 = vadd.f32 %v588, %v589
      %v591 = vrot.slane %v477, 4
      %v592 = vadd.f32 %v477, %v591
      %v593 = vrot.slane %v592, 2
      %v594 = vadd.f32 %v592, %v593
      %v595 = vrot.slane %v594, 1
      %v596 = vadd.f32 %v594, %v595
      %v597 = vrot.slane %v583, 4
      %v598 = vadd.f32 %v583, %v597
      %v599 = vrot.slane %v598, 2
      %v600 = vadd.f32 %v598, %v599
      %v601 = vrot.slane %v600, 1
      %v602 = vadd.f32 %v600, %v601
      %v603 = vrot.slane %v584, 4
      %v604 = vadd.f32 %v584, %v603
      %v605 = vrot.slane %v604, 2
      %v606 = vadd.f32 %v604, %v605
      %v607 = vrot.slane %v606, 1
      %v608 = vadd.f32 %v606, %v607
      %v609 = vadd.f32 %v590, %v602
      %v610 = vadd.f32 %v596, %v608
      %v611 = vrcp.pop 16.0
      %v612 = vmul.f32 %v609, %v611
      %v613 = vmul.f32 %v610, %v611
      %v614 = vxor.u32 %v612, 2147483648
      %v615 = vxor.u32 %v613, 2147483648
      %v616 = vmul.f32 %v614, 1.442695
      %v617 = vpow.pop %v616
      %v618 = vmul.f32 %v615, 1.442695
      %v619 = vpow.pop %v618
      %v620 = vadd.f32 %v617, 1.0
      %v621 = vadd.f32 %v619, 1.0
      %v622 = vrcp.pop %v620
      %v623 = vmul.f32 1.0, %v622
      %v624 = vrcp.pop %v621
      %v625 = vmul.f32 1.0, %v624
      %v628 = vcombine.low %v623, %v625
      %v630 = vunpack.c.l.s4 1966171168
      %v631 = vunpack.c.0.s8 %v630
      %v632 = vlaneseq
      %v633 = vshrl.u32 %v632, 7
      %v634 = vsub.s32 %v631, %v633
      %v635 = vrot.slane %v628, %v634
      %v637 = vunpack.c.l.s4 1966171168
      %v638 = vunpack.c.0.s8 %v637
      %v639 = vlaneseq
      %v640 = vshrl.u32 %v639, 7
      %v641 = vsub.s32 %v638, %v640
      %v642 = vrot.slane %v635, %v641
      %v644 = vlaneseq
      %vm645 = vcmp.ge.s32.totalorder %v644, 0
      %vm646 = vcmp.lt.s32.totalorder %v644, 256
      %vm647 = vmand %vm645, %vm646
      %648 = vst.msk [vmem:[%s298] sm:$0x3] %vm647, %v642
      %p649 = scmp.lt.s32.totalorder %s20, 1
      %s650 = scalar_select %p649, %s20, 1
      %s651 = smul.addr %s650, 2
      %s652 = scalar_lea.vmem %s7, %s651
      // Predicated region
      $region49: #{ma_unet_forward.17} parent=47 // pred_check
        %p653 = pneg %p195
      $region50: #{ma_unet_forward.17} parent=47 // pred_check_branch
        %655 = sbr.rel (%p653) target = $region52
      $region51: #{ma_unet_forward.17} parent=47 // pred_region
        _
      $region52: #{ma_unet_forward.17} parent=47 // pred_fallthru
        _
    $region48: #{ma_unet_forward.17} parent=5 // pred_fallthru
      _
    %p656 = scmp.le.s32.totalorder 2, %s15
    // Predicated region
    $region53: #{ma_unet_forward.17} parent=5 // pred_check
      %p657 = pneg %p656
    $region54: #{ma_unet_forward.17} parent=5 // pred_check_branch
      %659 = sbr.rel (%p657) target = $region56
    $region55: #{ma_unet_forward.17} parent=5 // pred_region
      %s660 = ssub.s32 %s15, 2
      // Predicated region
      $region57: #{ma_unet_forward.17} parent=55 // pred_check
        %p661 = pneg %p201
      $region58: #{ma_unet_forward.17} parent=55 // pred_check_branch
        %663 = sbr.rel (%p661) target = $region60
      $region59: #{ma_unet_forward.17} parent=55 // pred_region
        %p664 = scmp.lt.s32.totalorder %s21, 1
        %s665 = scalar_select %p664, %s21, 1
        %s666 = smul.addr %s665, 2
        %s667 = scalar_lea.vmem %s7, %s666
      $region60: #{ma_unet_forward.17} parent=55 // pred_fallthru
        _
    $region56: #{ma_unet_forward.17} parent=5 // pred_fallthru
      _
  $region6: #{ma_unet_forward.17} parent=0 // loop_footer
    %s19 = sadd.s32 1, %s15
  $region7: #{ma_unet_forward.17} parent=0 // loop_footer_branch
    %14 = sbr.rel target = $region3
  $region8: #{ma_unet_forward.17} parent=0 // loop_exit
    _

</llo_original>
